<compile_context>
chip_gen: v5e
topology: v5e:2x2
jax: 0.10.0
libtpu: 0.0.40
codegen_flags: <defaults>
</compile_context>

<pallas_src>
import math

import numpy as np
import jax
import jax.numpy as jnp
from jax import lax
from jax.experimental import pallas as pl
from jax.experimental.pallas import tpu as pltpu

# ----------------------------- configuration ---------------------------------
B = 8                       # batch size
NUM_FIELDS = 9              # len(field_dims)
FIELD_SIZE = 10
FIELD_DIMS = [FIELD_SIZE] * NUM_FIELDS
COMMENTS_DIMS = 40
EMBED_DIM = 32              # embed_dim (divisible by nhead)
NHEAD = 4
HEAD_DIM = EMBED_DIM // NHEAD
TEXT_EMBED_DIM = 64
NUM_TEXTS = 12
NUM_CROSS_LAYERS = 3
MLP_DIMS = (128, 64)
SEQ_LEN = NUM_FIELDS + 7                # 16
SB = SEQ_LEN * B                        # 128 rows for the batched attention
EMBED_OUTPUT_DIM = SEQ_LEN * EMBED_DIM  # 512
BN_EPS = 1e-5                           # eval-mode BatchNorm folded into MLP weights
# dropout: eval mode -> identity, not implemented in the kernels.

assert NHEAD * HEAD_DIM == EMBED_DIM
assert SB == 128


# --------------------- fused kernel: attention + DCN head ---------------------
def fused_kernel(x_ref, wqkv_ref, bqkv_ref, wo_ref, bo_ref,
                 cw_ref, cb_ref,
                 w1_ref, b1_ref, w2_ref, b2_ref, w3_ref, b3_ref,
                 wlc_ref, wlm_ref, bl_ref,
                 p_ref, pr1_ref, pr2_ref,
                 x0_scr):
    # ---- batched QKV projection: (S*B, E) @ (E, 3E) ----
    x = x_ref[...]                                        # (128, 32) f32, row = s*B + b
    xb = x.astype(jnp.bfloat16)
    qkv = jnp.dot(xb, wqkv_ref[...],
                  preferred_element_type=jnp.float32) + bqkv_ref[...]   # (128, 96) f32
    q = qkv[:, :EMBED_DIM]
    k = qkv[:, EMBED_DIM:2 * EMBED_DIM]
    v = qkv[:, 2 * EMBED_DIM:]

    # ---- block-masked batched attention (all batches at once) ----
    # rows are position-major, so two rows belong to the same batch iff row % B equal.
    ri = lax.broadcasted_iota(jnp.int32, (SB, SB), 0)
    ci = lax.broadcasted_iota(jnp.int32, (SB, SB), 1)
    same_batch = (ri % B) == (ci % B)                     # hoisted, reused by all heads
    scale = jnp.float32(1.0 / math.sqrt(HEAD_DIM))
    wo = wo_ref[...]                                      # (32, 32) f32

    attn_acc = None
    for h in range(NHEAD):
        sl = slice(h * HEAD_DIM, (h + 1) * HEAD_DIM)
        qh = q[:, sl].astype(jnp.bfloat16)
        kh = k[:, sl].astype(jnp.bfloat16)
        vh = v[:, sl].astype(jnp.bfloat16)
        s = lax.dot_general(qh, kh, (((1,), (1,)), ((), ())),
                            preferred_element_type=jnp.float32) * scale   # (128, 128)
        s = jnp.where(same_batch, s, jnp.float32(-1e30))   # mask BEFORE max/softmax
        s = s - jnp.max(s, axis=-1, keepdims=True)
        e = jnp.exp(s)
        pattn = e * pl.reciprocal(jnp.sum(e, axis=-1, keepdims=True), approx=True)
        ctx_h = jnp.dot(pattn.astype(jnp.bfloat16), vh,
                        preferred_element_type=jnp.float32)               # (128, 8)
        contrib = jnp.dot(ctx_h, wo[h * HEAD_DIM:(h + 1) * HEAD_DIM, :],
                          preferred_element_type=jnp.float32)             # (128, 32)
        attn_acc = contrib if attn_acc is None else attn_acc + contrib
    attn = attn_acc + bo_ref[...]                          # (128, 32) f32

    # ---- relayout (S*B, E) -> (B, S*E): 16 contiguous 8-row copies (lane-dense) ----
    for s_pos in range(SEQ_LEN):
        x0_scr[:, s_pos * EMBED_DIM:(s_pos + 1) * EMBED_DIM] = \
            attn[s_pos * B:(s_pos + 1) * B, :]
    x0 = x0_scr[...]                                       # (8, 512) f32

    # ---- cross network: x_{l+1} = x0 * (x_l . w_l) + b_l + x_l ----
    cw = cw_ref[...]                                       # (3, 512)
    cb = cb_ref[...]
    xc = x0
    for i in range(NUM_CROSS_LAYERS):
        w = cw[i:i + 1, :]
        xw = jnp.sum(xc * w, axis=1, keepdims=True)        # (8, 1) lane reduce
        xc = x0 * xw + cb[i:i + 1, :] + xc

    # ---- merged MLP + comment heads (BatchNorm folded into MLP weights) ----
    x0b = x0.astype(jnp.bfloat16)
    o1 = jnp.maximum(jnp.dot(x0b, w1_ref[...],
                             preferred_element_type=jnp.float32) + b1_ref[...], 0.0)  # (8, 384)
    o2 = jnp.maximum(jnp.dot(o1.astype(jnp.bfloat16), w2_ref[...],
                             preferred_element_type=jnp.float32) + b2_ref[...], 0.0)  # (8, 320)
    h2 = o2[:, :MLP_DIMS[1]]                               # (8, 64)  MLP branch
    t2 = o2[:, MLP_DIMS[1]:]                               # (8, 256) both heads' layer-2
    scores = jnp.dot(t2.astype(jnp.bfloat16), w3_ref[...],
                     preferred_element_type=jnp.float32) + b3_ref[...]                 # (8, 12)

    def softmax_rows(sc):
        sc = sc - jnp.max(sc, axis=1, keepdims=True)
        e = jnp.exp(sc)
        return e * pl.reciprocal(jnp.sum(e, axis=1, keepdims=True), approx=True)

    pr1_ref[...] = softmax_rows(scores[:, :6])
    pr2_ref[...] = softmax_rows(scores[:, 6:])

    # ---- final ranking linear as lane reductions (no N=1 matmul) ----
    p_ref[...] = (jnp.sum(xc * wlc_ref[...], axis=1, keepdims=True)
                  + jnp.sum(h2 * wlm_ref[...], axis=1, keepdims=True)
                  + bl_ref[...])


def run_fused(x_sb, p):
    vmem = pl.BlockSpec(memory_space=pltpu.MemorySpace.VMEM)
    return pl.pallas_call(
        fused_kernel,
        out_shape=(jax.ShapeDtypeStruct((B, 1), jnp.float32),
                   jax.ShapeDtypeStruct((B, 6), jnp.float32),
                   jax.ShapeDtypeStruct((B, 6), jnp.float32)),
        in_specs=[vmem] * 16,
        out_specs=(vmem, vmem, vmem),
        scratch_shapes=[pltpu.VMEM((B, EMBED_OUTPUT_DIM), jnp.float32)],
    )(x_sb, p["wqkv_bf16"], p["bqkv"], p["wo"], p["bo"],
      p["cross_w"], p["cross_b"],
      p["w1_bf16"], p["b1_cat"], p["w2_bf16"], p["b2_cat"], p["w3_bf16"], p["b3_cat"],
      p["w_lin_cross_t"], p["w_lin_mlp_t"], p["b_lin"])


# ------------------------------- forward (glue) --------------------------------
def forward(params, x):
    # embedding lookups (gathers = glue)
    ind_idx = x[:, :-6] + params["offsets"][None, :]
    ind_emb = params["emb_table"][ind_idx]                         # (B, F, E)
    comment_raw = params["user_comment_embeddings"][x[:, -6:]]     # (B, 6, Dt)
    text_raw = params["text_embeddings"][x[:, -8]]                 # (B, Dt)
    # NOTE: shared_embedding(x[:, -6:]) is computed but never used in the torch
    # forward output, so it is omitted here.
    # TODO(synk): dropout layers are eval-mode identity and are not emitted.

    # tiny dim-reducer linears (glue)
    text_red = text_raw @ params["w_tred"] + params["b_tred"]      # (B, E)
    com_red = comment_raw @ params["w_cred"] + params["b_cred"]    # (B, 6, E)

    embed_x = jnp.concatenate([ind_emb, text_red[:, None, :], com_red], axis=1)  # (B, S, E)
    # position-major row order (row = s*B + b) so the in-kernel relayout is contiguous
    x_sb = embed_x.transpose(1, 0, 2).reshape(SB, EMBED_DIM)

    p_out, pr1, pr2 = run_fused(x_sb, params)                      # single fused Pallas call
    return p_out[:, 0], pr1, pr2


# --------------------------- pure-JAX reference --------------------------------
def reference_forward(params, x):
    ind_idx = x[:, :-6] + params["offsets"][None, :]
    ind_emb = params["emb_table"][ind_idx]
    comment_raw = params["user_comment_embeddings"][x[:, -6:]]
    text_raw = params["text_embeddings"][x[:, -8]]
    text_red = text_raw @ params["w_tred"] + params["b_tred"]
    com_red = comment_raw @ params["w_cred"] + params["b_cred"]
    embed_x = jnp.concatenate([ind_emb, text_red[:, None, :], com_red], axis=1)

    q = embed_x @ params["wq"] + params["bq"]
    k = embed_x @ params["wk"] + params["bk"]
    v = embed_x @ params["wv"] + params["bv"]

    def split(t):
        return t.reshape(B, SEQ_LEN, NHEAD, HEAD_DIM).transpose(0, 2, 1, 3)

    qh, kh, vh = split(q), split(k), split(v)
    s = jnp.einsum("bhqd,bhkd->bhqk", qh, kh) / math.sqrt(HEAD_DIM)
    a = jax.nn.softmax(s, axis=-1)
    o = jnp.einsum("bhqk,bhkd->bhqd", a, vh).transpose(0, 2, 1, 3)
    o = o.reshape(B, SEQ_LEN, EMBED_DIM) @ params["wo"] + params["bo"]
    xf = o.reshape(B, EMBED_OUTPUT_DIM)

    x0 = xf
    xc = x0
    for i in range(NUM_CROSS_LAYERS):
        xw = jnp.sum(xc * params["cross_w"][i][None, :], axis=1, keepdims=True)
        xc = x0 * xw + params["cross_b"][i][None, :] + xc
    h = jax.nn.relu(x0 @ params["w_m1"] + params["b_m1"])
    h = jax.nn.relu(h @ params["w_m2"] + params["b_m2"])
    p = (xc @ params["w_lin_cross"] + h @ params["w_lin_mlp"] + params["b_lin"])[:, 0]

    def head(tag):
        t = jax.nn.relu(x0 @ params[f"w_{tag}1"] + params[f"b_{tag}1"])
        t = jax.nn.relu(t @ params[f"w_{tag}2"] + params[f"b_{tag}2"])
        s2 = t @ params[f"w_{tag}3"] + params[f"b_{tag}3"]
        return jax.nn.softmax(s2, axis=1)

    return p, head("a"), head("b")


# ------------------------------ parameter init ---------------------------------
def _block_diag(*mats):
    rows = sum(m.shape[0] for m in mats)
    cols = sum(m.shape[1] for m in mats)
    out = jnp.zeros((rows, cols), mats[0].dtype)
    r = c = 0
    for m in mats:
        out = out.at[r:r + m.shape[0], c:c + m.shape[1]].set(m)
        r += m.shape[0]
        c += m.shape[1]
    return out


def init_params(key):
    keys = iter(jax.random.split(key, 40))

    def nrm(shape, scale=0.05):
        return jax.random.normal(next(keys), shape, dtype=jnp.float32) * scale

    p = {}
    p["offsets"] = jnp.asarray(np.cumsum([0] + FIELD_DIMS[:-1]), dtype=jnp.int32)
    p["emb_table"] = nrm((sum(FIELD_DIMS), EMBED_DIM), 0.1)
    p["text_embeddings"] = nrm((NUM_TEXTS, TEXT_EMBED_DIM), 0.1)
    p["user_comment_embeddings"] = nrm((COMMENTS_DIMS, TEXT_EMBED_DIM), 0.1)
    p["w_tred"] = nrm((TEXT_EMBED_DIM, EMBED_DIM)); p["b_tred"] = nrm((EMBED_DIM,), 0.01)
    p["w_cred"] = nrm((TEXT_EMBED_DIM, EMBED_DIM)); p["b_cred"] = nrm((EMBED_DIM,), 0.01)
    for n in ("q", "k", "v", "o"):
        p["w" + n] = nrm((EMBED_DIM, EMBED_DIM))
        p["b" + n] = nrm((1, EMBED_DIM), 0.01)
    p["cross_w"] = nrm((NUM_CROSS_LAYERS, EMBED_OUTPUT_DIM))
    p["cross_b"] = nrm((NUM_CROSS_LAYERS, EMBED_OUTPUT_DIM), 0.01)
    # eval-mode BatchNorm1d (running mean 0, var 1, gamma 1, beta 0) folded into MLP
    bn_scale = 1.0 / math.sqrt(1.0 + BN_EPS)
    p["w_m1"] = nrm((EMBED_OUTPUT_DIM, MLP_DIMS[0])) * bn_scale
    p["b_m1"] = nrm((1, MLP_DIMS[0]), 0.01) * bn_scale
    p["w_m2"] = nrm((MLP_DIMS[0], MLP_DIMS[1])) * bn_scale
    p["b_m2"] = nrm((1, MLP_DIMS[1]), 0.01) * bn_scale
    wl = nrm((EMBED_OUTPUT_DIM + MLP_DIMS[1], 1))
    p["w_lin_cross"] = wl[:EMBED_OUTPUT_DIM, :]
    p["w_lin_mlp"] = wl[EMBED_OUTPUT_DIM:, :]
    p["b_lin"] = nrm((1, 1), 0.01)
    for tag in ("a", "b"):
        p[f"w_{tag}1"] = nrm((EMBED_OUTPUT_DIM, 128)); p[f"b_{tag}1"] = nrm((1, 128), 0.01)
        p[f"w_{tag}2"] = nrm((128, 128));              p[f"b_{tag}2"] = nrm((1, 128), 0.01)
        p[f"w_{tag}3"] = nrm((128, 6));                p[f"b_{tag}3"] = nrm((1, 6), 0.01)

    # ---- fused / merged weights for the Pallas kernel (prepared once, outside jit) ----
    p["wqkv_bf16"] = jnp.concatenate([p["wq"], p["wk"], p["wv"]], axis=1).astype(jnp.bfloat16)
    p["bqkv"] = jnp.concatenate([p["bq"], p["bk"], p["bv"]], axis=1)          # (1, 96) f32
    # w_m1 | w_a1 | w_b1 merged along N -> one K=512 matmul
    p["w1_bf16"] = jnp.concatenate([p["w_m1"], p["w_a1"], p["w_b1"]], axis=1).astype(jnp.bfloat16)
    p["b1_cat"] = jnp.concatenate([p["b_m1"], p["b_a1"], p["b_b1"]], axis=1)  # (1, 384)
    # layer-2 block-diagonal merge: (384, 320)
    p["w2_bf16"] = _block_diag(p["w_m2"], p["w_a2"], p["w_b2"]).astype(jnp.bfloat16)
    p["b2_cat"] = jnp.concatenate([p["b_m2"], p["b_a2"], p["b_b2"]], axis=1)  # (1, 320)
    # head layer-3 block-diagonal merge: (256, 12)
    p["w3_bf16"] = _block_diag(p["w_a3"], p["w_b3"]).astype(jnp.bfloat16)
    p["b3_cat"] = jnp.concatenate([p["b_a3"], p["b_b3"]], axis=1)             # (1, 12)
    # ranking linear as row vectors for lane reduction
    p["w_lin_cross_t"] = p["w_lin_cross"].T                                   # (1, 512)
    p["w_lin_mlp_t"] = p["w_lin_mlp"].T                                       # (1, 64)
    return p


# ------------------------------------ main --------------------------------------
if __name__ == "__main__":
    key = jax.random.PRNGKey(0)
    pkey, xkey1, xkey2 = jax.random.split(key, 3)
    params = init_params(pkey)

    x_ind = jax.random.randint(xkey1, (B, NUM_FIELDS), 0, FIELD_SIZE)
    x_com = jax.random.randint(xkey2, (B, 6), 0, COMMENTS_DIMS)
    x = jnp.concatenate([x_ind, x_com], axis=1).astype(jnp.int32)   # (B, F + 6) = (8, 15)

    fwd = jax.jit(forward)
    p_out, pr1, pr2 = fwd(params, x)
    jax.block_until_ready((p_out, pr1, pr2))

    p_ref, pr1_ref, pr2_ref = jax.jit(reference_forward)(params, x)
    assert p_out.shape == (B,) and pr1.shape == (B, 6) and pr2.shape == (B, 6)
    ok = (np.allclose(np.asarray(p_out), np.asarray(p_ref), rtol=5e-2, atol=5e-2)
          and np.allclose(np.asarray(pr1), np.asarray(pr1_ref), rtol=5e-2, atol=5e-2)
          and np.allclose(np.asarray(pr2), np.asarray(pr2_ref), rtol=5e-2, atol=5e-2))
    if not ok:
        raise AssertionError("Pallas kernel output does not match JAX reference")
    print("KERNEL_OK")
</pallas_src>

<mosaic_0001>
module attributes {stable_mosaic.version = 11 : i64} {
  func.func @fused_kernel(%arg0: memref<128x32xf32, #tpu.memory_space<vmem>>, %arg1: memref<32x96xbf16, #tpu.memory_space<vmem>>, %arg2: memref<1x96xf32, #tpu.memory_space<vmem>>, %arg3: memref<32x32xf32, #tpu.memory_space<vmem>>, %arg4: memref<1x32xf32, #tpu.memory_space<vmem>>, %arg5: memref<3x512xf32, #tpu.memory_space<vmem>>, %arg6: memref<3x512xf32, #tpu.memory_space<vmem>>, %arg7: memref<512x384xbf16, #tpu.memory_space<vmem>>, %arg8: memref<1x384xf32, #tpu.memory_space<vmem>>, %arg9: memref<384x320xbf16, #tpu.memory_space<vmem>>, %arg10: memref<1x320xf32, #tpu.memory_space<vmem>>, %arg11: memref<256x12xbf16, #tpu.memory_space<vmem>>, %arg12: memref<1x12xf32, #tpu.memory_space<vmem>>, %arg13: memref<1x512xf32, #tpu.memory_space<vmem>>, %arg14: memref<1x64xf32, #tpu.memory_space<vmem>>, %arg15: memref<1x1xf32, #tpu.memory_space<vmem>>, %arg16: memref<8x1xf32, #tpu.memory_space<vmem>>, %arg17: memref<8x6xf32, #tpu.memory_space<vmem>>, %arg18: memref<8x6xf32, #tpu.memory_space<vmem>>, %arg19: memref<8x512xf32, #tpu.memory_space<vmem>>) attributes {dimension_semantics = [], scalar_prefetch = 0 : i64, scratch_operands = 1 : i64, tpu.core_type = #tpu.core_type<tc>} {
    %c0 = arith.constant 0 : index
    %c0_0 = arith.constant 0 : index
    %0 = vector.load %arg0[%c0, %c0_0] : memref<128x32xf32, #tpu.memory_space<vmem>>, vector<128x32xf32>
    %1 = arith.truncf %0 : vector<128x32xf32> to vector<128x32xbf16>
    %c0_1 = arith.constant 0 : index
    %c0_2 = arith.constant 0 : index
    %2 = vector.load %arg1[%c0_1, %c0_2] : memref<32x96xbf16, #tpu.memory_space<vmem>>, vector<32x96xbf16>
    %cst = arith.constant dense<0.000000e+00> : vector<128x96xf32>
    %3 = tpu.matmul %1, %2, %cst {dimension_numbers = #tpu.dot_dimension_numbers<[1], [0], [0], [1], [0, 0, 1, 1], [], []>} : vector<128x32xbf16>, vector<32x96xbf16>, vector<128x96xf32> -> vector<128x96xf32>
    %c0_3 = arith.constant 0 : index
    %c0_4 = arith.constant 0 : index
    %4 = vector.load %arg2[%c0_3, %c0_4] : memref<1x96xf32, #tpu.memory_space<vmem>>, vector<1x96xf32>
    %5 = vector.broadcast %4 : vector<1x96xf32> to vector<128x96xf32>
    %6 = arith.addf %3, %5 : vector<128x96xf32>
    %7 = vector.extract_strided_slice %6 {offsets = [0, 0], sizes = [128, 32], strides = [1, 1]} : vector<128x96xf32> to vector<128x32xf32>
    %8 = vector.extract_strided_slice %6 {offsets = [0, 32], sizes = [128, 32], strides = [1, 1]} : vector<128x96xf32> to vector<128x32xf32>
    %9 = vector.extract_strided_slice %6 {offsets = [0, 64], sizes = [128, 32], strides = [1, 1]} : vector<128x96xf32> to vector<128x32xf32>
    %10 = tpu.iota {dimensions = array<i32: 0>} : vector<128x128xi32>
    %11 = tpu.iota {dimensions = array<i32: 1>} : vector<128x128xi32>
    %c8_i32 = arith.constant 8 : i32
    %c0_i32 = arith.constant 0 : i32
    %12 = arith.cmpi eq, %c8_i32, %c0_i32 : i32
    %c1_i32 = arith.constant 1 : i32
    %13 = arith.select %12, %c1_i32, %c8_i32 : i32
    %14 = vector.broadcast %13 : i32 to vector<128x128xi32>
    %15 = arith.remsi %10, %14 : vector<128x128xi32>
    %c0_i32_5 = arith.constant 0 : i32
    %16 = vector.broadcast %c0_i32_5 : i32 to vector<128x128xi32>
    %17 = arith.cmpi ne, %15, %16 : vector<128x128xi32>
    %c0_i32_6 = arith.constant 0 : i32
    %18 = vector.broadcast %c0_i32_6 : i32 to vector<128x128xi32>
    %19 = arith.cmpi slt, %15, %18 : vector<128x128xi32>
    %c0_i32_7 = arith.constant 0 : i32
    %20 = arith.cmpi slt, %13, %c0_i32_7 : i32
    %21 = vector.broadcast %20 : i1 to vector<128x128xi1>
    %22 = vector.broadcast %21 : vector<128x128xi1> to vector<128x128xi1>
    %23 = arith.xori %19, %22 : vector<128x128xi1>
    %24 = arith.andi %23, %17 : vector<128x128xi1>
    %25 = vector.broadcast %13 : i32 to vector<128x128xi32>
    %26 = arith.addi %15, %25 : vector<128x128xi32>
    %27 = arith.select %24, %26, %15 : vector<128x128xi1>, vector<128x128xi32>
    %c8_i32_8 = arith.constant 8 : i32
    %c0_i32_9 = arith.constant 0 : i32
    %28 = arith.cmpi eq, %c8_i32_8, %c0_i32_9 : i32
    %c1_i32_10 = arith.constant 1 : i32
    %29 = arith.select %28, %c1_i32_10, %c8_i32_8 : i32
    %30 = vector.broadcast %29 : i32 to vector<128x128xi32>
    %31 = arith.remsi %11, %30 : vector<128x128xi32>
    %c0_i32_11 = arith.constant 0 : i32
    %32 = vector.broadcast %c0_i32_11 : i32 to vector<128x128xi32>
    %33 = arith.cmpi ne, %31, %32 : vector<128x128xi32>
    %c0_i32_12 = arith.constant 0 : i32
    %34 = vector.broadcast %c0_i32_12 : i32 to vector<128x128xi32>
    %35 = arith.cmpi slt, %31, %34 : vector<128x128xi32>
    %c0_i32_13 = arith.constant 0 : i32
    %36 = arith.cmpi slt, %29, %c0_i32_13 : i32
    %37 = vector.broadcast %36 : i1 to vector<128x128xi1>
    %38 = vector.broadcast %37 : vector<128x128xi1> to vector<128x128xi1>
    %39 = arith.xori %35, %38 : vector<128x128xi1>
    %40 = arith.andi %39, %33 : vector<128x128xi1>
    %41 = vector.broadcast %29 : i32 to vector<128x128xi32>
    %42 = arith.addi %31, %41 : vector<128x128xi32>
    %43 = arith.select %40, %42, %31 : vector<128x128xi1>, vector<128x128xi32>
    %44 = arith.cmpi eq, %27, %43 : vector<128x128xi32>
    %c0_14 = arith.constant 0 : index
    %c0_15 = arith.constant 0 : index
    %45 = vector.load %arg3[%c0_14, %c0_15] : memref<32x32xf32, #tpu.memory_space<vmem>>, vector<32x32xf32>
    %46 = vector.extract_strided_slice %7 {offsets = [0, 0], sizes = [128, 8], strides = [1, 1]} : vector<128x32xf32> to vector<128x8xf32>
    %47 = arith.truncf %46 : vector<128x8xf32> to vector<128x8xbf16>
    %48 = vector.extract_strided_slice %8 {offsets = [0, 0], sizes = [128, 8], strides = [1, 1]} : vector<128x32xf32> to vector<128x8xf32>
    %49 = arith.truncf %48 : vector<128x8xf32> to vector<128x8xbf16>
    %50 = vector.extract_strided_slice %9 {offsets = [0, 0], sizes = [128, 8], strides = [1, 1]} : vector<128x32xf32> to vector<128x8xf32>
    %51 = arith.truncf %50 : vector<128x8xf32> to vector<128x8xbf16>
    %cst_16 = arith.constant dense<0.000000e+00> : vector<128x128xf32>
    %52 = tpu.matmul %47, %49, %cst_16 {dimension_numbers = #tpu.dot_dimension_numbers<[1], [1], [0], [0], [0, 0, 1, 0], [], []>} : vector<128x8xbf16>, vector<128x8xbf16>, vector<128x128xf32> -> vector<128x128xf32>
    %cst_17 = arith.constant 0.353553385 : f32
    %53 = vector.broadcast %cst_17 : f32 to vector<128x128xf32>
    %54 = arith.mulf %52, %53 : vector<128x128xf32>
    %cst_18 = arith.constant -1.000000e+30 : f32
    %55 = vector.broadcast %cst_18 : f32 to vector<128x128xf32>
    %56 = arith.select %44, %54, %55 : vector<128x128xi1>, vector<128x128xf32>
    %cst_19 = arith.constant dense<0xFF800000> : vector<128xf32>
    %57 = vector.multi_reduction <maximumf>, %56, %cst_19 [1] : vector<128x128xf32> to vector<128xf32>
    %58 = vector.shape_cast %57 : vector<128xf32> to vector<128x1xf32>
    %59 = vector.broadcast %58 : vector<128x1xf32> to vector<128x128xf32>
    %60 = arith.subf %56, %59 : vector<128x128xf32>
    %61 = math.exp %60 : vector<128x128xf32>
    %cst_20 = arith.constant dense<0.000000e+00> : vector<128xf32>
    %62 = vector.multi_reduction <add>, %61, %cst_20 [1] : vector<128x128xf32> to vector<128xf32>
    %63 = vector.shape_cast %62 : vector<128xf32> to vector<128x1xf32>
    %64 = tpu.reciprocal %63 {approx = true} : vector<128x1xf32> -> vector<128x1xf32>
    %65 = vector.broadcast %64 : vector<128x1xf32> to vector<128x128xf32>
    %66 = arith.mulf %61, %65 : vector<128x128xf32>
    %67 = arith.truncf %66 : vector<128x128xf32> to vector<128x128xbf16>
    %cst_21 = arith.constant dense<0.000000e+00> : vector<128x8xf32>
    %68 = tpu.matmul %67, %51, %cst_21 {dimension_numbers = #tpu.dot_dimension_numbers<[1], [0], [0], [1], [0, 0, 1, 1], [], []>} : vector<128x128xbf16>, vector<128x8xbf16>, vector<128x8xf32> -> vector<128x8xf32>
    %69 = vector.extract_strided_slice %45 {offsets = [0, 0], sizes = [8, 32], strides = [1, 1]} : vector<32x32xf32> to vector<8x32xf32>
    %cst_22 = arith.constant dense<0.000000e+00> : vector<128x32xf32>
    %70 = tpu.matmul %68, %69, %cst_22 {dimension_numbers = #tpu.dot_dimension_numbers<[1], [0], [0], [1], [0, 0, 1, 1], [], []>} : vector<128x8xf32>, vector<8x32xf32>, vector<128x32xf32> -> vector<128x32xf32>
    %71 = vector.extract_strided_slice %7 {offsets = [0, 8], sizes = [128, 8], strides = [1, 1]} : vector<128x32xf32> to vector<128x8xf32>
    %72 = arith.truncf %71 : vector<128x8xf32> to vector<128x8xbf16>
    %73 = vector.extract_strided_slice %8 {offsets = [0, 8], sizes = [128, 8], strides = [1, 1]} : vector<128x32xf32> to vector<128x8xf32>
    %74 = arith.truncf %73 : vector<128x8xf32> to vector<128x8xbf16>
    %75 = vector.extract_strided_slice %9 {offsets = [0, 8], sizes = [128, 8], strides = [1, 1]} : vector<128x32xf32> to vector<128x8xf32>
    %76 = arith.truncf %75 : vector<128x8xf32> to vector<128x8xbf16>
    %cst_23 = arith.constant dense<0.000000e+00> : vector<128x128xf32>
    %77 = tpu.matmul %72, %74, %cst_23 {dimension_numbers = #tpu.dot_dimension_numbers<[1], [1], [0], [0], [0, 0, 1, 0], [], []>} : vector<128x8xbf16>, vector<128x8xbf16>, vector<128x128xf32> -> vector<128x128xf32>
    %cst_24 = arith.constant 0.353553385 : f32
    %78 = vector.broadcast %cst_24 : f32 to vector<128x128xf32>
    %79 = arith.mulf %77, %78 : vector<128x128xf32>
    %cst_25 = arith.constant -1.000000e+30 : f32
    %80 = vector.broadcast %cst_25 : f32 to vector<128x128xf32>
    %81 = arith.select %44, %79, %80 : vector<128x128xi1>, vector<128x128xf32>
    %cst_26 = arith.constant dense<0xFF800000> : vector<128xf32>
    %82 = vector.multi_reduction <maximumf>, %81, %cst_26 [1] : vector<128x128xf32> to vector<128xf32>
    %83 = vector.shape_cast %82 : vector<128xf32> to vector<128x1xf32>
    %84 = vector.broadcast %83 : vector<128x1xf32> to vector<128x128xf32>
    %85 = arith.subf %81, %84 : vector<128x128xf32>
    %86 = math.exp %85 : vector<128x128xf32>
    %cst_27 = arith.constant dense<0.000000e+00> : vector<128xf32>
    %87 = vector.multi_reduction <add>, %86, %cst_27 [1] : vector<128x128xf32> to vector<128xf32>
    %88 = vector.shape_cast %87 : vector<128xf32> to vector<128x1xf32>
    %89 = tpu.reciprocal %88 {approx = true} : vector<128x1xf32> -> vector<128x1xf32>
    %90 = vector.broadcast %89 : vector<128x1xf32> to vector<128x128xf32>
    %91 = arith.mulf %86, %90 : vector<128x128xf32>
    %92 = arith.truncf %91 : vector<128x128xf32> to vector<128x128xbf16>
    %cst_28 = arith.constant dense<0.000000e+00> : vector<128x8xf32>
    %93 = tpu.matmul %92, %76, %cst_28 {dimension_numbers = #tpu.dot_dimension_numbers<[1], [0], [0], [1], [0, 0, 1, 1], [], []>} : vector<128x128xbf16>, vector<128x8xbf16>, vector<128x8xf32> -> vector<128x8xf32>
    %94 = vector.extract_strided_slice %45 {offsets = [8, 0], sizes = [8, 32], strides = [1, 1]} : vector<32x32xf32> to vector<8x32xf32>
    %cst_29 = arith.constant dense<0.000000e+00> : vector<128x32xf32>
    %95 = tpu.matmul %93, %94, %cst_29 {dimension_numbers = #tpu.dot_dimension_numbers<[1], [0], [0], [1], [0, 0, 1, 1], [], []>} : vector<128x8xf32>, vector<8x32xf32>, vector<128x32xf32> -> vector<128x32xf32>
    %96 = arith.addf %70, %95 : vector<128x32xf32>
    %97 = vector.extract_strided_slice %7 {offsets = [0, 16], sizes = [128, 8], strides = [1, 1]} : vector<128x32xf32> to vector<128x8xf32>
    %98 = arith.truncf %97 : vector<128x8xf32> to vector<128x8xbf16>
    %99 = vector.extract_strided_slice %8 {offsets = [0, 16], sizes = [128, 8], strides = [1, 1]} : vector<128x32xf32> to vector<128x8xf32>
    %100 = arith.truncf %99 : vector<128x8xf32> to vector<128x8xbf16>
    %101 = vector.extract_strided_slice %9 {offsets = [0, 16], sizes = [128, 8], strides = [1, 1]} : vector<128x32xf32> to vector<128x8xf32>
    %102 = arith.truncf %101 : vector<128x8xf32> to vector<128x8xbf16>
    %cst_30 = arith.constant dense<0.000000e+00> : vector<128x128xf32>
    %103 = tpu.matmul %98, %100, %cst_30 {dimension_numbers = #tpu.dot_dimension_numbers<[1], [1], [0], [0], [0, 0, 1, 0], [], []>} : vector<128x8xbf16>, vector<128x8xbf16>, vector<128x128xf32> -> vector<128x128xf32>
    %cst_31 = arith.constant 0.353553385 : f32
    %104 = vector.broadcast %cst_31 : f32 to vector<128x128xf32>
    %105 = arith.mulf %103, %104 : vector<128x128xf32>
    %cst_32 = arith.constant -1.000000e+30 : f32
    %106 = vector.broadcast %cst_32 : f32 to vector<128x128xf32>
    %107 = arith.select %44, %105, %106 : vector<128x128xi1>, vector<128x128xf32>
    %cst_33 = arith.constant dense<0xFF800000> : vector<128xf32>
    %108 = vector.multi_reduction <maximumf>, %107, %cst_33 [1] : vector<128x128xf32> to vector<128xf32>
    %109 = vector.shape_cast %108 : vector<128xf32> to vector<128x1xf32>
    %110 = vector.broadcast %109 : vector<128x1xf32> to vector<128x128xf32>
    %111 = arith.subf %107, %110 : vector<128x128xf32>
    %112 = math.exp %111 : vector<128x128xf32>
    %cst_34 = arith.constant dense<0.000000e+00> : vector<128xf32>
    %113 = vector.multi_reduction <add>, %112, %cst_34 [1] : vector<128x128xf32> to vector<128xf32>
    %114 = vector.shape_cast %113 : vector<128xf32> to vector<128x1xf32>
    %115 = tpu.reciprocal %114 {approx = true} : vector<128x1xf32> -> vector<128x1xf32>
    %116 = vector.broadcast %115 : vector<128x1xf32> to vector<128x128xf32>
    %117 = arith.mulf %112, %116 : vector<128x128xf32>
    %118 = arith.truncf %117 : vector<128x128xf32> to vector<128x128xbf16>
    %cst_35 = arith.constant dense<0.000000e+00> : vector<128x8xf32>
    %119 = tpu.matmul %118, %102, %cst_35 {dimension_numbers = #tpu.dot_dimension_numbers<[1], [0], [0], [1], [0, 0, 1, 1], [], []>} : vector<128x128xbf16>, vector<128x8xbf16>, vector<128x8xf32> -> vector<128x8xf32>
    %120 = vector.extract_strided_slice %45 {offsets = [16, 0], sizes = [8, 32], strides = [1, 1]} : vector<32x32xf32> to vector<8x32xf32>
    %cst_36 = arith.constant dense<0.000000e+00> : vector<128x32xf32>
    %121 = tpu.matmul %119, %120, %cst_36 {dimension_numbers = #tpu.dot_dimension_numbers<[1], [0], [0], [1], [0, 0, 1, 1], [], []>} : vector<128x8xf32>, vector<8x32xf32>, vector<128x32xf32> -> vector<128x32xf32>
    %122 = arith.addf %96, %121 : vector<128x32xf32>
    %123 = vector.extract_strided_slice %7 {offsets = [0, 24], sizes = [128, 8], strides = [1, 1]} : vector<128x32xf32> to vector<128x8xf32>
    %124 = arith.truncf %123 : vector<128x8xf32> to vector<128x8xbf16>
    %125 = vector.extract_strided_slice %8 {offsets = [0, 24], sizes = [128, 8], strides = [1, 1]} : vector<128x32xf32> to vector<128x8xf32>
    %126 = arith.truncf %125 : vector<128x8xf32> to vector<128x8xbf16>
    %127 = vector.extract_strided_slice %9 {offsets = [0, 24], sizes = [128, 8], strides = [1, 1]} : vector<128x32xf32> to vector<128x8xf32>
    %128 = arith.truncf %127 : vector<128x8xf32> to vector<128x8xbf16>
    %cst_37 = arith.constant dense<0.000000e+00> : vector<128x128xf32>
    %129 = tpu.matmul %124, %126, %cst_37 {dimension_numbers = #tpu.dot_dimension_numbers<[1], [1], [0], [0], [0, 0, 1, 0], [], []>} : vector<128x8xbf16>, vector<128x8xbf16>, vector<128x128xf32> -> vector<128x128xf32>
    %cst_38 = arith.constant 0.353553385 : f32
    %130 = vector.broadcast %cst_38 : f32 to vector<128x128xf32>
    %131 = arith.mulf %129, %130 : vector<128x128xf32>
    %cst_39 = arith.constant -1.000000e+30 : f32
    %132 = vector.broadcast %cst_39 : f32 to vector<128x128xf32>
    %133 = arith.select %44, %131, %132 : vector<128x128xi1>, vector<128x128xf32>
    %cst_40 = arith.constant dense<0xFF800000> : vector<128xf32>
    %134 = vector.multi_reduction <maximumf>, %133, %cst_40 [1] : vector<128x128xf32> to vector<128xf32>
    %135 = vector.shape_cast %134 : vector<128xf32> to vector<128x1xf32>
    %136 = vector.broadcast %135 : vector<128x1xf32> to vector<128x128xf32>
    %137 = arith.subf %133, %136 : vector<128x128xf32>
    %138 = math.exp %137 : vector<128x128xf32>
    %cst_41 = arith.constant dense<0.000000e+00> : vector<128xf32>
    %139 = vector.multi_reduction <add>, %138, %cst_41 [1] : vector<128x128xf32> to vector<128xf32>
    %140 = vector.shape_cast %139 : vector<128xf32> to vector<128x1xf32>
    %141 = tpu.reciprocal %140 {approx = true} : vector<128x1xf32> -> vector<128x1xf32>
    %142 = vector.broadcast %141 : vector<128x1xf32> to vector<128x128xf32>
    %143 = arith.mulf %138, %142 : vector<128x128xf32>
    %144 = arith.truncf %143 : vector<128x128xf32> to vector<128x128xbf16>
    %cst_42 = arith.constant dense<0.000000e+00> : vector<128x8xf32>
    %145 = tpu.matmul %144, %128, %cst_42 {dimension_numbers = #tpu.dot_dimension_numbers<[1], [0], [0], [1], [0, 0, 1, 1], [], []>} : vector<128x128xbf16>, vector<128x8xbf16>, vector<128x8xf32> -> vector<128x8xf32>
    %146 = vector.extract_strided_slice %45 {offsets = [24, 0], sizes = [8, 32], strides = [1, 1]} : vector<32x32xf32> to vector<8x32xf32>
    %cst_43 = arith.constant dense<0.000000e+00> : vector<128x32xf32>
    %147 = tpu.matmul %145, %146, %cst_43 {dimension_numbers = #tpu.dot_dimension_numbers<[1], [0], [0], [1], [0, 0, 1, 1], [], []>} : vector<128x8xf32>, vector<8x32xf32>, vector<128x32xf32> -> vector<128x32xf32>
    %148 = arith.addf %122, %147 : vector<128x32xf32>
    %c0_44 = arith.constant 0 : index
    %c0_45 = arith.constant 0 : index
    %149 = vector.load %arg4[%c0_44, %c0_45] : memref<1x32xf32, #tpu.memory_space<vmem>>, vector<1x32xf32>
    %150 = vector.broadcast %149 : vector<1x32xf32> to vector<128x32xf32>
    %151 = arith.addf %148, %150 : vector<128x32xf32>
    %152 = vector.extract_strided_slice %151 {offsets = [0, 0], sizes = [8, 32], strides = [1, 1]} : vector<128x32xf32> to vector<8x32xf32>
    %c0_46 = arith.constant 0 : index
    %c0_47 = arith.constant 0 : index
    %153 = vector.load %arg19[%c0_46, %c0_47] : memref<8x512xf32, #tpu.memory_space<vmem>>, vector<8x32xf32>
    tpu.vector_store %arg19[%c0_46, %c0_47], %152 {strides = array<i32>} : memref<8x512xf32, #tpu.memory_space<vmem>>, vector<8x32xf32>,
    %154 = vector.extract_strided_slice %151 {offsets = [8, 0], sizes = [8, 32], strides = [1, 1]} : vector<128x32xf32> to vector<8x32xf32>
    %c0_48 = arith.constant 0 : index
    %c32 = arith.constant 32 : index
    %155 = vector.load %arg19[%c0_48, %c32] : memref<8x512xf32, #tpu.memory_space<vmem>>, vector<8x32xf32>
    tpu.vector_store %arg19[%c0_48, %c32], %154 {strides = array<i32>} : memref<8x512xf32, #tpu.memory_space<vmem>>, vector<8x32xf32>,
    %156 = vector.extract_strided_slice %151 {offsets = [16, 0], sizes = [8, 32], strides = [1, 1]} : vector<128x32xf32> to vector<8x32xf32>
    %c0_49 = arith.constant 0 : index
    %c64 = arith.constant 64 : index
    %157 = vector.load %arg19[%c0_49, %c64] : memref<8x512xf32, #tpu.memory_space<vmem>>, vector<8x32xf32>
    tpu.vector_store %arg19[%c0_49, %c64], %156 {strides = array<i32>} : memref<8x512xf32, #tpu.memory_space<vmem>>, vector<8x32xf32>,
    %158 = vector.extract_strided_slice %151 {offsets = [24, 0], sizes = [8, 32], strides = [1, 1]} : vector<128x32xf32> to vector<8x32xf32>
    %c0_50 = arith.constant 0 : index
    %c96 = arith.constant 96 : index
    %159 = vector.load %arg19[%c0_50, %c96] : memref<8x512xf32, #tpu.memory_space<vmem>>, vector<8x32xf32>
    tpu.vector_store %arg19[%c0_50, %c96], %158 {strides = array<i32>} : memref<8x512xf32, #tpu.memory_space<vmem>>, vector<8x32xf32>,
    %160 = vector.extract_strided_slice %151 {offsets = [32, 0], sizes = [8, 32], strides = [1, 1]} : vector<128x32xf32> to vector<8x32xf32>
    %c0_51 = arith.constant 0 : index
    %c128 = arith.constant 128 : index
    %161 = vector.load %arg19[%c0_51, %c128] : memref<8x512xf32, #tpu.memory_space<vmem>>, vector<8x32xf32>
    tpu.vector_store %arg19[%c0_51, %c128], %160 {strides = array<i32>} : memref<8x512xf32, #tpu.memory_space<vmem>>, vector<8x32xf32>,
    %162 = vector.extract_strided_slice %151 {offsets = [40, 0], sizes = [8, 32], strides = [1, 1]} : vector<128x32xf32> to vector<8x32xf32>
    %c0_52 = arith.constant 0 : index
    %c160 = arith.constant 160 : index
    %163 = vector.load %arg19[%c0_52, %c160] : memref<8x512xf32, #tpu.memory_space<vmem>>, vector<8x32xf32>
    tpu.vector_store %arg19[%c0_52, %c160], %162 {strides = array<i32>} : memref<8x512xf32, #tpu.memory_space<vmem>>, vector<8x32xf32>,
    %164 = vector.extract_strided_slice %151 {offsets = [48, 0], sizes = [8, 32], strides = [1, 1]} : vector<128x32xf32> to vector<8x32xf32>
    %c0_53 = arith.constant 0 : index
    %c192 = arith.constant 192 : index
    %165 = vector.load %arg19[%c0_53, %c192] : memref<8x512xf32, #tpu.memory_space<vmem>>, vector<8x32xf32>
    tpu.vector_store %arg19[%c0_53, %c192], %164 {strides = array<i32>} : memref<8x512xf32, #tpu.memory_space<vmem>>, vector<8x32xf32>,
    %166 = vector.extract_strided_slice %151 {offsets = [56, 0], sizes = [8, 32], strides = [1, 1]} : vector<128x32xf32> to vector<8x32xf32>
    %c0_54 = arith.constant 0 : index
    %c224 = arith.constant 224 : index
    %167 = vector.load %arg19[%c0_54, %c224] : memref<8x512xf32, #tpu.memory_space<vmem>>, vector<8x32xf32>
    tpu.vector_store %arg19[%c0_54, %c224], %166 {strides = array<i32>} : memref<8x512xf32, #tpu.memory_space<vmem>>, vector<8x32xf32>,
    %168 = vector.extract_strided_slice %151 {offsets = [64, 0], sizes = [8, 32], strides = [1, 1]} : vector<128x32xf32> to vector<8x32xf32>
    %c0_55 = arith.constant 0 : index
    %c256 = arith.constant 256 : index
    %169 = vector.load %arg19[%c0_55, %c256] : memref<8x512xf32, #tpu.memory_space<vmem>>, vector<8x32xf32>
    tpu.vector_store %arg19[%c0_55, %c256], %168 {strides = array<i32>} : memref<8x512xf32, #tpu.memory_space<vmem>>, vector<8x32xf32>,
    %170 = vector.extract_strided_slice %151 {offsets = [72, 0], sizes = [8, 32], strides = [1, 1]} : vector<128x32xf32> to vector<8x32xf32>
    %c0_56 = arith.constant 0 : index
    %c288 = arith.constant 288 : index
    %171 = vector.load %arg19[%c0_56, %c288] : memref<8x512xf32, #tpu.memory_space<vmem>>, vector<8x32xf32>
    tpu.vector_store %arg19[%c0_56, %c288], %170 {strides = array<i32>} : memref<8x512xf32, #tpu.memory_space<vmem>>, vector<8x32xf32>,
    %172 = vector.extract_strided_slice %151 {offsets = [80, 0], sizes = [8, 32], strides = [1, 1]} : vector<128x32xf32> to vector<8x32xf32>
    %c0_57 = arith.constant 0 : index
    %c320 = arith.constant 320 : index
    %173 = vector.load %arg19[%c0_57, %c320] : memref<8x512xf32, #tpu.memory_space<vmem>>, vector<8x32xf32>
    tpu.vector_store %arg19[%c0_57, %c320], %172 {strides = array<i32>} : memref<8x512xf32, #tpu.memory_space<vmem>>, vector<8x32xf32>,
    %174 = vector.extract_strided_slice %151 {offsets = [88, 0], sizes = [8, 32], strides = [1, 1]} : vector<128x32xf32> to vector<8x32xf32>
    %c0_58 = arith.constant 0 : index
    %c352 = arith.constant 352 : index
    %175 = vector.load %arg19[%c0_58, %c352] : memref<8x512xf32, #tpu.memory_space<vmem>>, vector<8x32xf32>
    tpu.vector_store %arg19[%c0_58, %c352], %174 {strides = array<i32>} : memref<8x512xf32, #tpu.memory_space<vmem>>, vector<8x32xf32>,
    %176 = vector.extract_strided_slice %151 {offsets = [96, 0], sizes = [8, 32], strides = [1, 1]} : vector<128x32xf32> to vector<8x32xf32>
    %c0_59 = arith.constant 0 : index
    %c384 = arith.constant 384 : index
    %177 = vector.load %arg19[%c0_59, %c384] : memref<8x512xf32, #tpu.memory_space<vmem>>, vector<8x32xf32>
    tpu.vector_store %arg19[%c0_59, %c384], %176 {strides = array<i32>} : memref<8x512xf32, #tpu.memory_space<vmem>>, vector<8x32xf32>,
    %178 = vector.extract_strided_slice %151 {offsets = [104, 0], sizes = [8, 32], strides = [1, 1]} : vector<128x32xf32> to vector<8x32xf32>
    %c0_60 = arith.constant 0 : index
    %c416 = arith.constant 416 : index
    %179 = vector.load %arg19[%c0_60, %c416] : memref<8x512xf32, #tpu.memory_space<vmem>>, vector<8x32xf32>
    tpu.vector_store %arg19[%c0_60, %c416], %178 {strides = array<i32>} : memref<8x512xf32, #tpu.memory_space<vmem>>, vector<8x32xf32>,
    %180 = vector.extract_strided_slice %151 {offsets = [112, 0], sizes = [8, 32], strides = [1, 1]} : vector<128x32xf32> to vector<8x32xf32>
    %c0_61 = arith.constant 0 : index
    %c448 = arith.constant 448 : index
    %181 = vector.load %arg19[%c0_61, %c448] : memref<8x512xf32, #tpu.memory_space<vmem>>, vector<8x32xf32>
    tpu.vector_store %arg19[%c0_61, %c448], %180 {strides = array<i32>} : memref<8x512xf32, #tpu.memory_space<vmem>>, vector<8x32xf32>,
    %182 = vector.extract_strided_slice %151 {offsets = [120, 0], sizes = [8, 32], strides = [1, 1]} : vector<128x32xf32> to vector<8x32xf32>
    %c0_62 = arith.constant 0 : index
    %c480 = arith.constant 480 : index
    %183 = vector.load %arg19[%c0_62, %c480] : memref<8x512xf32, #tpu.memory_space<vmem>>, vector<8x32xf32>
    tpu.vector_store %arg19[%c0_62, %c480], %182 {strides = array<i32>} : memref<8x512xf32, #tpu.memory_space<vmem>>, vector<8x32xf32>,
    %c0_63 = arith.constant 0 : index
    %c0_64 = arith.constant 0 : index
    %184 = vector.load %arg19[%c0_63, %c0_64] : memref<8x512xf32, #tpu.memory_space<vmem>>, vector<8x512xf32>
    %c0_65 = arith.constant 0 : index
    %c0_66 = arith.constant 0 : index
    %185 = vector.load %arg5[%c0_65, %c0_66] : memref<3x512xf32, #tpu.memory_space<vmem>>, vector<3x512xf32>
    %c0_67 = arith.constant 0 : index
    %c0_68 = arith.constant 0 : index
    %186 = vector.load %arg6[%c0_67, %c0_68] : memref<3x512xf32, #tpu.memory_space<vmem>>, vector<3x512xf32>
    %187 = vector.extract_strided_slice %185 {offsets = [0, 0], sizes = [1, 512], strides = [1, 1]} : vector<3x512xf32> to vector<1x512xf32>
    %188 = vector.broadcast %187 : vector<1x512xf32> to vector<8x512xf32>
    %189 = arith.mulf %184, %188 : vector<8x512xf32>
    %cst_69 = arith.constant dense<0.000000e+00> : vector<8xf32>
    %190 = vector.multi_reduction <add>, %189, %cst_69 [1] : vector<8x512xf32> to vector<8xf32>
    %191 = vector.shape_cast %190 : vector<8xf32> to vector<8x1xf32>
    %192 = vector.broadcast %191 : vector<8x1xf32> to vector<8x512xf32>
    %193 = arith.mulf %184, %192 : vector<8x512xf32>
    %194 = vector.extract_strided_slice %186 {offsets = [0, 0], sizes = [1, 512], strides = [1, 1]} : vector<3x512xf32> to vector<1x512xf32>
    %195 = vector.broadcast %194 : vector<1x512xf32> to vector<8x512xf32>
    %196 = arith.addf %193, %195 : vector<8x512xf32>
    %197 = arith.addf %196, %184 : vector<8x512xf32>
    %198 = vector.extract_strided_slice %185 {offsets = [1, 0], sizes = [1, 512], strides = [1, 1]} : vector<3x512xf32> to vector<1x512xf32>
    %199 = vector.broadcast %198 : vector<1x512xf32> to vector<8x512xf32>
    %200 = arith.mulf %197, %199 : vector<8x512xf32>
    %cst_70 = arith.constant dense<0.000000e+00> : vector<8xf32>
    %201 = vector.multi_reduction <add>, %200, %cst_70 [1] : vector<8x512xf32> to vector<8xf32>
    %202 = vector.shape_cast %201 : vector<8xf32> to vector<8x1xf32>
    %203 = vector.broadcast %202 : vector<8x1xf32> to vector<8x512xf32>
    %204 = arith.mulf %184, %203 : vector<8x512xf32>
    %205 = vector.extract_strided_slice %186 {offsets = [1, 0], sizes = [1, 512], strides = [1, 1]} : vector<3x512xf32> to vector<1x512xf32>
    %206 = vector.broadcast %205 : vector<1x512xf32> to vector<8x512xf32>
    %207 = arith.addf %204, %206 : vector<8x512xf32>
    %208 = arith.addf %207, %197 : vector<8x512xf32>
    %209 = vector.extract_strided_slice %185 {offsets = [2, 0], sizes = [1, 512], strides = [1, 1]} : vector<3x512xf32> to vector<1x512xf32>
    %210 = vector.broadcast %209 : vector<1x512xf32> to vector<8x512xf32>
    %211 = arith.mulf %208, %210 : vector<8x512xf32>
    %cst_71 = arith.constant dense<0.000000e+00> : vector<8xf32>
    %212 = vector.multi_reduction <add>, %211, %cst_71 [1] : vector<8x512xf32> to vector<8xf32>
    %213 = vector.shape_cast %212 : vector<8xf32> to vector<8x1xf32>
    %214 = vector.broadcast %213 : vector<8x1xf32> to vector<8x512xf32>
    %215 = arith.mulf %184, %214 : vector<8x512xf32>
    %216 = vector.extract_strided_slice %186 {offsets = [2, 0], sizes = [1, 512], strides = [1, 1]} : vector<3x512xf32> to vector<1x512xf32>
    %217 = vector.broadcast %216 : vector<1x512xf32> to vector<8x512xf32>
    %218 = arith.addf %215, %217 : vector<8x512xf32>
    %219 = arith.addf %218, %208 : vector<8x512xf32>
    %220 = arith.truncf %184 : vector<8x512xf32> to vector<8x512xbf16>
    %c0_72 = arith.constant 0 : index
    %c0_73 = arith.constant 0 : index
    %221 = vector.load %arg7[%c0_72, %c0_73] : memref<512x384xbf16, #tpu.memory_space<vmem>>, vector<512x384xbf16>
    %cst_74 = arith.constant dense<0.000000e+00> : vector<8x384xf32>
    %222 = tpu.matmul %220, %221, %cst_74 {dimension_numbers = #tpu.dot_dimension_numbers<[1], [0], [0], [1], [0, 0, 1, 1], [], []>} : vector<8x512xbf16>, vector<512x384xbf16>, vector<8x384xf32> -> vector<8x384xf32>
    %c0_75 = arith.constant 0 : index
    %c0_76 = arith.constant 0 : index
    %223 = vector.load %arg8[%c0_75, %c0_76] : memref<1x384xf32, #tpu.memory_space<vmem>>, vector<1x384xf32>
    %224 = vector.broadcast %223 : vector<1x384xf32> to vector<8x384xf32>
    %225 = arith.addf %222, %224 : vector<8x384xf32>
    %cst_77 = arith.constant 0.000000e+00 : f32
    %226 = vector.broadcast %cst_77 : f32 to vector<8x384xf32>
    %227 = arith.maximumf %225, %226 : vector<8x384xf32>
    %228 = arith.truncf %227 : vector<8x384xf32> to vector<8x384xbf16>
    %c0_78 = arith.constant 0 : index
    %c0_79 = arith.constant 0 : index
    %229 = vector.load %arg9[%c0_78, %c0_79] : memref<384x320xbf16, #tpu.memory_space<vmem>>, vector<384x320xbf16>
    %cst_80 = arith.constant dense<0.000000e+00> : vector<8x320xf32>
    %230 = tpu.matmul %228, %229, %cst_80 {dimension_numbers = #tpu.dot_dimension_numbers<[1], [0], [0], [1], [0, 0, 1, 1], [], []>} : vector<8x384xbf16>, vector<384x320xbf16>, vector<8x320xf32> -> vector<8x320xf32>
    %c0_81 = arith.constant 0 : index
    %c0_82 = arith.constant 0 : index
    %231 = vector.load %arg10[%c0_81, %c0_82] : memref<1x320xf32, #tpu.memory_space<vmem>>, vector<1x320xf32>
    %232 = vector.broadcast %231 : vector<1x320xf32> to vector<8x320xf32>
    %233 = arith.addf %230, %232 : vector<8x320xf32>
    %cst_83 = arith.constant 0.000000e+00 : f32
    %234 = vector.broadcast %cst_83 : f32 to vector<8x320xf32>
    %235 = arith.maximumf %233, %234 : vector<8x320xf32>
    %236 = vector.extract_strided_slice %235 {offsets = [0, 0], sizes = [8, 64], strides = [1, 1]} : vector<8x320xf32> to vector<8x64xf32>
    %237 = vector.extract_strided_slice %235 {offsets = [0, 64], sizes = [8, 256], strides = [1, 1]} : vector<8x320xf32> to vector<8x256xf32>
    %238 = arith.truncf %237 : vector<8x256xf32> to vector<8x256xbf16>
    %c0_84 = arith.constant 0 : index
    %c0_85 = arith.constant 0 : index
    %239 = vector.load %arg11[%c0_84, %c0_85] : memref<256x12xbf16, #tpu.memory_space<vmem>>, vector<256x12xbf16>
    %cst_86 = arith.constant dense<0.000000e+00> : vector<8x12xf32>
    %240 = tpu.matmul %238, %239, %cst_86 {dimension_numbers = #tpu.dot_dimension_numbers<[1], [0], [0], [1], [0, 0, 1, 1], [], []>} : vector<8x256xbf16>, vector<256x12xbf16>, vector<8x12xf32> -> vector<8x12xf32>
    %c0_87 = arith.constant 0 : index
    %c0_88 = arith.constant 0 : index
    %241 = vector.load %arg12[%c0_87, %c0_88] : memref<1x12xf32, #tpu.memory_space<vmem>>, vector<1x12xf32>
    %242 = vector.broadcast %241 : vector<1x12xf32> to vector<8x12xf32>
    %243 = arith.addf %240, %242 : vector<8x12xf32>
    %244 = vector.extract_strided_slice %243 {offsets = [0, 0], sizes = [8, 6], strides = [1, 1]} : vector<8x12xf32> to vector<8x6xf32>
    %cst_89 = arith.constant dense<0xFF800000> : vector<8xf32>
    %245 = vector.multi_reduction <maximumf>, %244, %cst_89 [1] : vector<8x6xf32> to vector<8xf32>
    %246 = vector.shape_cast %245 : vector<8xf32> to vector<8x1xf32>
    %247 = vector.broadcast %246 : vector<8x1xf32> to vector<8x6xf32>
    %248 = arith.subf %244, %247 : vector<8x6xf32>
    %249 = math.exp %248 : vector<8x6xf32>
    %cst_90 = arith.constant dense<0.000000e+00> : vector<8xf32>
    %250 = vector.multi_reduction <add>, %249, %cst_90 [1] : vector<8x6xf32> to vector<8xf32>
    %251 = vector.shape_cast %250 : vector<8xf32> to vector<8x1xf32>
    %252 = tpu.reciprocal %251 {approx = true} : vector<8x1xf32> -> vector<8x1xf32>
    %253 = vector.broadcast %252 : vector<8x1xf32> to vector<8x6xf32>
    %254 = arith.mulf %249, %253 : vector<8x6xf32>
    %c0_91 = arith.constant 0 : index
    %c0_92 = arith.constant 0 : index
    %255 = vector.load %arg17[%c0_91, %c0_92] : memref<8x6xf32, #tpu.memory_space<vmem>>, vector<8x6xf32>
    tpu.vector_store %arg17[%c0_91, %c0_92], %254 {strides = array<i32>} : memref<8x6xf32, #tpu.memory_space<vmem>>, vector<8x6xf32>,
    %256 = vector.extract_strided_slice %243 {offsets = [0, 6], sizes = [8, 6], strides = [1, 1]} : vector<8x12xf32> to vector<8x6xf32>
    %cst_93 = arith.constant dense<0xFF800000> : vector<8xf32>
    %257 = vector.multi_reduction <maximumf>, %256, %cst_93 [1] : vector<8x6xf32> to vector<8xf32>
    %258 = vector.shape_cast %257 : vector<8xf32> to vector<8x1xf32>
    %259 = vector.broadcast %258 : vector<8x1xf32> to vector<8x6xf32>
    %260 = arith.subf %256, %259 : vector<8x6xf32>
    %261 = math.exp %260 : vector<8x6xf32>
    %cst_94 = arith.constant dense<0.000000e+00> : vector<8xf32>
    %262 = vector.multi_reduction <add>, %261, %cst_94 [1] : vector<8x6xf32> to vector<8xf32>
    %263 = vector.shape_cast %262 : vector<8xf32> to vector<8x1xf32>
    %264 = tpu.reciprocal %263 {approx = true} : vector<8x1xf32> -> vector<8x1xf32>
    %265 = vector.broadcast %264 : vector<8x1xf32> to vector<8x6xf32>
    %266 = arith.mulf %261, %265 : vector<8x6xf32>
    %c0_95 = arith.constant 0 : index
    %c0_96 = arith.constant 0 : index
    %267 = vector.load %arg18[%c0_95, %c0_96] : memref<8x6xf32, #tpu.memory_space<vmem>>, vector<8x6xf32>
    tpu.vector_store %arg18[%c0_95, %c0_96], %266 {strides = array<i32>} : memref<8x6xf32, #tpu.memory_space<vmem>>, vector<8x6xf32>,
    %c0_97 = arith.constant 0 : index
    %c0_98 = arith.constant 0 : index
    %268 = vector.load %arg13[%c0_97, %c0_98] : memref<1x512xf32, #tpu.memory_space<vmem>>, vector<1x512xf32>
    %269 = vector.broadcast %268 : vector<1x512xf32> to vector<8x512xf32>
    %270 = arith.mulf %219, %269 : vector<8x512xf32>
    %cst_99 = arith.constant dense<0.000000e+00> : vector<8xf32>
    %271 = vector.multi_reduction <add>, %270, %cst_99 [1] : vector<8x512xf32> to vector<8xf32>
    %272 = vector.shape_cast %271 : vector<8xf32> to vector<8x1xf32>
    %c0_100 = arith.constant 0 : index
    %c0_101 = arith.constant 0 : index
    %273 = vector.load %arg14[%c0_100, %c0_101] : memref<1x64xf32, #tpu.memory_space<vmem>>, vector<1x64xf32>
    %274 = vector.broadcast %273 : vector<1x64xf32> to vector<8x64xf32>
    %275 = arith.mulf %236, %274 : vector<8x64xf32>
    %cst_102 = arith.constant dense<0.000000e+00> : vector<8xf32>
    %276 = vector.multi_reduction <add>, %275, %cst_102 [1] : vector<8x64xf32> to vector<8xf32>
    %277 = vector.shape_cast %276 : vector<8xf32> to vector<8x1xf32>
    %278 = arith.addf %272, %277 : vector<8x1xf32>
    %c0_103 = arith.constant 0 : index
    %c0_104 = arith.constant 0 : index
    %279 = vector.load %arg15[%c0_103, %c0_104] : memref<1x1xf32, #tpu.memory_space<vmem>>, vector<1x1xf32>
    %280 = vector.broadcast %279 : vector<1x1xf32> to vector<8x1xf32>
    %281 = arith.addf %278, %280 : vector<8x1xf32>
    %c0_105 = arith.constant 0 : index
    %c0_106 = arith.constant 0 : index
    %282 = vector.load %arg16[%c0_105, %c0_106] : memref<8x1xf32, #tpu.memory_space<vmem>>, vector<8x1xf32>
    tpu.vector_store %arg16[%c0_105, %c0_106], %281 {strides = array<i32>} : memref<8x1xf32, #tpu.memory_space<vmem>>, vector<8x1xf32>,
    return
  }
}

</mosaic_0001>

<llo_original>
// kernel: forward.1
$region0: #{forward.1}
  #allocation0 [shape = 'u32[]', space=smem, size = 0x4, offset = 0x4, fixed_abs, tag = 'smem constant byte address 0x4 - core index']
  #allocation1 [shape = 'u32[72,128]{1,0:T(1,128)}', space=vmem, size = 0x9000, scoped, tag = 'internal scratch']
  #allocation2 [shape = 'f32[8,512]{1,0:T(8,128)}', space=vmem, size = 0x4000, scoped, tag = 'scratch operand']
  #allocation3 [shape = 'f32[1,1]{1,0:T(1,128)S(1)}', space=vmem, size = 0x200, scoped, tag = 'scoped memory for forward.1']
  %s0 = inlined_call_operand.vmem [shape: f32[128,32], index: 0, kind: input, shape index: {}]
  %s1 = inlined_call_operand.vmem [shape: bf16[32,96], index: 1, kind: input, shape index: {}]
  %s2 = inlined_call_operand.vmem [shape: f32[1,96], index: 2, kind: input, shape index: {}]
  %s3 = inlined_call_operand.vmem [shape: f32[32,32], index: 3, kind: input, shape index: {}]
  %s4 = inlined_call_operand.vmem [shape: f32[1,32], index: 4, kind: input, shape index: {}]
  %s5 = inlined_call_operand.vmem [shape: f32[3,512], index: 5, kind: input, shape index: {}]
  %s6 = inlined_call_operand.vmem [shape: f32[3,512], index: 6, kind: input, shape index: {}]
  %s7 = inlined_call_operand.vmem [shape: bf16[512,384], index: 7, kind: input, shape index: {}]
  %s8 = inlined_call_operand.vmem [shape: f32[1,384], index: 8, kind: input, shape index: {}]
  %s9 = inlined_call_operand.vmem [shape: bf16[384,320], index: 9, kind: input, shape index: {}]
  %s10 = inlined_call_operand.vmem [shape: f32[1,320], index: 10, kind: input, shape index: {}]
  %s11 = inlined_call_operand.vmem [shape: bf16[256,12], index: 11, kind: input, shape index: {}]
  %s12 = inlined_call_operand.vmem [shape: f32[1,12], index: 12, kind: input, shape index: {}]
  %s13 = inlined_call_operand.vmem [shape: f32[1,512], index: 13, kind: input, shape index: {}]
  %s14 = inlined_call_operand.vmem [shape: f32[1,64], index: 14, kind: input, shape index: {}]
  %s15 = inlined_call_operand.<no memory space> [shape: f32[1,1], index: 15, kind: input, shape index: {}]
  %s16 = inlined_call_operand.vmem [shape: f32[8,1], index: 16, kind: output, shape index: {0}]
  %s17 = inlined_call_operand.hbm [shape: f32[8,6], index: 17, kind: output, shape index: {1}]
  %s18 = inlined_call_operand.hbm [shape: f32[8,6], index: 18, kind: output, shape index: {2}]
  %19 = xla_tuple %s16, %s17, %s18
  %s20 = sld [smem:[#allocation0]]
  $region90: #{forward.1} parent=0
    _
  %s22 = ssub.s32 1, %s20
  %s23 = scalar_select 0, %s22, %s20
  %v24 = vstv %s15
  %25 = vst [vmem:[#allocation3] sm:$0x1] %v24
  $region1: #{forward.1} parent=0
    #allocation4 [shape = 'u8[4096]{0}', space=vmem, size = 0x1000, scoped, tag = 'output window, operand 1, single buffered']
    #allocation5 [shape = 's32[1]{0}', space=sflag, size = 0x4, scoped, tag = 'scoped memory for forward.1']
    #allocation6 [shape = 'u8[4096]{0}', space=vmem, size = 0x1000, scoped, tag = 'output window, operand 2, single buffered']
    #allocation7 [shape = 's32[1]{0}', space=sflag, size = 0x4, scoped, tag = 'scoped memory for forward.1']
    %26 = vsyncpa [#allocation5], 0
    %27 = vsyncpa [#allocation7], 0
    // Predicated region
    $region2: #{forward.1} parent=1 // pred_check
      _
    $region3: #{forward.1} parent=1 // pred_check_branch
      %29 = sbr.rel (0) target = $region5
    $region4: #{forward.1} parent=1 // pred_region
      _
    $region5: #{forward.1} parent=1 // pred_fallthru
      _
    // Predicated region
    $region6: #{forward.1} parent=1 // pred_check
      _
    $region7: #{forward.1} parent=1 // pred_check_branch
      %31 = sbr.rel (0) target = $region9
    $region8: #{forward.1} parent=1 // pred_region
      _
    $region9: #{forward.1} parent=1 // pred_fallthru
      _
    // Predicated region
    $region10: #{forward.1} parent=1 // pred_check
      _
    $region11: #{forward.1} parent=1 // pred_check_branch
      %33 = sbr.rel (0) target = $region13
    $region12: #{forward.1} parent=1 // pred_region
      _
    $region13: #{forward.1} parent=1 // pred_fallthru
      _
    // Predicated region
    $region14: #{forward.1} parent=1 // pred_check
      _
    $region15: #{forward.1} parent=1 // pred_check_branch
      %35 = sbr.rel (0) target = $region17
    $region16: #{forward.1} parent=1 // pred_region
      _
    $region17: #{forward.1} parent=1 // pred_fallthru
      _
    // Predicated region
    $region18: #{forward.1} parent=1 // pred_check
      _
    $region19: #{forward.1} parent=1 // pred_check_branch
      %37 = sbr.rel (0) target = $region21
    $region20: #{forward.1} parent=1 // pred_region
      _
    $region21: #{forward.1} parent=1 // pred_fallthru
      _
    // Predicated region
    $region22: #{forward.1} parent=1 // pred_check
      _
    $region23: #{forward.1} parent=1 // pred_check_branch
      %39 = sbr.rel (0) target = $region25
    $region24: #{forward.1} parent=1 // pred_region
      _
    $region25: #{forward.1} parent=1 // pred_fallthru
      _
    // Predicated region
    $region26: #{forward.1} parent=1 // pred_check
      _
    $region27: #{forward.1} parent=1 // pred_check_branch
      %41 = sbr.rel (0) target = $region29
    $region28: #{forward.1} parent=1 // pred_region
      _
    $region29: #{forward.1} parent=1 // pred_fallthru
      _
    // Predicated region
    $region30: #{forward.1} parent=1 // pred_check
      _
    $region31: #{forward.1} parent=1 // pred_check_branch
      %43 = sbr.rel (0) target = $region33
    $region32: #{forward.1} parent=1 // pred_region
      _
    $region33: #{forward.1} parent=1 // pred_fallthru
      _
    // Predicated region
    $region34: #{forward.1} parent=1 // pred_check
      _
    $region35: #{forward.1} parent=1 // pred_check_branch
      %45 = sbr.rel (0) target = $region37
    $region36: #{forward.1} parent=1 // pred_region
      _
    $region37: #{forward.1} parent=1 // pred_fallthru
      _
    // Predicated region
    $region38: #{forward.1} parent=1 // pred_check
      _
    $region39: #{forward.1} parent=1 // pred_check_branch
      %47 = sbr.rel (0) target = $region41
    $region40: #{forward.1} parent=1 // pred_region
      _
    $region41: #{forward.1} parent=1 // pred_fallthru
      _
    // Predicated region
    $region42: #{forward.1} parent=1 // pred_check
      _
    $region43: #{forward.1} parent=1 // pred_check_branch
      %49 = sbr.rel (0) target = $region45
    $region44: #{forward.1} parent=1 // pred_region
      _
    $region45: #{forward.1} parent=1 // pred_fallthru
      _
    // Predicated region
    $region46: #{forward.1} parent=1 // pred_check
      _
    $region47: #{forward.1} parent=1 // pred_check_branch
      %51 = sbr.rel (0) target = $region49
    $region48: #{forward.1} parent=1 // pred_region
      _
    $region49: #{forward.1} parent=1 // pred_fallthru
      _
    // Predicated region
    $region50: #{forward.1} parent=1 // pred_check
      _
    $region51: #{forward.1} parent=1 // pred_check_branch
      %53 = sbr.rel (0) target = $region53
    $region52: #{forward.1} parent=1 // pred_region
      _
    $region53: #{forward.1} parent=1 // pred_fallthru
      _
    // Predicated region
    $region54: #{forward.1} parent=1 // pred_check
      _
    $region55: #{forward.1} parent=1 // pred_check_branch
      %55 = sbr.rel (0) target = $region57
    $region56: #{forward.1} parent=1 // pred_region
      _
    $region57: #{forward.1} parent=1 // pred_fallthru
      _
    // Predicated region
    $region58: #{forward.1} parent=1 // pred_check
      _
    $region59: #{forward.1} parent=1 // pred_check_branch
      %57 = sbr.rel (0) target = $region61
    $region60: #{forward.1} parent=1 // pred_region
      _
    $region61: #{forward.1} parent=1 // pred_fallthru
      _
    // Predicated region
    $region62: #{forward.1} parent=1 // pred_check
      _
    $region63: #{forward.1} parent=1 // pred_check_branch
      %59 = sbr.rel (0) target = $region65
    $region64: #{forward.1} parent=1 // pred_region
      _
    $region65: #{forward.1} parent=1 // pred_fallthru
      _
    %v61 = vld [vmem:[%s0] sm:$0xff]
    %v62 = vld [vmem:[%s0 + $0x8] sm:$0xff]
    %v63 = vld [vmem:[%s0 + $0x10] sm:$0xff]
    %v64 = vld [vmem:[%s0 + $0x18] sm:$0xff]
    %v65 = vld [vmem:[%s0 + $0x20] sm:$0xff]
    %v66 = vld [vmem:[%s0 + $0x28] sm:$0xff]
    %v67 = vld [vmem:[%s0 + $0x30] sm:$0xff]
    %v68 = vld [vmem:[%s0 + $0x38] sm:$0xff]
    %v69 = vld [vmem:[%s0 + $0x40] sm:$0xff]
    %v70 = vld [vmem:[%s0 + $0x48] sm:$0xff]
    %v71 = vld [vmem:[%s0 + $0x50] sm:$0xff]
    %v72 = vld [vmem:[%s0 + $0x58] sm:$0xff]
    %v73 = vld [vmem:[%s0 + $0x60] sm:$0xff]
    %v74 = vld [vmem:[%s0 + $0x68] sm:$0xff]
    %v75 = vld [vmem:[%s0 + $0x70] sm:$0xff]
    %v76 = vld [vmem:[%s0 + $0x78] sm:$0xff]
    %v77 = vpack.c.bf16 %v62, %v61
    %v78 = vpack.c.bf16 %v64, %v63
    %v79 = vpack.c.bf16 %v66, %v65
    %v80 = vpack.c.bf16 %v68, %v67
    %v81 = vpack.c.bf16 %v70, %v69
    %v82 = vpack.c.bf16 %v72, %v71
    %v83 = vpack.c.bf16 %v74, %v73
    %v84 = vpack.c.bf16 %v76, %v75
    %v85 = vld [vmem:[%s1] sm:$0xf]
    %v86 = vld [vmem:[%s1 + $0x4] sm:$0xf]
    %v87 = vld [vmem:[%s1 + $0x8] sm:$0xf]
    %v88 = vld [vmem:[%s1 + $0xc] sm:$0xf]
    %v89 = vld [vmem:[%s2] sm:$0x1]
    %v91 = vperm.slane %v89, 0
    %v97 = vunpack.c.l.b16 %v85
    %v98 = vunpack.c.l.b16 %v86
    %v99 = vunpack.c.l.b16 %v87
    %v100 = vunpack.c.l.b16 %v88
    %v101 = vpack.c.b16 %v98, %v97
    %v102 = vpack.c.b16 %v100, %v99
    %vm105 = vcmask 261120
    %v107 = vsel %vm105, %v77, 0
    %v110 = vsel %vm105, %v78, 0
    %v113 = vsel %vm105, %v79, 0
    %v116 = vsel %vm105, %v80, 0
    %v119 = vsel %vm105, %v81, 0
    %v122 = vsel %vm105, %v82, 0
    %v125 = vsel %vm105, %v83, 0
    %v128 = vsel %vm105, %v84, 0
    %130 = vmatpush.bf16.msra.mxu0 0
    %131 = vmatpush.bf16.msra.mxu0 0
    %132 = vmatpush.bf16.msra.mxu0 0
    %133 = vmatpush.bf16.msra.mxu0 0
    %134 = vmatpush.bf16.msra.mxu0 0
    %135 = vmatpush.bf16.msra.mxu0 0
    %136 = vmatpush.bf16.msra.mxu0 %v102
    %137 = vmatpush.bf16.msra.mxu0 %v101
    %138 = vmatmul.bf16.gmra.mxu0 %v107
    %v139 = vpop.f32.mrf.mxu0
    %v140 = vadd.f32 %v91, %v139
    %v141 = vpop.f32.mrf.mxu0
    %v142 = vadd.f32 %v91, %v141
    %143 = vmatmul.bf16.gmra.mxu0 %v110
    %v144 = vpop.f32.mrf.mxu0
    %v145 = vadd.f32 %v91, %v144
    %v146 = vpop.f32.mrf.mxu0
    %v147 = vadd.f32 %v91, %v146
    %148 = vmatmul.bf16.gmra.mxu0 %v113
    %v149 = vpop.f32.mrf.mxu0
    %v150 = vadd.f32 %v91, %v149
    %v151 = vpop.f32.mrf.mxu0
    %v152 = vadd.f32 %v91, %v151
    %153 = vmatmul.bf16.gmra.mxu0 %v116
    %v154 = vpop.f32.mrf.mxu0
    %v155 = vadd.f32 %v91, %v154
    %v156 = vpop.f32.mrf.mxu0
    %v157 = vadd.f32 %v91, %v156
    %158 = vmatmul.bf16.gmra.mxu0 %v119
    %v159 = vpop.f32.mrf.mxu0
    %v160 = vadd.f32 %v91, %v159
    %v161 = vpop.f32.mrf.mxu0
    %v162 = vadd.f32 %v91, %v161
    %163 = vmatmul.bf16.gmra.mxu0 %v122
    %v164 = vpop.f32.mrf.mxu0
    %v165 = vadd.f32 %v91, %v164
    %v166 = vpop.f32.mrf.mxu0
    %v167 = vadd.f32 %v91, %v166
    %168 = vmatmul.bf16.gmra.mxu0 %v125
    %v169 = vpop.f32.mrf.mxu0
    %v170 = vadd.f32 %v91, %v169
    %v171 = vpop.f32.mrf.mxu0
    %v172 = vadd.f32 %v91, %v171
    %173 = vmatmul.bf16.gmra.mxu0 %v128
    %v174 = vpop.f32.mrf.mxu0
    %v175 = vadd.f32 %v91, %v174
    %v176 = vpop.f32.mrf.mxu0
    %v177 = vadd.f32 %v91, %v176
    %178 = vdwg.mxu0
    %v179 = vlaneseq
    %v180 = vshrl.u32 %v179, 7
    %v181 = vadd.s32 %v180, 8
    %v182 = vadd.s32 %v180, 16
    %v183 = vadd.s32 %v180, 24
    %v184 = vadd.s32 %v180, 32
    %v185 = vadd.s32 %v180, 40
    %v186 = vadd.s32 %v180, 48
    %v187 = vadd.s32 %v180, 56
    %v188 = vadd.s32 %v180, 64
    %v189 = vadd.s32 %v180, 72
    %v190 = vadd.s32 %v180, 80
    %v191 = vadd.s32 %v180, 88
    %v192 = vadd.s32 %v180, 96
    %v193 = vadd.s32 %v180, 104
    %v194 = vadd.s32 %v180, 112
    %v195 = vadd.s32 %v180, 120
    %v196 = vlaneseq
    %v197 = vand.u32 %v196, 127
    %vm198 = vcmp.lt.s32.totalorder %v180, 0
    %v199 = vsub.s32 0, %v180
    %v200 = vsel %vm198, %v199, %v180
    %v201 = vshrl.u32 %v200, 3
    %v202 = vand.u32 %v200, 7
    %v203 = vsub.s32 0, %v202
    %v204 = vsel %vm198, %v203, %v202
    %vm205 = vcmp.lt.s32.totalorder %v181, 0
    %v206 = vsub.s32 0, %v181
    %v207 = vsel %vm205, %v206, %v181
    %v208 = vshrl.u32 %v207, 3
    %v209 = vand.u32 %v207, 7
    %v210 = vsub.s32 0, %v209
    %v211 = vsel %vm205, %v210, %v209
    %vm212 = vcmp.lt.s32.totalorder %v182, 0
    %v213 = vsub.s32 0, %v182
    %v214 = vsel %vm212, %v213, %v182
    %v215 = vshrl.u32 %v214, 3
    %v216 = vand.u32 %v214, 7
    %v217 = vsub.s32 0, %v216
    %v218 = vsel %vm212, %v217, %v216
    %vm219 = vcmp.lt.s32.totalorder %v183, 0
    %v220 = vsub.s32 0, %v183
    %v221 = vsel %vm219, %v220, %v183
    %v222 = vshrl.u32 %v221, 3
    %v223 = vand.u32 %v221, 7
    %v224 = vsub.s32 0, %v223
    %v225 = vsel %vm219, %v224, %v223
    %vm226 = vcmp.lt.s32.totalorder %v184, 0
    %v227 = vsub.s32 0, %v184
    %v228 = vsel %vm226, %v227, %v184
    %v229 = vshrl.u32 %v228, 3
    %v230 = vand.u32 %v228, 7
    %v231 = vsub.s32 0, %v230
    %v232 = vsel %vm226, %v231, %v230
    %vm233 = vcmp.lt.s32.totalorder %v185, 0
    %v234 = vsub.s32 0, %v185
    %v235 = vsel %vm233, %v234, %v185
    %v236 = vshrl.u32 %v235, 3
    %v237 = vand.u32 %v235, 7
    %v238 = vsub.s32 0, %v237
    %v239 = vsel %vm233, %v238, %v237
    %vm240 = vcmp.lt.s32.totalorder %v186, 0
    %v241 = vsub.s32 0, %v186
    %v242 = vsel %vm240, %v241, %v186
    %v243 = vshrl.u32 %v242, 3
    %v244 = vand.u32 %v242, 7
    %v245 = vsub.s32 0, %v244
    %v246 = vsel %vm240, %v245, %v244
    %vm247 = vcmp.lt.s32.totalorder %v187, 0
    %v248 = vsub.s32 0, %v187
    %v249 = vsel %vm247, %v248, %v187
    %v250 = vshrl.u32 %v249, 3
    %v251 = vand.u32 %v249, 7
    %v252 = vsub.s32 0, %v251
    %v253 = vsel %vm247, %v252, %v251
    %vm254 = vcmp.lt.s32.totalorder %v188, 0
    %v255 = vsub.s32 0, %v188
    %v256 = vsel %vm254, %v255, %v188
    %v257 = vshrl.u32 %v256, 3
    %v258 = vand.u32 %v256, 7
    %v259 = vsub.s32 0, %v258
    %v260 = vsel %vm254, %v259, %v258
    %vm261 = vcmp.lt.s32.totalorder %v189, 0
    %v262 = vsub.s32 0, %v189
    %v263 = vsel %vm261, %v262, %v189
    %v264 = vshrl.u32 %v263, 3
    %v265 = vand.u32 %v263, 7
    %v266 = vsub.s32 0, %v265
    %v267 = vsel %vm261, %v266, %v265
    %vm268 = vcmp.lt.s32.totalorder %v190, 0
    %v269 = vsub.s32 0, %v190
    %v270 = vsel %vm268, %v269, %v190
    %v271 = vshrl.u32 %v270, 3
    %v272 = vand.u32 %v270, 7
    %v273 = vsub.s32 0, %v272
    %v274 = vsel %vm268, %v273, %v272
    %vm275 = vcmp.lt.s32.totalorder %v191, 0
    %v276 = vsub.s32 0, %v191
    %v277 = vsel %vm275, %v276, %v191
    %v278 = vshrl.u32 %v277, 3
    %v279 = vand.u32 %v277, 7
    %v280 = vsub.s32 0, %v279
    %v281 = vsel %vm275, %v280, %v279
    %vm282 = vcmp.lt.s32.totalorder %v192, 0
    %v283 = vsub.s32 0, %v192
    %v284 = vsel %vm282, %v283, %v192
    %v285 = vshrl.u32 %v284, 3
    %v286 = vand.u32 %v284, 7
    %v287 = vsub.s32 0, %v286
    %v288 = vsel %vm282, %v287, %v286
    %vm289 = vcmp.lt.s32.totalorder %v193, 0
    %v290 = vsub.s32 0, %v193
    %v291 = vsel %vm289, %v290, %v193
    %v292 = vshrl.u32 %v291, 3
    %v293 = vand.u32 %v291, 7
    %v294 = vsub.s32 0, %v293
    %v295 = vsel %vm289, %v294, %v293
    %vm296 = vcmp.lt.s32.totalorder %v194, 0
    %v297 = vsub.s32 0, %v194
    %v298 = vsel %vm296, %v297, %v194
    %v299 = vshrl.u32 %v298, 3
    %v300 = vand.u32 %v298, 7
    %v301 = vsub.s32 0, %v300
    %v302 = vsel %vm296, %v301, %v300
    %vm303 = vcmp.lt.s32.totalorder %v195, 0
    %v304 = vsub.s32 0, %v195
    %v305 = vsel %vm303, %v304, %v195
    %v306 = vshrl.u32 %v305, 3
    %v307 = vand.u32 %v305, 7
    %v308 = vsub.s32 0, %v307
    %v309 = vsel %vm303, %v308, %v307
    %vm310 = vcmp.ne.s32.totalorder %v204, 0
    %vm311 = vcmp.ne.s32.totalorder %v211, 0
    %vm312 = vcmp.ne.s32.totalorder %v218, 0
    %vm313 = vcmp.ne.s32.totalorder %v225, 0
    %vm314 = vcmp.ne.s32.totalorder %v232, 0
    %vm315 = vcmp.ne.s32.totalorder %v239, 0
    %vm316 = vcmp.ne.s32.totalorder %v246, 0
    %vm317 = vcmp.ne.s32.totalorder %v253, 0
    %vm318 = vcmp.ne.s32.totalorder %v260, 0
    %vm319 = vcmp.ne.s32.totalorder %v267, 0
    %vm320 = vcmp.ne.s32.totalorder %v274, 0
    %vm321 = vcmp.ne.s32.totalorder %v281, 0
    %vm322 = vcmp.ne.s32.totalorder %v288, 0
    %vm323 = vcmp.ne.s32.totalorder %v295, 0
    %vm324 = vcmp.ne.s32.totalorder %v302, 0
    %vm325 = vcmp.ne.s32.totalorder %v309, 0
    %vm326 = vcmp.lt.s32.totalorder %v204, 0
    %vm327 = vcmp.lt.s32.totalorder %v211, 0
    %vm328 = vcmp.lt.s32.totalorder %v218, 0
    %vm329 = vcmp.lt.s32.totalorder %v225, 0
    %vm330 = vcmp.lt.s32.totalorder %v232, 0
    %vm331 = vcmp.lt.s32.totalorder %v239, 0
    %vm332 = vcmp.lt.s32.totalorder %v246, 0
    %vm333 = vcmp.lt.s32.totalorder %v253, 0
    %vm334 = vcmp.lt.s32.totalorder %v260, 0
    %vm335 = vcmp.lt.s32.totalorder %v267, 0
    %vm336 = vcmp.lt.s32.totalorder %v274, 0
    %vm337 = vcmp.lt.s32.totalorder %v281, 0
    %vm338 = vcmp.lt.s32.totalorder %v288, 0
    %vm339 = vcmp.lt.s32.totalorder %v295, 0
    %vm340 = vcmp.lt.s32.totalorder %v302, 0
    %vm341 = vcmp.lt.s32.totalorder %v309, 0
    %vm342 = vmand %vm326, %vm310
    %vm343 = vmand %vm327, %vm311
    %vm344 = vmand %vm328, %vm312
    %vm345 = vmand %vm329, %vm313
    %vm346 = vmand %vm330, %vm314
    %vm347 = vmand %vm331, %vm315
    %vm348 = vmand %vm332, %vm316
    %vm349 = vmand %vm333, %vm317
    %vm350 = vmand %vm334, %vm318
    %vm351 = vmand %vm335, %vm319
    %vm352 = vmand %vm336, %vm320
    %vm353 = vmand %vm337, %vm321
    %vm354 = vmand %vm338, %vm322
    %vm355 = vmand %vm339, %vm323
    %vm356 = vmand %vm340, %vm324
    %vm357 = vmand %vm341, %vm325
    %v358 = vadd.s32 %v204, 8
    %v359 = vadd.s32 %v211, 8
    %v360 = vadd.s32 %v218, 8
    %v361 = vadd.s32 %v225, 8
    %v362 = vadd.s32 %v232, 8
    %v363 = vadd.s32 %v239, 8
    %v364 = vadd.s32 %v246, 8
    %v365 = vadd.s32 %v253, 8
    %v366 = vadd.s32 %v260, 8
    %v367 = vadd.s32 %v267, 8
    %v368 = vadd.s32 %v274, 8
    %v369 = vadd.s32 %v281, 8
    %v370 = vadd.s32 %v288, 8
    %v371 = vadd.s32 %v295, 8
    %v372 = vadd.s32 %v302, 8
    %v373 = vadd.s32 %v309, 8
    %v374 = vsel %vm342, %v358, %v204
    %v375 = vsel %vm343, %v359, %v211
    %v376 = vsel %vm344, %v360, %v218
    %v377 = vsel %vm345, %v361, %v225
    %v378 = vsel %vm346, %v362, %v232
    %v379 = vsel %vm347, %v363, %v239
    %v380 = vsel %vm348, %v364, %v246
    %v381 = vsel %vm349, %v365, %v253
    %v382 = vsel %vm350, %v366, %v260
    %v383 = vsel %vm351, %v367, %v267
    %v384 = vsel %vm352, %v368, %v274
    %v385 = vsel %vm353, %v369, %v281
    %v386 = vsel %vm354, %v370, %v288
    %v387 = vsel %vm355, %v371, %v295
    %v388 = vsel %vm356, %v372, %v302
    %v389 = vsel %vm357, %v373, %v309
    %vm390 = vcmp.lt.s32.totalorder %v197, 0
    %v391 = vsub.s32 0, %v197
    %v392 = vsel %vm390, %v391, %v197
    %v393 = vshrl.u32 %v392, 3
    %v394 = vand.u32 %v392, 7
    %v395 = vsub.s32 0, %v394
    %v396 = vsel %vm390, %v395, %v394
    %vm397 = vcmp.ne.s32.totalorder %v396, 0
    %vm398 = vcmp.lt.s32.totalorder %v396, 0
    %vm399 = vmand %vm398, %vm397
    %v400 = vadd.s32 %v396, 8
    %v401 = vsel %vm399, %v400, %v396
    %vm402 = vcmp.eq.s32.totalorder %v374, %v401
    %vm403 = vcmp.eq.s32.totalorder %v375, %v401
    %vm404 = vcmp.eq.s32.totalorder %v376, %v401
    %vm405 = vcmp.eq.s32.totalorder %v377, %v401
    %vm406 = vcmp.eq.s32.totalorder %v378, %v401
    %vm407 = vcmp.eq.s32.totalorder %v379, %v401
    %vm408 = vcmp.eq.s32.totalorder %v380, %v401
    %vm409 = vcmp.eq.s32.totalorder %v381, %v401
    %vm410 = vcmp.eq.s32.totalorder %v382, %v401
    %vm411 = vcmp.eq.s32.totalorder %v383, %v401
    %vm412 = vcmp.eq.s32.totalorder %v384, %v401
    %vm413 = vcmp.eq.s32.totalorder %v385, %v401
    %vm414 = vcmp.eq.s32.totalorder %v386, %v401
    %vm415 = vcmp.eq.s32.totalorder %v387, %v401
    %vm416 = vcmp.eq.s32.totalorder %v388, %v401
    %vm417 = vcmp.eq.s32.totalorder %v389, %v401
    %v418 = vld [vmem:[%s3] sm:$0xff]
    %v419 = vld [vmem:[%s3 + $0x8] sm:$0xff]
    %v420 = vld [vmem:[%s3 + $0x10] sm:$0xff]
    %v421 = vld [vmem:[%s3 + $0x18] sm:$0xff]
    %v422 = vpack.c.bf16 %v142, %v140
    %v423 = vpack.c.bf16 %v147, %v145
    %v424 = vpack.c.bf16 %v152, %v150
    %v425 = vpack.c.bf16 %v157, %v155
    %v426 = vpack.c.bf16 %v162, %v160
    %v427 = vpack.c.bf16 %v167, %v165
    %v428 = vpack.c.bf16 %v172, %v170
    %v429 = vpack.c.bf16 %v177, %v175
    %438 = vrot.lane.b32.xlu0 %v422, 96
    %v439 = vpop.permute.xlu0 %438
    %440 = vrot.lane.b32.xlu0 %v423, 96
    %v441 = vpop.permute.xlu0 %440
    %442 = vrot.lane.b32.xlu0 %v424, 96
    %v443 = vpop.permute.xlu0 %442
    %444 = vrot.lane.b32.xlu0 %v425, 96
    %v445 = vpop.permute.xlu0 %444
    %446 = vrot.lane.b32.xlu0 %v426, 96
    %v447 = vpop.permute.xlu0 %446
    %448 = vrot.lane.b32.xlu0 %v427, 96
    %v449 = vpop.permute.xlu0 %448
    %450 = vrot.lane.b32.xlu0 %v428, 96
    %v451 = vpop.permute.xlu0 %450
    %452 = vrot.lane.b32.xlu0 %v429, 96
    %v453 = vpop.permute.xlu0 %452
    %vm454 = vcmask 64512
    %v456 = vsel %vm454, %v422, 0
    %v459 = vsel %vm454, %v423, 0
    %v462 = vsel %vm454, %v424, 0
    %v465 = vsel %vm454, %v425, 0
    %v468 = vsel %vm454, %v426, 0
    %v471 = vsel %vm454, %v427, 0
    %v474 = vsel %vm454, %v428, 0
    %v477 = vsel %vm454, %v429, 0
    %v480 = vsel %vm454, %v439, 0
    %v483 = vsel %vm454, %v441, 0
    %v486 = vsel %vm454, %v443, 0
    %v489 = vsel %vm454, %v445, 0
    %v492 = vsel %vm454, %v447, 0
    %v495 = vsel %vm454, %v449, 0
    %v498 = vsel %vm454, %v451, 0
    %v501 = vsel %vm454, %v453, 0
    %503 = vmatpush.bf16.xpose.msra.mxu0 %v501
    %504 = vmatpush.bf16.xpose.msra.mxu0 %v498
    %505 = vmatpush.bf16.xpose.msra.mxu0 %v495
    %506 = vmatpush.bf16.xpose.msra.mxu0 %v492
    %507 = vmatpush.bf16.xpose.msra.mxu0 %v489
    %508 = vmatpush.bf16.xpose.msra.mxu0 %v486
    %509 = vmatpush.bf16.xpose.msra.mxu0 %v483
    %510 = vmatpush.bf16.xpose.msra.mxu0 %v480
    %511 = vmatmul.bf16.gmra.mxu0 %v456
    %v512 = vpop.f32.mrf.mxu0
    %v513 = vadd.f32 0.0, %v512
    %v514 = vpop.f32.mrf.mxu0
    %v515 = vadd.f32 0.0, %v514
    %516 = vmatmul.bf16.gmra.mxu0 %v459
    %v517 = vpop.f32.mrf.mxu0
    %v518 = vadd.f32 0.0, %v517
    %v519 = vpop.f32.mrf.mxu0
    %v520 = vadd.f32 0.0, %v519
    %521 = vmatmul.bf16.gmra.mxu0 %v462
    %v522 = vpop.f32.mrf.mxu0
    %v523 = vadd.f32 0.0, %v522
    %v524 = vpop.f32.mrf.mxu0
    %v525 = vadd.f32 0.0, %v524
    %526 = vmatmul.bf16.gmra.mxu0 %v465
    %v527 = vpop.f32.mrf.mxu0
    %v528 = vadd.f32 0.0, %v527
    %v529 = vpop.f32.mrf.mxu0
    %v530 = vadd.f32 0.0, %v529
    %531 = vmatmul.bf16.gmra.mxu0 %v468
    %v532 = vpop.f32.mrf.mxu0
    %v533 = vadd.f32 0.0, %v532
    %v534 = vpop.f32.mrf.mxu0
    %v535 = vadd.f32 0.0, %v534
    %536 = vmatmul.bf16.gmra.mxu0 %v471
    %v537 = vpop.f32.mrf.mxu0
    %v538 = vadd.f32 0.0, %v537
    %v539 = vpop.f32.mrf.mxu0
    %v540 = vadd.f32 0.0, %v539
    %541 = vmatmul.bf16.gmra.mxu0 %v474
    %v542 = vpop.f32.mrf.mxu0
    %v543 = vadd.f32 0.0, %v542
    %v544 = vpop.f32.mrf.mxu0
    %v545 = vadd.f32 0.0, %v544
    %546 = vmatmul.bf16.gmra.mxu0 %v477
    %v547 = vpop.f32.mrf.mxu0
    %v548 = vadd.f32 0.0, %v547
    %v549 = vpop.f32.mrf.mxu0
    %v550 = vadd.f32 0.0, %v549
    %551 = vdwg.mxu0
    %v552 = vmul.f32 %v513, 0.35355338
    %v553 = vmul.f32 %v515, 0.35355338
    %v554 = vmul.f32 %v518, 0.35355338
    %v555 = vmul.f32 %v520, 0.35355338
    %v556 = vmul.f32 %v523, 0.35355338
    %v557 = vmul.f32 %v525, 0.35355338
    %v558 = vmul.f32 %v528, 0.35355338
    %v559 = vmul.f32 %v530, 0.35355338
    %v560 = vmul.f32 %v533, 0.35355338
    %v561 = vmul.f32 %v535, 0.35355338
    %v562 = vmul.f32 %v538, 0.35355338
    %v563 = vmul.f32 %v540, 0.35355338
    %v564 = vmul.f32 %v543, 0.35355338
    %v565 = vmul.f32 %v545, 0.35355338
    %v566 = vmul.f32 %v548, 0.35355338
    %v567 = vmul.f32 %v550, 0.35355338
    %v568 = vsel %vm402, %v552, -1e+30
    %v569 = vsel %vm403, %v553, -1e+30
    %v570 = vsel %vm404, %v554, -1e+30
    %v571 = vsel %vm405, %v555, -1e+30
    %v572 = vsel %vm406, %v556, -1e+30
    %v573 = vsel %vm407, %v557, -1e+30
    %v574 = vsel %vm408, %v558, -1e+30
    %v575 = vsel %vm409, %v559, -1e+30
    %v576 = vsel %vm410, %v560, -1e+30
    %v577 = vsel %vm411, %v561, -1e+30
    %v578 = vsel %vm412, %v562, -1e+30
    %v579 = vsel %vm413, %v563, -1e+30
    %v580 = vsel %vm414, %v564, -1e+30
    %v581 = vsel %vm415, %v565, -1e+30
    %v582 = vsel %vm416, %v566, -1e+30
    %v583 = vsel %vm417, %v567, -1e+30
    %584 = vmax.xlane.f32.xlu0 %v568
    %v585 = vpop.xlane.xlu0 %584
    %586 = vmax.xlane.f32.xlu0 %v569
    %v587 = vpop.xlane.xlu0 %586
    %588 = vmax.xlane.f32.xlu0 %v570
    %v589 = vpop.xlane.xlu0 %588
    %590 = vmax.xlane.f32.xlu0 %v571
    %v591 = vpop.xlane.xlu0 %590
    %592 = vmax.xlane.f32.xlu0 %v572
    %v593 = vpop.xlane.xlu0 %592
    %594 = vmax.xlane.f32.xlu0 %v573
    %v595 = vpop.xlane.xlu0 %594
    %596 = vmax.xlane.f32.xlu0 %v574
    %v597 = vpop.xlane.xlu0 %596
    %598 = vmax.xlane.f32.xlu0 %v575
    %v599 = vpop.xlane.xlu0 %598
    %600 = vmax.xlane.f32.xlu0 %v576
    %v601 = vpop.xlane.xlu0 %600
    %602 = vmax.xlane.f32.xlu0 %v577
    %v603 = vpop.xlane.xlu0 %602
    %604 = vmax.xlane.f32.xlu0 %v578
    %v605 = vpop.xlane.xlu0 %604
    %606 = vmax.xlane.f32.xlu0 %v579
    %v607 = vpop.xlane.xlu0 %606
    %608 = vmax.xlane.f32.xlu0 %v580
    %v609 = vpop.xlane.xlu0 %608
    %610 = vmax.xlane.f32.xlu0 %v581
    %v611 = vpop.xlane.xlu0 %610
    %612 = vmax.xlane.f32.xlu0 %v582
    %v613 = vpop.xlane.xlu0 %612
    %614 = vmax.xlane.f32.xlu0 %v583
    %v615 = vpop.xlane.xlu0 %614
    %v616 = vsub.f32 %v568, %v585
    %v617 = vsub.f32 %v569, %v587
    %v618 = vsub.f32 %v570, %v589
    %v619 = vsub.f32 %v571, %v591
    %v620 = vsub.f32 %v572, %v593
    %v621 = vsub.f32 %v573, %v595
    %v622 = vsub.f32 %v574, %v597
    %v623 = vsub.f32 %v575, %v599
    %v624 = vsub.f32 %v576, %v601
    %v625 = vsub.f32 %v577, %v603
    %v626 = vsub.f32 %v578, %v605
    %v627 = vsub.f32 %v579, %v607
    %v628 = vsub.f32 %v580, %v609
    %v629 = vsub.f32 %v581, %v611
    %v630 = vsub.f32 %v582, %v613
    %v631 = vsub.f32 %v583, %v615
    %v632 = vmul.f32 %v616, 1.442695
    %v633 = vpow.pop %v632
    %v634 = vmul.f32 %v617, 1.442695
    %v635 = vpow.pop %v634
    %v636 = vmul.f32 %v618, 1.442695
    %v637 = vpow.pop %v636
    %v638 = vmul.f32 %v619, 1.442695
    %v639 = vpow.pop %v638
    %v640 = vmul.f32 %v620, 1.442695
    %v641 = vpow.pop %v640
    %v642 = vmul.f32 %v621, 1.442695
    %v643 = vpow.pop %v642
    %v644 = vmul.f32 %v622, 1.442695
    %v645 = vpow.pop %v644
    %v646 = vmul.f32 %v623, 1.442695
    %v647 = vpow.pop %v646
    %v648 = vmul.f32 %v624, 1.442695
    %v649 = vpow.pop %v648
    %v650 = vmul.f32 %v625, 1.442695
    %v651 = vpow.pop %v650
    %v652 = vmul.f32 %v626, 1.442695
    %v653 = vpow.pop %v652
    %v654 = vmul.f32 %v627, 1.442695
    %v655 = vpow.pop %v654
    %v656 = vmul.f32 %v628, 1.442695
    %v657 = vpow.pop %v656
    %v658 = vmul.f32 %v629, 1.442695
    %v659 = vpow.pop %v658
    %v660 = vmul.f32 %v630, 1.442695
    %v661 = vpow.pop %v660
    %v662 = vmul.f32 %v631, 1.442695
    %v663 = vpow.pop %v662
    %664 = vadd.xlane.f32.xlu0 %v633
    %v665 = vpop.xlane.xlu0 %664
    %666 = vadd.xlane.f32.xlu0 %v635
    %v667 = vpop.xlane.xlu0 %666
    %668 = vadd.xlane.f32.xlu0 %v637
    %v669 = vpop.xlane.xlu0 %668
    %670 = vadd.xlane.f32.xlu0 %v639
    %v671 = vpop.xlane.xlu0 %670
    %672 = vadd.xlane.f32.xlu0 %v641
    %v673 = vpop.xlane.xlu0 %672
    %674 = vadd.xlane.f32.xlu0 %v643
    %v675 = vpop.xlane.xlu0 %674
    %676 = vadd.xlane.f32.xlu0 %v645
    %v677 = vpop.xlane.xlu0 %676
    %678 = vadd.xlane.f32.xlu0 %v647
    %v679 = vpop.xlane.xlu0 %678
    %680 = vadd.xlane.f32.xlu0 %v649
    %v681 = vpop.xlane.xlu0 %680
    %682 = vadd.xlane.f32.xlu0 %v651
    %v683 = vpop.xlane.xlu0 %682
    %684 = vadd.xlane.f32.xlu0 %v653
    %v685 = vpop.xlane.xlu0 %684
    %686 = vadd.xlane.f32.xlu0 %v655
    %v687 = vpop.xlane.xlu0 %686
    %688 = vadd.xlane.f32.xlu0 %v657
    %v689 = vpop.xlane.xlu0 %688
    %690 = vadd.xlane.f32.xlu0 %v659
    %v691 = vpop.xlane.xlu0 %690
    %692 = vadd.xlane.f32.xlu0 %v661
    %v693 = vpop.xlane.xlu0 %692
    %694 = vadd.xlane.f32.xlu0 %v663
    %v695 = vpop.xlane.xlu0 %694
    %v696 = vrcp.pop %v665
    %v697 = vrcp.pop %v667
    %v698 = vrcp.pop %v669
    %v699 = vrcp.pop %v671
    %v700 = vrcp.pop %v673
    %v701 = vrcp.pop %v675
    %v702 = vrcp.pop %v677
    %v703 = vrcp.pop %v679
    %v704 = vrcp.pop %v681
    %v705 = vrcp.pop %v683
    %v706 = vrcp.pop %v685
    %v707 = vrcp.pop %v687
    %v708 = vrcp.pop %v689
    %v709 = vrcp.pop %v691
    %v710 = vrcp.pop %v693
    %v711 = vrcp.pop %v695
    %v712 = vmul.f32 %v633, %v696
    %v713 = vmul.f32 %v635, %v697
    %v714 = vmul.f32 %v637, %v698
    %v715 = vmul.f32 %v639, %v699
    %v716 = vmul.f32 %v641, %v700
    %v717 = vmul.f32 %v643, %v701
    %v718 = vmul.f32 %v645, %v702
    %v719 = vmul.f32 %v647, %v703
    %v720 = vmul.f32 %v649, %v704
    %v721 = vmul.f32 %v651, %v705
    %v722 = vmul.f32 %v653, %v706
    %v723 = vmul.f32 %v655, %v707
    %v724 = vmul.f32 %v657, %v708
    %v725 = vmul.f32 %v659, %v709
    %v726 = vmul.f32 %v661, %v710
    %v727 = vmul.f32 %v663, %v711
    %v728 = vpack.c.bf16 %v713, %v712
    %v729 = vpack.c.bf16 %v715, %v714
    %v730 = vpack.c.bf16 %v717, %v716
    %v731 = vpack.c.bf16 %v719, %v718
    %v732 = vpack.c.bf16 %v721, %v720
    %v733 = vpack.c.bf16 %v723, %v722
    %v734 = vpack.c.bf16 %v725, %v724
    %v735 = vpack.c.bf16 %v727, %v726
    %736 = vrot.lane.b32.xlu0 %v422, 64
    %v737 = vpop.permute.xlu0 %736
    %738 = vrot.lane.b32.xlu0 %v423, 64
    %v739 = vpop.permute.xlu0 %738
    %740 = vrot.lane.b32.xlu0 %v424, 64
    %v741 = vpop.permute.xlu0 %740
    %742 = vrot.lane.b32.xlu0 %v425, 64
    %v743 = vpop.permute.xlu0 %742
    %744 = vrot.lane.b32.xlu0 %v426, 64
    %v745 = vpop.permute.xlu0 %744
    %746 = vrot.lane.b32.xlu0 %v427, 64
    %v747 = vpop.permute.xlu0 %746
    %748 = vrot.lane.b32.xlu0 %v428, 64
    %v749 = vpop.permute.xlu0 %748
    %750 = vrot.lane.b32.xlu0 %v429, 64
    %v751 = vpop.permute.xlu0 %750
    %760 = vmatpush.bf16.msra.mxu0 %v751
    %761 = vmatpush.bf16.msra.mxu0 %v749
    %762 = vmatpush.bf16.msra.mxu0 %v747
    %763 = vmatpush.bf16.msra.mxu0 %v745
    %764 = vmatpush.bf16.msra.mxu0 %v743
    %765 = vmatpush.bf16.msra.mxu0 %v741
    %766 = vmatpush.bf16.msra.mxu0 %v739
    %767 = vmatpush.bf16.msra.mxu0 %v737
    %768 = vmatmul.bf16.gmra.mxu0 %v728
    %v769 = vpop.f32.mrf.mxu0
    %v770 = vadd.f32 0.0, %v769
    %v771 = vpop.f32.mrf.mxu0
    %v772 = vadd.f32 0.0, %v771
    %773 = vmatmul.bf16.gmra.mxu0 %v729
    %v774 = vpop.f32.mrf.mxu0
    %v775 = vadd.f32 0.0, %v774
    %v776 = vpop.f32.mrf.mxu0
    %v777 = vadd.f32 0.0, %v776
    %778 = vmatmul.bf16.gmra.mxu0 %v730
    %v779 = vpop.f32.mrf.mxu0
    %v780 = vadd.f32 0.0, %v779
    %v781 = vpop.f32.mrf.mxu0
    %v782 = vadd.f32 0.0, %v781
    %783 = vmatmul.bf16.gmra.mxu0 %v731
    %v784 = vpop.f32.mrf.mxu0
    %v785 = vadd.f32 0.0, %v784
    %v786 = vpop.f32.mrf.mxu0
    %v787 = vadd.f32 0.0, %v786
    %788 = vmatmul.bf16.gmra.mxu0 %v732
    %v789 = vpop.f32.mrf.mxu0
    %v790 = vadd.f32 0.0, %v789
    %v791 = vpop.f32.mrf.mxu0
    %v792 = vadd.f32 0.0, %v791
    %793 = vmatmul.bf16.gmra.mxu0 %v733
    %v794 = vpop.f32.mrf.mxu0
    %v795 = vadd.f32 0.0, %v794
    %v796 = vpop.f32.mrf.mxu0
    %v797 = vadd.f32 0.0, %v796
    %798 = vmatmul.bf16.gmra.mxu0 %v734
    %v799 = vpop.f32.mrf.mxu0
    %v800 = vadd.f32 0.0, %v799
    %v801 = vpop.f32.mrf.mxu0
    %v802 = vadd.f32 0.0, %v801
    %803 = vmatmul.bf16.gmra.mxu0 %v735
    %v804 = vpop.f32.mrf.mxu0
    %v805 = vadd.f32 0.0, %v804
    %v806 = vpop.f32.mrf.mxu0
    %v807 = vadd.f32 0.0, %v806
    %808 = vdwg.mxu0
    %809 = vrot.lane.b32.xlu0 %v422, 120
    %v810 = vpop.permute.xlu0 %809
    %811 = vrot.lane.b32.xlu0 %v423, 120
    %v812 = vpop.permute.xlu0 %811
    %813 = vrot.lane.b32.xlu0 %v424, 120
    %v814 = vpop.permute.xlu0 %813
    %815 = vrot.lane.b32.xlu0 %v425, 120
    %v816 = vpop.permute.xlu0 %815
    %817 = vrot.lane.b32.xlu0 %v426, 120
    %v818 = vpop.permute.xlu0 %817
    %819 = vrot.lane.b32.xlu0 %v427, 120
    %v820 = vpop.permute.xlu0 %819
    %821 = vrot.lane.b32.xlu0 %v428, 120
    %v822 = vpop.permute.xlu0 %821
    %823 = vrot.lane.b32.xlu0 %v429, 120
    %v824 = vpop.permute.xlu0 %823
    %825 = vrot.lane.b32.xlu0 %v422, 88
    %v826 = vpop.permute.xlu0 %825
    %827 = vrot.lane.b32.xlu0 %v423, 88
    %v828 = vpop.permute.xlu0 %827
    %829 = vrot.lane.b32.xlu0 %v424, 88
    %v830 = vpop.permute.xlu0 %829
    %831 = vrot.lane.b32.xlu0 %v425, 88
    %v832 = vpop.permute.xlu0 %831
    %833 = vrot.lane.b32.xlu0 %v426, 88
    %v834 = vpop.permute.xlu0 %833
    %835 = vrot.lane.b32.xlu0 %v427, 88
    %v836 = vpop.permute.xlu0 %835
    %837 = vrot.lane.b32.xlu0 %v428, 88
    %v838 = vpop.permute.xlu0 %837
    %839 = vrot.lane.b32.xlu0 %v429, 88
    %v840 = vpop.permute.xlu0 %839
    %v842 = vsel %vm454, %v810, 0
    %v845 = vsel %vm454, %v812, 0
    %v848 = vsel %vm454, %v814, 0
    %v851 = vsel %vm454, %v816, 0
    %v854 = vsel %vm454, %v818, 0
    %v857 = vsel %vm454, %v820, 0
    %v860 = vsel %vm454, %v822, 0
    %v863 = vsel %vm454, %v824, 0
    %v866 = vsel %vm454, %v826, 0
    %v869 = vsel %vm454, %v828, 0
    %v872 = vsel %vm454, %v830, 0
    %v875 = vsel %vm454, %v832, 0
    %v878 = vsel %vm454, %v834, 0
    %v881 = vsel %vm454, %v836, 0
    %v884 = vsel %vm454, %v838, 0
    %v887 = vsel %vm454, %v840, 0
    %889 = vmatpush.bf16.xpose.msra.mxu0 %v887
    %890 = vmatpush.bf16.xpose.msra.mxu0 %v884
    %891 = vmatpush.bf16.xpose.msra.mxu0 %v881
    %892 = vmatpush.bf16.xpose.msra.mxu0 %v878
    %893 = vmatpush.bf16.xpose.msra.mxu0 %v875
    %894 = vmatpush.bf16.xpose.msra.mxu0 %v872
    %895 = vmatpush.bf16.xpose.msra.mxu0 %v869
    %896 = vmatpush.bf16.xpose.msra.mxu0 %v866
    %897 = vmatmul.bf16.gmra.mxu0 %v842
    %v898 = vpop.f32.mrf.mxu0
    %v899 = vadd.f32 0.0, %v898
    %v900 = vpop.f32.mrf.mxu0
    %v901 = vadd.f32 0.0, %v900
    %902 = vmatmul.bf16.gmra.mxu0 %v845
    %v903 = vpop.f32.mrf.mxu0
    %v904 = vadd.f32 0.0, %v903
    %v905 = vpop.f32.mrf.mxu0
    %v906 = vadd.f32 0.0, %v905
    %907 = vmatmul.bf16.gmra.mxu0 %v848
    %v908 = vpop.f32.mrf.mxu0
    %v909 = vadd.f32 0.0, %v908
    %v910 = vpop.f32.mrf.mxu0
    %v911 = vadd.f32 0.0, %v910
    %912 = vmatmul.bf16.gmra.mxu0 %v851
    %v913 = vpop.f32.mrf.mxu0
    %v914 = vadd.f32 0.0, %v913
    %v915 = vpop.f32.mrf.mxu0
    %v916 = vadd.f32 0.0, %v915
    %917 = vmatmul.bf16.gmra.mxu0 %v854
    %v918 = vpop.f32.mrf.mxu0
    %v919 = vadd.f32 0.0, %v918
    %v920 = vpop.f32.mrf.mxu0
    %v921 = vadd.f32 0.0, %v920
    %922 = vmatmul.bf16.gmra.mxu0 %v857
    %v923 = vpop.f32.mrf.mxu0
    %v924 = vadd.f32 0.0, %v923
    %v925 = vpop.f32.mrf.mxu0
    %v926 = vadd.f32 0.0, %v925
    %927 = vmatmul.bf16.gmra.mxu0 %v860
    %v928 = vpop.f32.mrf.mxu0
    %v929 = vadd.f32 0.0, %v928
    %v930 = vpop.f32.mrf.mxu0
    %v931 = vadd.f32 0.0, %v930
    %932 = vmatmul.bf16.gmra.mxu0 %v863
    %v933 = vpop.f32.mrf.mxu0
    %v934 = vadd.f32 0.0, %v933
    %v935 = vpop.f32.mrf.mxu0
    %v936 = vadd.f32 0.0, %v935
    %937 = vdwg.mxu0
    %v938 = vmul.f32 %v899, 0.35355338
    %v939 = vmul.f32 %v901, 0.35355338
    %v940 = vmul.f32 %v904, 0.35355338
    %v941 = vmul.f32 %v906, 0.35355338
    %v942 = vmul.f32 %v909, 0.35355338
    %v943 = vmul.f32 %v911, 0.35355338
    %v944 = vmul.f32 %v914, 0.35355338
    %v945 = vmul.f32 %v916, 0.35355338
    %v946 = vmul.f32 %v919, 0.35355338
    %v947 = vmul.f32 %v921, 0.35355338
    %v948 = vmul.f32 %v924, 0.35355338
    %v949 = vmul.f32 %v926, 0.35355338
    %v950 = vmul.f32 %v929, 0.35355338
    %v951 = vmul.f32 %v931, 0.35355338
    %v952 = vmul.f32 %v934, 0.35355338
    %v953 = vmul.f32 %v936, 0.35355338
    %v954 = vsel %vm402, %v938, -1e+30
    %v955 = vsel %vm403, %v939, -1e+30
    %v956 = vsel %vm404, %v940, -1e+30
    %v957 = vsel %vm405, %v941, -1e+30
    %v958 = vsel %vm406, %v942, -1e+30
    %v959 = vsel %vm407, %v943, -1e+30
    %v960 = vsel %vm408, %v944, -1e+30
    %v961 = vsel %vm409, %v945, -1e+30
    %v962 = vsel %vm410, %v946, -1e+30
    %v963 = vsel %vm411, %v947, -1e+30
    %v964 = vsel %vm412, %v948, -1e+30
    %v965 = vsel %vm413, %v949, -1e+30
    %v966 = vsel %vm414, %v950, -1e+30
    %v967 = vsel %vm415, %v951, -1e+30
    %v968 = vsel %vm416, %v952, -1e+30
    %v969 = vsel %vm417, %v953, -1e+30
    %970 = vmax.xlane.f32.xlu0 %v954
    %v971 = vpop.xlane.xlu0 %970
    %972 = vmax.xlane.f32.xlu0 %v955
    %v973 = vpop.xlane.xlu0 %972
    %974 = vmax.xlane.f32.xlu0 %v956
    %v975 = vpop.xlane.xlu0 %974
    %976 = vmax.xlane.f32.xlu0 %v957
    %v977 = vpop.xlane.xlu0 %976
    %978 = vmax.xlane.f32.xlu0 %v958
    %v979 = vpop.xlane.xlu0 %978
    %980 = vmax.xlane.f32.xlu0 %v959
    %v981 = vpop.xlane.xlu0 %980
    %982 = vmax.xlane.f32.xlu0 %v960
    %v983 = vpop.xlane.xlu0 %982
    %984 = vmax.xlane.f32.xlu0 %v961
    %v985 = vpop.xlane.xlu0 %984
    %986 = vmax.xlane.f32.xlu0 %v962
    %v987 = vpop.xlane.xlu0 %986
    %988 = vmax.xlane.f32.xlu0 %v963
    %v989 = vpop.xlane.xlu0 %988
    %990 = vmax.xlane.f32.xlu0 %v964
    %v991 = vpop.xlane.xlu0 %990
    %992 = vmax.xlane.f32.xlu0 %v965
    %v993 = vpop.xlane.xlu0 %992
    %994 = vmax.xlane.f32.xlu0 %v966
    %v995 = vpop.xlane.xlu0 %994
    %996 = vmax.xlane.f32.xlu0 %v967
    %v997 = vpop.xlane.xlu0 %996
    %998 = vmax.xlane.f32.xlu0 %v968
    %v999 = vpop.xlane.xlu0 %998
    %1000 = vmax.xlane.f32.xlu0 %v969
    %v1001 = vpop.xlane.xlu0 %1000
    %v1002 = vsub.f32 %v954, %v971
    %v1003 = vsub.f32 %v955, %v973
    %v1004 = vsub.f32 %v956, %v975
    %v1005 = vsub.f32 %v957, %v977
    %v1006 = vsub.f32 %v958, %v979
    %v1007 = vsub.f32 %v959, %v981
    %v1008 = vsub.f32 %v960, %v983
    %v1009 = vsub.f32 %v961, %v985
    %v1010 = vsub.f32 %v962, %v987
    %v1011 = vsub.f32 %v963, %v989
    %v1012 = vsub.f32 %v964, %v991
    %v1013 = vsub.f32 %v965, %v993
    %v1014 = vsub.f32 %v966, %v995
    %v1015 = vsub.f32 %v967, %v997
    %v1016 = vsub.f32 %v968, %v999
    %v1017 = vsub.f32 %v969, %v1001
    %v1018 = vmul.f32 %v1002, 1.442695
    %v1019 = vpow.pop %v1018
    %v1020 = vmul.f32 %v1003, 1.442695
    %v1021 = vpow.pop %v1020
    %v1022 = vmul.f32 %v1004, 1.442695
    %v1023 = vpow.pop %v1022
    %v1024 = vmul.f32 %v1005, 1.442695
    %v1025 = vpow.pop %v1024
    %v1026 = vmul.f32 %v1006, 1.442695
    %v1027 = vpow.pop %v1026
    %v1028 = vmul.f32 %v1007, 1.442695
    %v1029 = vpow.pop %v1028
    %v1030 = vmul.f32 %v1008, 1.442695
    %v1031 = vpow.pop %v1030
    %v1032 = vmul.f32 %v1009, 1.442695
    %v1033 = vpow.pop %v1032
    %v1034 = vmul.f32 %v1010, 1.442695
    %v1035 = vpow.pop %v1034
    %v1036 = vmul.f32 %v1011, 1.442695
    %v1037 = vpow.pop %v1036
    %v1038 = vmul.f32 %v1012, 1.442695
    %v1039 = vpow.pop %v1038
    %v1040 = vmul.f32 %v1013, 1.442695
    %v1041 = vpow.pop %v1040
    %v1042 = vmul.f32 %v1014, 1.442695
    %v1043 = vpow.pop %v1042
    %v1044 = vmul.f32 %v1015, 1.442695
    %v1045 = vpow.pop %v1044
    %v1046 = vmul.f32 %v1016, 1.442695
    %v1047 = vpow.pop %v1046
    %v1048 = vmul.f32 %v1017, 1.442695
    %v1049 = vpow.pop %v1048
    %1050 = vadd.xlane.f32.xlu0 %v1019
    %v1051 = vpop.xlane.xlu0 %1050
    %1052 = vadd.xlane.f32.xlu0 %v1021
    %v1053 = vpop.xlane.xlu0 %1052
    %1054 = vadd.xlane.f32.xlu0 %v1023
    %v1055 = vpop.xlane.xlu0 %1054
    %1056 = vadd.xlane.f32.xlu0 %v1025
    %v1057 = vpop.xlane.xlu0 %1056
    %1058 = vadd.xlane.f32.xlu0 %v1027
    %v1059 = vpop.xlane.xlu0 %1058
    %1060 = vadd.xlane.f32.xlu0 %v1029
    %v1061 = vpop.xlane.xlu0 %1060
    %1062 = vadd.xlane.f32.xlu0 %v1031
    %v1063 = vpop.xlane.xlu0 %1062
    %1064 = vadd.xlane.f32.xlu0 %v1033
    %v1065 = vpop.xlane.xlu0 %1064
    %1066 = vadd.xlane.f32.xlu0 %v1035
    %v1067 = vpop.xlane.xlu0 %1066
    %1068 = vadd.xlane.f32.xlu0 %v1037
    %v1069 = vpop.xlane.xlu0 %1068
    %1070 = vadd.xlane.f32.xlu0 %v1039
    %v1071 = vpop.xlane.xlu0 %1070
    %1072 = vadd.xlane.f32.xlu0 %v1041
    %v1073 = vpop.xlane.xlu0 %1072
    %1074 = vadd.xlane.f32.xlu0 %v1043
    %v1075 = vpop.xlane.xlu0 %1074
    %1076 = vadd.xlane.f32.xlu0 %v1045
    %v1077 = vpop.xlane.xlu0 %1076
    %1078 = vadd.xlane.f32.xlu0 %v1047
    %v1079 = vpop.xlane.xlu0 %1078
    %1080 = vadd.xlane.f32.xlu0 %v1049
    %v1081 = vpop.xlane.xlu0 %1080
    %v1082 = vrcp.pop %v1051
    %v1083 = vrcp.pop %v1053
    %v1084 = vrcp.pop %v1055
    %v1085 = vrcp.pop %v1057
    %v1086 = vrcp.pop %v1059
    %v1087 = vrcp.pop %v1061
    %v1088 = vrcp.pop %v1063
    %v1089 = vrcp.pop %v1065
    %v1090 = vrcp.pop %v1067
    %v1091 = vrcp.pop %v1069
    %v1092 = vrcp.pop %v1071
    %v1093 = vrcp.pop %v1073
    %v1094 = vrcp.pop %v1075
    %v1095 = vrcp.pop %v1077
    %v1096 = vrcp.pop %v1079
    %v1097 = vrcp.pop %v1081
    %v1098 = vmul.f32 %v1019, %v1082
    %v1099 = vmul.f32 %v1021, %v1083
    %v1100 = vmul.f32 %v1023, %v1084
    %v1101 = vmul.f32 %v1025, %v1085
    %v1102 = vmul.f32 %v1027, %v1086
    %v1103 = vmul.f32 %v1029, %v1087
    %v1104 = vmul.f32 %v1031, %v1088
    %v1105 = vmul.f32 %v1033, %v1089
    %v1106 = vmul.f32 %v1035, %v1090
    %v1107 = vmul.f32 %v1037, %v1091
    %v1108 = vmul.f32 %v1039, %v1092
    %v1109 = vmul.f32 %v1041, %v1093
    %v1110 = vmul.f32 %v1043, %v1094
    %v1111 = vmul.f32 %v1045, %v1095
    %v1112 = vmul.f32 %v1047, %v1096
    %v1113 = vmul.f32 %v1049, %v1097
    %v1114 = vpack.c.bf16 %v1099, %v1098
    %v1115 = vpack.c.bf16 %v1101, %v1100
    %v1116 = vpack.c.bf16 %v1103, %v1102
    %v1117 = vpack.c.bf16 %v1105, %v1104
    %v1118 = vpack.c.bf16 %v1107, %v1106
    %v1119 = vpack.c.bf16 %v1109, %v1108
    %v1120 = vpack.c.bf16 %v1111, %v1110
    %v1121 = vpack.c.bf16 %v1113, %v1112
    %1122 = vrot.lane.b32.xlu0 %v422, 56
    %v1123 = vpop.permute.xlu0 %1122
    %1124 = vrot.lane.b32.xlu0 %v423, 56
    %v1125 = vpop.permute.xlu0 %1124
    %1126 = vrot.lane.b32.xlu0 %v424, 56
    %v1127 = vpop.permute.xlu0 %1126
    %1128 = vrot.lane.b32.xlu0 %v425, 56
    %v1129 = vpop.permute.xlu0 %1128
    %1130 = vrot.lane.b32.xlu0 %v426, 56
    %v1131 = vpop.permute.xlu0 %1130
    %1132 = vrot.lane.b32.xlu0 %v427, 56
    %v1133 = vpop.permute.xlu0 %1132
    %1134 = vrot.lane.b32.xlu0 %v428, 56
    %v1135 = vpop.permute.xlu0 %1134
    %1136 = vrot.lane.b32.xlu0 %v429, 56
    %v1137 = vpop.permute.xlu0 %1136
    %1146 = vmatpush.bf16.msra.mxu0 %v1137
    %1147 = vmatpush.bf16.msra.mxu0 %v1135
    %1148 = vmatpush.bf16.msra.mxu0 %v1133
    %1149 = vmatpush.bf16.msra.mxu0 %v1131
    %1150 = vmatpush.bf16.msra.mxu0 %v1129
    %1151 = vmatpush.bf16.msra.mxu0 %v1127
    %1152 = vmatpush.bf16.msra.mxu0 %v1125
    %1153 = vmatpush.bf16.msra.mxu0 %v1123
    %1154 = vmatmul.bf16.gmra.mxu0 %v1114
    %v1155 = vpop.f32.mrf.mxu0
    %v1156 = vadd.f32 0.0, %v1155
    %v1157 = vpop.f32.mrf.mxu0
    %v1158 = vadd.f32 0.0, %v1157
    %1159 = vmatmul.bf16.gmra.mxu0 %v1115
    %v1160 = vpop.f32.mrf.mxu0
    %v1161 = vadd.f32 0.0, %v1160
    %v1162 = vpop.f32.mrf.mxu0
    %v1163 = vadd.f32 0.0, %v1162
    %1164 = vmatmul.bf16.gmra.mxu0 %v1116
    %v1165 = vpop.f32.mrf.mxu0
    %v1166 = vadd.f32 0.0, %v1165
    %v1167 = vpop.f32.mrf.mxu0
    %v1168 = vadd.f32 0.0, %v1167
    %1169 = vmatmul.bf16.gmra.mxu0 %v1117
    %v1170 = vpop.f32.mrf.mxu0
    %v1171 = vadd.f32 0.0, %v1170
    %v1172 = vpop.f32.mrf.mxu0
    %v1173 = vadd.f32 0.0, %v1172
    %1174 = vmatmul.bf16.gmra.mxu0 %v1118
    %v1175 = vpop.f32.mrf.mxu0
    %v1176 = vadd.f32 0.0, %v1175
    %v1177 = vpop.f32.mrf.mxu0
    %v1178 = vadd.f32 0.0, %v1177
    %1179 = vmatmul.bf16.gmra.mxu0 %v1119
    %v1180 = vpop.f32.mrf.mxu0
    %v1181 = vadd.f32 0.0, %v1180
    %v1182 = vpop.f32.mrf.mxu0
    %v1183 = vadd.f32 0.0, %v1182
    %1184 = vmatmul.bf16.gmra.mxu0 %v1120
    %v1185 = vpop.f32.mrf.mxu0
    %v1186 = vadd.f32 0.0, %v1185
    %v1187 = vpop.f32.mrf.mxu0
    %v1188 = vadd.f32 0.0, %v1187
    %1189 = vmatmul.bf16.gmra.mxu0 %v1121
    %v1190 = vpop.f32.mrf.mxu0
    %v1191 = vadd.f32 0.0, %v1190
    %v1192 = vpop.f32.mrf.mxu0
    %v1193 = vadd.f32 0.0, %v1192
    %1194 = vdwg.mxu0
    %v1196 = vsel %vm454, %v1156, 0
    %v1199 = vsel %vm454, %v1158, 0
    %v1202 = vsel %vm454, %v1161, 0
    %v1205 = vsel %vm454, %v1163, 0
    %v1208 = vsel %vm454, %v1166, 0
    %v1211 = vsel %vm454, %v1168, 0
    %v1214 = vsel %vm454, %v1171, 0
    %v1217 = vsel %vm454, %v1173, 0
    %v1220 = vsel %vm454, %v1176, 0
    %v1223 = vsel %vm454, %v1178, 0
    %v1226 = vsel %vm454, %v1181, 0
    %v1229 = vsel %vm454, %v1183, 0
    %v1232 = vsel %vm454, %v1186, 0
    %v1235 = vsel %vm454, %v1188, 0
    %v1238 = vsel %vm454, %v1191, 0
    %v1241 = vsel %vm454, %v1193, 0
    %1243 = vmatpush.msra.mxu0 0.0
    %1244 = vmatpush.msra.mxu0 0.0
    %1245 = vmatpush.msra.mxu0 0.0
    %1246 = vmatpush.msra.mxu0 0.0
    %1247 = vmatpush.msra.mxu0 0.0
    %1248 = vmatpush.msra.mxu0 0.0
    %1249 = vmatpush.msra.mxu0 0.0
    %1250 = vmatpush.msra.mxu0 0.0
    %1251 = vmatpush.msra.mxu0 0.0
    %1252 = vmatpush.msra.mxu0 0.0
    %1253 = vmatpush.msra.mxu0 0.0
    %1254 = vmatpush.msra.mxu0 0.0
    %1255 = vmatpush.msra.mxu0 0.0
    %1256 = vmatpush.msra.mxu0 0.0
    %1257 = vmatpush.msra.mxu0 0.0
    %1258 = vmatpush.msra.mxu0 %v419
    %1259 = vmatmul.f32.gmra.mxu0 %v1196
    %v1260 = vpop.f32.mrf.mxu0
    %v1261 = vadd.f32 0.0, %v1260
    %1262 = vmatmul.f32.gmra.mxu0 %v1199
    %v1263 = vpop.f32.mrf.mxu0
    %v1264 = vadd.f32 0.0, %v1263
    %1265 = vmatmul.f32.gmra.mxu0 %v1202
    %v1266 = vpop.f32.mrf.mxu0
    %v1267 = vadd.f32 0.0, %v1266
    %1268 = vmatmul.f32.gmra.mxu0 %v1205
    %v1269 = vpop.f32.mrf.mxu0
    %v1270 = vadd.f32 0.0, %v1269
    %1271 = vmatmul.f32.gmra.mxu0 %v1208
    %v1272 = vpop.f32.mrf.mxu0
    %v1273 = vadd.f32 0.0, %v1272
    %1274 = vmatmul.f32.gmra.mxu0 %v1211
    %v1275 = vpop.f32.mrf.mxu0
    %v1276 = vadd.f32 0.0, %v1275
    %1277 = vmatmul.f32.gmra.mxu0 %v1214
    %v1278 = vpop.f32.mrf.mxu0
    %v1279 = vadd.f32 0.0, %v1278
    %1280 = vmatmul.f32.gmra.mxu0 %v1217
    %v1281 = vpop.f32.mrf.mxu0
    %v1282 = vadd.f32 0.0, %v1281
    %1283 = vmatmul.f32.gmra.mxu0 %v1220
    %v1284 = vpop.f32.mrf.mxu0
    %v1285 = vadd.f32 0.0, %v1284
    %1286 = vmatmul.f32.gmra.mxu0 %v1223
    %v1287 = vpop.f32.mrf.mxu0
    %v1288 = vadd.f32 0.0, %v1287
    %1289 = vmatmul.f32.gmra.mxu0 %v1226
    %v1290 = vpop.f32.mrf.mxu0
    %v1291 = vadd.f32 0.0, %v1290
    %1292 = vmatmul.f32.gmra.mxu0 %v1229
    %v1293 = vpop.f32.mrf.mxu0
    %v1294 = vadd.f32 0.0, %v1293
    %1295 = vmatmul.f32.gmra.mxu0 %v1232
    %v1296 = vpop.f32.mrf.mxu0
    %v1297 = vadd.f32 0.0, %v1296
    %1298 = vmatmul.f32.gmra.mxu0 %v1235
    %v1299 = vpop.f32.mrf.mxu0
    %v1300 = vadd.f32 0.0, %v1299
    %1301 = vmatmul.f32.gmra.mxu0 %v1238
    %v1302 = vpop.f32.mrf.mxu0
    %v1303 = vadd.f32 0.0, %v1302
    %1304 = vmatmul.f32.gmra.mxu0 %v1241
    %v1305 = vpop.f32.mrf.mxu0
    %v1306 = vadd.f32 0.0, %v1305
    %1307 = vdwg.mxu0
    %v1309 = vsel %vm454, %v770, 0
    %v1312 = vsel %vm454, %v772, 0
    %v1315 = vsel %vm454, %v775, 0
    %v1318 = vsel %vm454, %v777, 0
    %v1321 = vsel %vm454, %v780, 0
    %v1324 = vsel %vm454, %v782, 0
    %v1327 = vsel %vm454, %v785, 0
    %v1330 = vsel %vm454, %v787, 0
    %v1333 = vsel %vm454, %v790, 0
    %v1336 = vsel %vm454, %v792, 0
    %v1339 = vsel %vm454, %v795, 0
    %v1342 = vsel %vm454, %v797, 0
    %v1345 = vsel %vm454, %v800, 0
    %v1348 = vsel %vm454, %v802, 0
    %v1351 = vsel %vm454, %v805, 0
    %v1354 = vsel %vm454, %v807, 0
    %1356 = vmatpush.msra.mxu0 0.0
    %1357 = vmatpush.msra.mxu0 0.0
    %1358 = vmatpush.msra.mxu0 0.0
    %1359 = vmatpush.msra.mxu0 0.0
    %1360 = vmatpush.msra.mxu0 0.0
    %1361 = vmatpush.msra.mxu0 0.0
    %1362 = vmatpush.msra.mxu0 0.0
    %1363 = vmatpush.msra.mxu0 0.0
    %1364 = vmatpush.msra.mxu0 0.0
    %1365 = vmatpush.msra.mxu0 0.0
    %1366 = vmatpush.msra.mxu0 0.0
    %1367 = vmatpush.msra.mxu0 0.0
    %1368 = vmatpush.msra.mxu0 0.0
    %1369 = vmatpush.msra.mxu0 0.0
    %1370 = vmatpush.msra.mxu0 0.0
    %1371 = vmatpush.msra.mxu0 %v418
    %1372 = vmatmul.f32.gmra.mxu0 %v1309
    %v1373 = vpop.f32.mrf.mxu0
    %v1374 = vadd.f32 %v1261, %v1373
    %1375 = vmatmul.f32.gmra.mxu0 %v1312
    %v1376 = vpop.f32.mrf.mxu0
    %v1377 = vadd.f32 %v1264, %v1376
    %1378 = vmatmul.f32.gmra.mxu0 %v1315
    %v1379 = vpop.f32.mrf.mxu0
    %v1380 = vadd.f32 %v1267, %v1379
    %1381 = vmatmul.f32.gmra.mxu0 %v1318
    %v1382 = vpop.f32.mrf.mxu0
    %v1383 = vadd.f32 %v1270, %v1382
    %1384 = vmatmul.f32.gmra.mxu0 %v1321
    %v1385 = vpop.f32.mrf.mxu0
    %v1386 = vadd.f32 %v1273, %v1385
    %1387 = vmatmul.f32.gmra.mxu0 %v1324
    %v1388 = vpop.f32.mrf.mxu0
    %v1389 = vadd.f32 %v1276, %v1388
    %1390 = vmatmul.f32.gmra.mxu0 %v1327
    %v1391 = vpop.f32.mrf.mxu0
    %v1392 = vadd.f32 %v1279, %v1391
    %1393 = vmatmul.f32.gmra.mxu0 %v1330
    %v1394 = vpop.f32.mrf.mxu0
    %v1395 = vadd.f32 %v1282, %v1394
    %1396 = vmatmul.f32.gmra.mxu0 %v1333
    %v1397 = vpop.f32.mrf.mxu0
    %v1398 = vadd.f32 %v1285, %v1397
    %1399 = vmatmul.f32.gmra.mxu0 %v1336
    %v1400 = vpop.f32.mrf.mxu0
    %v1401 = vadd.f32 %v1288, %v1400
    %1402 = vmatmul.f32.gmra.mxu0 %v1339
    %v1403 = vpop.f32.mrf.mxu0
    %v1404 = vadd.f32 %v1291, %v1403
    %1405 = vmatmul.f32.gmra.mxu0 %v1342
    %v1406 = vpop.f32.mrf.mxu0
    %v1407 = vadd.f32 %v1294, %v1406
    %1408 = vmatmul.f32.gmra.mxu0 %v1345
    %v1409 = vpop.f32.mrf.mxu0
    %v1410 = vadd.f32 %v1297, %v1409
    %1411 = vmatmul.f32.gmra.mxu0 %v1348
    %v1412 = vpop.f32.mrf.mxu0
    %v1413 = vadd.f32 %v1300, %v1412
    %1414 = vmatmul.f32.gmra.mxu0 %v1351
    %v1415 = vpop.f32.mrf.mxu0
    %v1416 = vadd.f32 %v1303, %v1415
    %1417 = vmatmul.f32.gmra.mxu0 %v1354
    %v1418 = vpop.f32.mrf.mxu0
    %v1419 = vadd.f32 %v1306, %v1418
    %1420 = vdwg.mxu0
    %1421 = vrot.lane.b32.xlu0 %v422, 112
    %v1422 = vpop.permute.xlu0 %1421
    %1423 = vrot.lane.b32.xlu0 %v423, 112
    %v1424 = vpop.permute.xlu0 %1423
    %1425 = vrot.lane.b32.xlu0 %v424, 112
    %v1426 = vpop.permute.xlu0 %1425
    %1427 = vrot.lane.b32.xlu0 %v425, 112
    %v1428 = vpop.permute.xlu0 %1427
    %1429 = vrot.lane.b32.xlu0 %v426, 112
    %v1430 = vpop.permute.xlu0 %1429
    %1431 = vrot.lane.b32.xlu0 %v427, 112
    %v1432 = vpop.permute.xlu0 %1431
    %1433 = vrot.lane.b32.xlu0 %v428, 112
    %v1434 = vpop.permute.xlu0 %1433
    %1435 = vrot.lane.b32.xlu0 %v429, 112
    %v1436 = vpop.permute.xlu0 %1435
    %1437 = vrot.lane.b32.xlu0 %v422, 80
    %v1438 = vpop.permute.xlu0 %1437
    %1439 = vrot.lane.b32.xlu0 %v423, 80
    %v1440 = vpop.permute.xlu0 %1439
    %1441 = vrot.lane.b32.xlu0 %v424, 80
    %v1442 = vpop.permute.xlu0 %1441
    %1443 = vrot.lane.b32.xlu0 %v425, 80
    %v1444 = vpop.permute.xlu0 %1443
    %1445 = vrot.lane.b32.xlu0 %v426, 80
    %v1446 = vpop.permute.xlu0 %1445
    %1447 = vrot.lane.b32.xlu0 %v427, 80
    %v1448 = vpop.permute.xlu0 %1447
    %1449 = vrot.lane.b32.xlu0 %v428, 80
    %v1450 = vpop.permute.xlu0 %1449
    %1451 = vrot.lane.b32.xlu0 %v429, 80
    %v1452 = vpop.permute.xlu0 %1451
    %v1454 = vsel %vm454, %v1422, 0
    %v1457 = vsel %vm454, %v1424, 0
    %v1460 = vsel %vm454, %v1426, 0
    %v1463 = vsel %vm454, %v1428, 0
    %v1466 = vsel %vm454, %v1430, 0
    %v1469 = vsel %vm454, %v1432, 0
    %v1472 = vsel %vm454, %v1434, 0
    %v1475 = vsel %vm454, %v1436, 0
    %v1478 = vsel %vm454, %v1438, 0
    %v1481 = vsel %vm454, %v1440, 0
    %v1484 = vsel %vm454, %v1442, 0
    %v1487 = vsel %vm454, %v1444, 0
    %v1490 = vsel %vm454, %v1446, 0
    %v1493 = vsel %vm454, %v1448, 0
    %v1496 = vsel %vm454, %v1450, 0
    %v1499 = vsel %vm454, %v1452, 0
    %1501 = vmatpush.bf16.xpose.msra.mxu0 %v1499
    %1502 = vmatpush.bf16.xpose.msra.mxu0 %v1496
    %1503 = vmatpush.bf16.xpose.msra.mxu0 %v1493
    %1504 = vmatpush.bf16.xpose.msra.mxu0 %v1490
    %1505 = vmatpush.bf16.xpose.msra.mxu0 %v1487
    %1506 = vmatpush.bf16.xpose.msra.mxu0 %v1484
    %1507 = vmatpush.bf16.xpose.msra.mxu0 %v1481
    %1508 = vmatpush.bf16.xpose.msra.mxu0 %v1478
    %1509 = vmatmul.bf16.gmra.mxu0 %v1454
    %v1510 = vpop.f32.mrf.mxu0
    %v1511 = vadd.f32 0.0, %v1510
    %v1512 = vpop.f32.mrf.mxu0
    %v1513 = vadd.f32 0.0, %v1512
    %1514 = vmatmul.bf16.gmra.mxu0 %v1457
    %v1515 = vpop.f32.mrf.mxu0
    %v1516 = vadd.f32 0.0, %v1515
    %v1517 = vpop.f32.mrf.mxu0
    %v1518 = vadd.f32 0.0, %v1517
    %1519 = vmatmul.bf16.gmra.mxu0 %v1460
    %v1520 = vpop.f32.mrf.mxu0
    %v1521 = vadd.f32 0.0, %v1520
    %v1522 = vpop.f32.mrf.mxu0
    %v1523 = vadd.f32 0.0, %v1522
    %1524 = vmatmul.bf16.gmra.mxu0 %v1463
    %v1525 = vpop.f32.mrf.mxu0
    %v1526 = vadd.f32 0.0, %v1525
    %v1527 = vpop.f32.mrf.mxu0
    %v1528 = vadd.f32 0.0, %v1527
    %1529 = vmatmul.bf16.gmra.mxu0 %v1466
    %v1530 = vpop.f32.mrf.mxu0
    %v1531 = vadd.f32 0.0, %v1530
    %v1532 = vpop.f32.mrf.mxu0
    %v1533 = vadd.f32 0.0, %v1532
    %1534 = vmatmul.bf16.gmra.mxu0 %v1469
    %v1535 = vpop.f32.mrf.mxu0
    %v1536 = vadd.f32 0.0, %v1535
    %v1537 = vpop.f32.mrf.mxu0
    %v1538 = vadd.f32 0.0, %v1537
    %1539 = vmatmul.bf16.gmra.mxu0 %v1472
    %v1540 = vpop.f32.mrf.mxu0
    %v1541 = vadd.f32 0.0, %v1540
    %v1542 = vpop.f32.mrf.mxu0
    %v1543 = vadd.f32 0.0, %v1542
    %1544 = vmatmul.bf16.gmra.mxu0 %v1475
    %v1545 = vpop.f32.mrf.mxu0
    %v1546 = vadd.f32 0.0, %v1545
    %v1547 = vpop.f32.mrf.mxu0
    %v1548 = vadd.f32 0.0, %v1547
    %1549 = vdwg.mxu0
    %v1550 = vmul.f32 %v1511, 0.35355338
    %v1551 = vmul.f32 %v1513, 0.35355338
    %v1552 = vmul.f32 %v1516, 0.35355338
    %v1553 = vmul.f32 %v1518, 0.35355338
    %v1554 = vmul.f32 %v1521, 0.35355338
    %v1555 = vmul.f32 %v1523, 0.35355338
    %v1556 = vmul.f32 %v1526, 0.35355338
    %v1557 = vmul.f32 %v1528, 0.35355338
    %v1558 = vmul.f32 %v1531, 0.35355338
    %v1559 = vmul.f32 %v1533, 0.35355338
    %v1560 = vmul.f32 %v1536, 0.35355338
    %v1561 = vmul.f32 %v1538, 0.35355338
    %v1562 = vmul.f32 %v1541, 0.35355338
    %v1563 = vmul.f32 %v1543, 0.35355338
    %v1564 = vmul.f32 %v1546, 0.35355338
    %v1565 = vmul.f32 %v1548, 0.35355338
    %v1566 = vsel %vm402, %v1550, -1e+30
    %v1567 = vsel %vm403, %v1551, -1e+30
    %v1568 = vsel %vm404, %v1552, -1e+30
    %v1569 = vsel %vm405, %v1553, -1e+30
    %v1570 = vsel %vm406, %v1554, -1e+30
    %v1571 = vsel %vm407, %v1555, -1e+30
    %v1572 = vsel %vm408, %v1556, -1e+30
    %v1573 = vsel %vm409, %v1557, -1e+30
    %v1574 = vsel %vm410, %v1558, -1e+30
    %v1575 = vsel %vm411, %v1559, -1e+30
    %v1576 = vsel %vm412, %v1560, -1e+30
    %v1577 = vsel %vm413, %v1561, -1e+30
    %v1578 = vsel %vm414, %v1562, -1e+30
    %v1579 = vsel %vm415, %v1563, -1e+30
    %v1580 = vsel %vm416, %v1564, -1e+30
    %v1581 = vsel %vm417, %v1565, -1e+30
    %1582 = vmax.xlane.f32.xlu0 %v1566
    %v1583 = vpop.xlane.xlu0 %1582
    %1584 = vmax.xlane.f32.xlu0 %v1567
    %v1585 = vpop.xlane.xlu0 %1584
    %1586 = vmax.xlane.f32.xlu0 %v1568
    %v1587 = vpop.xlane.xlu0 %1586
    %1588 = vmax.xlane.f32.xlu0 %v1569
    %v1589 = vpop.xlane.xlu0 %1588
    %1590 = vmax.xlane.f32.xlu0 %v1570
    %v1591 = vpop.xlane.xlu0 %1590
    %1592 = vmax.xlane.f32.xlu0 %v1571
    %v1593 = vpop.xlane.xlu0 %1592
    %1594 = vmax.xlane.f32.xlu0 %v1572
    %v1595 = vpop.xlane.xlu0 %1594
    %1596 = vmax.xlane.f32.xlu0 %v1573
    %v1597 = vpop.xlane.xlu0 %1596
    %1598 = vmax.xlane.f32.xlu0 %v1574
    %v1599 = vpop.xlane.xlu0 %1598
    %1600 = vmax.xlane.f32.xlu0 %v1575
    %v1601 = vpop.xlane.xlu0 %1600
    %1602 = vmax.xlane.f32.xlu0 %v1576
    %v1603 = vpop.xlane.xlu0 %1602
    %1604 = vmax.xlane.f32.xlu0 %v1577
    %v1605 = vpop.xlane.xlu0 %1604
    %1606 = vmax.xlane.f32.xlu0 %v1578
    %v1607 = vpop.xlane.xlu0 %1606
    %1608 = vmax.xlane.f32.xlu0 %v1579
    %v1609 = vpop.xlane.xlu0 %1608
    %1610 = vmax.xlane.f32.xlu0 %v1580
    %v1611 = vpop.xlane.xlu0 %1610
    %1612 = vmax.xlane.f32.xlu0 %v1581
    %v1613 = vpop.xlane.xlu0 %1612
    %v1614 = vsub.f32 %v1566, %v1583
    %v1615 = vsub.f32 %v1567, %v1585
    %v1616 = vsub.f32 %v1568, %v1587
    %v1617 = vsub.f32 %v1569, %v1589
    %v1618 = vsub.f32 %v1570, %v1591
    %v1619 = vsub.f32 %v1571, %v1593
    %v1620 = vsub.f32 %v1572, %v1595
    %v1621 = vsub.f32 %v1573, %v1597
    %v1622 = vsub.f32 %v1574, %v1599
    %v1623 = vsub.f32 %v1575, %v1601
    %v1624 = vsub.f32 %v1576, %v1603
    %v1625 = vsub.f32 %v1577, %v1605
    %v1626 = vsub.f32 %v1578, %v1607
    %v1627 = vsub.f32 %v1579, %v1609
    %v1628 = vsub.f32 %v1580, %v1611
    %v1629 = vsub.f32 %v1581, %v1613
    %v1630 = vmul.f32 %v1614, 1.442695
    %v1631 = vpow.pop %v1630
    %v1632 = vmul.f32 %v1615, 1.442695
    %v1633 = vpow.pop %v1632
    %v1634 = vmul.f32 %v1616, 1.442695
    %v1635 = vpow.pop %v1634
    %v1636 = vmul.f32 %v1617, 1.442695
    %v1637 = vpow.pop %v1636
    %v1638 = vmul.f32 %v1618, 1.442695
    %v1639 = vpow.pop %v1638
    %v1640 = vmul.f32 %v1619, 1.442695
    %v1641 = vpow.pop %v1640
    %v1642 = vmul.f32 %v1620, 1.442695
    %v1643 = vpow.pop %v1642
    %v1644 = vmul.f32 %v1621, 1.442695
    %v1645 = vpow.pop %v1644
    %v1646 = vmul.f32 %v1622, 1.442695
    %v1647 = vpow.pop %v1646
    %v1648 = vmul.f32 %v1623, 1.442695
    %v1649 = vpow.pop %v1648
    %v1650 = vmul.f32 %v1624, 1.442695
    %v1651 = vpow.pop %v1650
    %v1652 = vmul.f32 %v1625, 1.442695
    %v1653 = vpow.pop %v1652
    %v1654 = vmul.f32 %v1626, 1.442695
    %v1655 = vpow.pop %v1654
    %v1656 = vmul.f32 %v1627, 1.442695
    %v1657 = vpow.pop %v1656
    %v1658 = vmul.f32 %v1628, 1.442695
    %v1659 = vpow.pop %v1658
    %v1660 = vmul.f32 %v1629, 1.442695
    %v1661 = vpow.pop %v1660
    %1662 = vadd.xlane.f32.xlu0 %v1631
    %v1663 = vpop.xlane.xlu0 %1662
    %1664 = vadd.xlane.f32.xlu0 %v1633
    %v1665 = vpop.xlane.xlu0 %1664
    %1666 = vadd.xlane.f32.xlu0 %v1635
    %v1667 = vpop.xlane.xlu0 %1666
    %1668 = vadd.xlane.f32.xlu0 %v1637
    %v1669 = vpop.xlane.xlu0 %1668
    %1670 = vadd.xlane.f32.xlu0 %v1639
    %v1671 = vpop.xlane.xlu0 %1670
    %1672 = vadd.xlane.f32.xlu0 %v1641
    %v1673 = vpop.xlane.xlu0 %1672
    %1674 = vadd.xlane.f32.xlu0 %v1643
    %v1675 = vpop.xlane.xlu0 %1674
    %1676 = vadd.xlane.f32.xlu0 %v1645
    %v1677 = vpop.xlane.xlu0 %1676
    %1678 = vadd.xlane.f32.xlu0 %v1647
    %v1679 = vpop.xlane.xlu0 %1678
    %1680 = vadd.xlane.f32.xlu0 %v1649
    %v1681 = vpop.xlane.xlu0 %1680
    %1682 = vadd.xlane.f32.xlu0 %v1651
    %v1683 = vpop.xlane.xlu0 %1682
    %1684 = vadd.xlane.f32.xlu0 %v1653
    %v1685 = vpop.xlane.xlu0 %1684
    %1686 = vadd.xlane.f32.xlu0 %v1655
    %v1687 = vpop.xlane.xlu0 %1686
    %1688 = vadd.xlane.f32.xlu0 %v1657
    %v1689 = vpop.xlane.xlu0 %1688
    %1690 = vadd.xlane.f32.xlu0 %v1659
    %v1691 = vpop.xlane.xlu0 %1690
    %1692 = vadd.xlane.f32.xlu0 %v1661
    %v1693 = vpop.xlane.xlu0 %1692
    %v1694 = vrcp.pop %v1663
    %v1695 = vrcp.pop %v1665
    %v1696 = vrcp.pop %v1667
    %v1697 = vrcp.pop %v1669
    %v1698 = vrcp.pop %v1671
    %v1699 = vrcp.pop %v1673
    %v1700 = vrcp.pop %v1675
    %v1701 = vrcp.pop %v1677
    %v1702 = vrcp.pop %v1679
    %v1703 = vrcp.pop %v1681
    %v1704 = vrcp.pop %v1683
    %v1705 = vrcp.pop %v1685
    %v1706 = vrcp.pop %v1687
    %v1707 = vrcp.pop %v1689
    %v1708 = vrcp.pop %v1691
    %v1709 = vrcp.pop %v1693
    %v1710 = vmul.f32 %v1631, %v1694
    %v1711 = vmul.f32 %v1633, %v1695
    %v1712 = vmul.f32 %v1635, %v1696
    %v1713 = vmul.f32 %v1637, %v1697
    %v1714 = vmul.f32 %v1639, %v1698
    %v1715 = vmul.f32 %v1641, %v1699
    %v1716 = vmul.f32 %v1643, %v1700
    %v1717 = vmul.f32 %v1645, %v1701
    %v1718 = vmul.f32 %v1647, %v1702
    %v1719 = vmul.f32 %v1649, %v1703
    %v1720 = vmul.f32 %v1651, %v1704
    %v1721 = vmul.f32 %v1653, %v1705
    %v1722 = vmul.f32 %v1655, %v1706
    %v1723 = vmul.f32 %v1657, %v1707
    %v1724 = vmul.f32 %v1659, %v1708
    %v1725 = vmul.f32 %v1661, %v1709
    %v1726 = vpack.c.bf16 %v1711, %v1710
    %v1727 = vpack.c.bf16 %v1713, %v1712
    %v1728 = vpack.c.bf16 %v1715, %v1714
    %v1729 = vpack.c.bf16 %v1717, %v1716
    %v1730 = vpack.c.bf16 %v1719, %v1718
    %v1731 = vpack.c.bf16 %v1721, %v1720
    %v1732 = vpack.c.bf16 %v1723, %v1722
    %v1733 = vpack.c.bf16 %v1725, %v1724
    %1734 = vrot.lane.b32.xlu0 %v422, 48
    %v1735 = vpop.permute.xlu0 %1734
    %1736 = vrot.lane.b32.xlu0 %v423, 48
    %v1737 = vpop.permute.xlu0 %1736
    %1738 = vrot.lane.b32.xlu0 %v424, 48
    %v1739 = vpop.permute.xlu0 %1738
    %1740 = vrot.lane.b32.xlu0 %v425, 48
    %v1741 = vpop.permute.xlu0 %1740
    %1742 = vrot.lane.b32.xlu0 %v426, 48
    %v1743 = vpop.permute.xlu0 %1742
    %1744 = vrot.lane.b32.xlu0 %v427, 48
    %v1745 = vpop.permute.xlu0 %1744
    %1746 = vrot.lane.b32.xlu0 %v428, 48
    %v1747 = vpop.permute.xlu0 %1746
    %1748 = vrot.lane.b32.xlu0 %v429, 48
    %v1749 = vpop.permute.xlu0 %1748
    %1758 = vmatpush.bf16.msra.mxu0 %v1749
    %1759 = vmatpush.bf16.msra.mxu0 %v1747
    %1760 = vmatpush.bf16.msra.mxu0 %v1745
    %1761 = vmatpush.bf16.msra.mxu0 %v1743
    %1762 = vmatpush.bf16.msra.mxu0 %v1741
    %1763 = vmatpush.bf16.msra.mxu0 %v1739
    %1764 = vmatpush.bf16.msra.mxu0 %v1737
    %1765 = vmatpush.bf16.msra.mxu0 %v1735
    %1766 = vmatmul.bf16.gmra.mxu0 %v1726
    %v1767 = vpop.f32.mrf.mxu0
    %v1768 = vadd.f32 0.0, %v1767
    %v1769 = vpop.f32.mrf.mxu0
    %v1770 = vadd.f32 0.0, %v1769
    %1771 = vmatmul.bf16.gmra.mxu0 %v1727
    %v1772 = vpop.f32.mrf.mxu0
    %v1773 = vadd.f32 0.0, %v1772
    %v1774 = vpop.f32.mrf.mxu0
    %v1775 = vadd.f32 0.0, %v1774
    %1776 = vmatmul.bf16.gmra.mxu0 %v1728
    %v1777 = vpop.f32.mrf.mxu0
    %v1778 = vadd.f32 0.0, %v1777
    %v1779 = vpop.f32.mrf.mxu0
    %v1780 = vadd.f32 0.0, %v1779
    %1781 = vmatmul.bf16.gmra.mxu0 %v1729
    %v1782 = vpop.f32.mrf.mxu0
    %v1783 = vadd.f32 0.0, %v1782
    %v1784 = vpop.f32.mrf.mxu0
    %v1785 = vadd.f32 0.0, %v1784
    %1786 = vmatmul.bf16.gmra.mxu0 %v1730
    %v1787 = vpop.f32.mrf.mxu0
    %v1788 = vadd.f32 0.0, %v1787
    %v1789 = vpop.f32.mrf.mxu0
    %v1790 = vadd.f32 0.0, %v1789
    %1791 = vmatmul.bf16.gmra.mxu0 %v1731
    %v1792 = vpop.f32.mrf.mxu0
    %v1793 = vadd.f32 0.0, %v1792
    %v1794 = vpop.f32.mrf.mxu0
    %v1795 = vadd.f32 0.0, %v1794
    %1796 = vmatmul.bf16.gmra.mxu0 %v1732
    %v1797 = vpop.f32.mrf.mxu0
    %v1798 = vadd.f32 0.0, %v1797
    %v1799 = vpop.f32.mrf.mxu0
    %v1800 = vadd.f32 0.0, %v1799
    %1801 = vmatmul.bf16.gmra.mxu0 %v1733
    %v1802 = vpop.f32.mrf.mxu0
    %v1803 = vadd.f32 0.0, %v1802
    %v1804 = vpop.f32.mrf.mxu0
    %v1805 = vadd.f32 0.0, %v1804
    %1806 = vdwg.mxu0
    %v1808 = vsel %vm454, %v1768, 0
    %v1811 = vsel %vm454, %v1770, 0
    %v1814 = vsel %vm454, %v1773, 0
    %v1817 = vsel %vm454, %v1775, 0
    %v1820 = vsel %vm454, %v1778, 0
    %v1823 = vsel %vm454, %v1780, 0
    %v1826 = vsel %vm454, %v1783, 0
    %v1829 = vsel %vm454, %v1785, 0
    %v1832 = vsel %vm454, %v1788, 0
    %v1835 = vsel %vm454, %v1790, 0
    %v1838 = vsel %vm454, %v1793, 0
    %v1841 = vsel %vm454, %v1795, 0
    %v1844 = vsel %vm454, %v1798, 0
    %v1847 = vsel %vm454, %v1800, 0
    %v1850 = vsel %vm454, %v1803, 0
    %v1853 = vsel %vm454, %v1805, 0
    %1855 = vmatpush.msra.mxu0 0.0
    %1856 = vmatpush.msra.mxu0 0.0
    %1857 = vmatpush.msra.mxu0 0.0
    %1858 = vmatpush.msra.mxu0 0.0
    %1859 = vmatpush.msra.mxu0 0.0
    %1860 = vmatpush.msra.mxu0 0.0
    %1861 = vmatpush.msra.mxu0 0.0
    %1862 = vmatpush.msra.mxu0 0.0
    %1863 = vmatpush.msra.mxu0 0.0
    %1864 = vmatpush.msra.mxu0 0.0
    %1865 = vmatpush.msra.mxu0 0.0
    %1866 = vmatpush.msra.mxu0 0.0
    %1867 = vmatpush.msra.mxu0 0.0
    %1868 = vmatpush.msra.mxu0 0.0
    %1869 = vmatpush.msra.mxu0 0.0
    %1870 = vmatpush.msra.mxu0 %v420
    %1871 = vmatmul.f32.gmra.mxu0 %v1808
    %v1872 = vpop.f32.mrf.mxu0
    %v1873 = vadd.f32 0.0, %v1872
    %1874 = vmatmul.f32.gmra.mxu0 %v1811
    %v1875 = vpop.f32.mrf.mxu0
    %v1876 = vadd.f32 0.0, %v1875
    %1877 = vmatmul.f32.gmra.mxu0 %v1814
    %v1878 = vpop.f32.mrf.mxu0
    %v1879 = vadd.f32 0.0, %v1878
    %1880 = vmatmul.f32.gmra.mxu0 %v1817
    %v1881 = vpop.f32.mrf.mxu0
    %v1882 = vadd.f32 0.0, %v1881
    %1883 = vmatmul.f32.gmra.mxu0 %v1820
    %v1884 = vpop.f32.mrf.mxu0
    %v1885 = vadd.f32 0.0, %v1884
    %1886 = vmatmul.f32.gmra.mxu0 %v1823
    %v1887 = vpop.f32.mrf.mxu0
    %v1888 = vadd.f32 0.0, %v1887
    %1889 = vmatmul.f32.gmra.mxu0 %v1826
    %v1890 = vpop.f32.mrf.mxu0
    %v1891 = vadd.f32 0.0, %v1890
    %1892 = vmatmul.f32.gmra.mxu0 %v1829
    %v1893 = vpop.f32.mrf.mxu0
    %v1894 = vadd.f32 0.0, %v1893
    %1895 = vmatmul.f32.gmra.mxu0 %v1832
    %v1896 = vpop.f32.mrf.mxu0
    %v1897 = vadd.f32 0.0, %v1896
    %1898 = vmatmul.f32.gmra.mxu0 %v1835
    %v1899 = vpop.f32.mrf.mxu0
    %v1900 = vadd.f32 0.0, %v1899
    %1901 = vmatmul.f32.gmra.mxu0 %v1838
    %v1902 = vpop.f32.mrf.mxu0
    %v1903 = vadd.f32 0.0, %v1902
    %1904 = vmatmul.f32.gmra.mxu0 %v1841
    %v1905 = vpop.f32.mrf.mxu0
    %v1906 = vadd.f32 0.0, %v1905
    %1907 = vmatmul.f32.gmra.mxu0 %v1844
    %v1908 = vpop.f32.mrf.mxu0
    %v1909 = vadd.f32 0.0, %v1908
    %1910 = vmatmul.f32.gmra.mxu0 %v1847
    %v1911 = vpop.f32.mrf.mxu0
    %v1912 = vadd.f32 0.0, %v1911
    %1913 = vmatmul.f32.gmra.mxu0 %v1850
    %v1914 = vpop.f32.mrf.mxu0
    %v1915 = vadd.f32 0.0, %v1914
    %1916 = vmatmul.f32.gmra.mxu0 %v1853
    %v1917 = vpop.f32.mrf.mxu0
    %v1918 = vadd.f32 0.0, %v1917
    %1919 = vdwg.mxu0
    %v1920 = vadd.f32 %v1374, %v1873
    %v1921 = vadd.f32 %v1377, %v1876
    %v1922 = vadd.f32 %v1380, %v1879
    %v1923 = vadd.f32 %v1383, %v1882
    %v1924 = vadd.f32 %v1386, %v1885
    %v1925 = vadd.f32 %v1389, %v1888
    %v1926 = vadd.f32 %v1392, %v1891
    %v1927 = vadd.f32 %v1395, %v1894
    %v1928 = vadd.f32 %v1398, %v1897
    %v1929 = vadd.f32 %v1401, %v1900
    %v1930 = vadd.f32 %v1404, %v1903
    %v1931 = vadd.f32 %v1407, %v1906
    %v1932 = vadd.f32 %v1410, %v1909
    %v1933 = vadd.f32 %v1413, %v1912
    %v1934 = vadd.f32 %v1416, %v1915
    %v1935 = vadd.f32 %v1419, %v1918
    %1936 = vrot.lane.b32.xlu0 %v422, 104
    %v1937 = vpop.permute.xlu0 %1936
    %1938 = vrot.lane.b32.xlu0 %v423, 104
    %v1939 = vpop.permute.xlu0 %1938
    %1940 = vrot.lane.b32.xlu0 %v424, 104
    %v1941 = vpop.permute.xlu0 %1940
    %1942 = vrot.lane.b32.xlu0 %v425, 104
    %v1943 = vpop.permute.xlu0 %1942
    %1944 = vrot.lane.b32.xlu0 %v426, 104
    %v1945 = vpop.permute.xlu0 %1944
    %1946 = vrot.lane.b32.xlu0 %v427, 104
    %v1947 = vpop.permute.xlu0 %1946
    %1948 = vrot.lane.b32.xlu0 %v428, 104
    %v1949 = vpop.permute.xlu0 %1948
    %1950 = vrot.lane.b32.xlu0 %v429, 104
    %v1951 = vpop.permute.xlu0 %1950
    %1952 = vrot.lane.b32.xlu0 %v422, 72
    %v1953 = vpop.permute.xlu0 %1952
    %1954 = vrot.lane.b32.xlu0 %v423, 72
    %v1955 = vpop.permute.xlu0 %1954
    %1956 = vrot.lane.b32.xlu0 %v424, 72
    %v1957 = vpop.permute.xlu0 %1956
    %1958 = vrot.lane.b32.xlu0 %v425, 72
    %v1959 = vpop.permute.xlu0 %1958
    %1960 = vrot.lane.b32.xlu0 %v426, 72
    %v1961 = vpop.permute.xlu0 %1960
    %1962 = vrot.lane.b32.xlu0 %v427, 72
    %v1963 = vpop.permute.xlu0 %1962
    %1964 = vrot.lane.b32.xlu0 %v428, 72
    %v1965 = vpop.permute.xlu0 %1964
    %1966 = vrot.lane.b32.xlu0 %v429, 72
    %v1967 = vpop.permute.xlu0 %1966
    %v1969 = vsel %vm454, %v1937, 0
    %v1972 = vsel %vm454, %v1939, 0
    %v1975 = vsel %vm454, %v1941, 0
    %v1978 = vsel %vm454, %v1943, 0
    %v1981 = vsel %vm454, %v1945, 0
    %v1984 = vsel %vm454, %v1947, 0
    %v1987 = vsel %vm454, %v1949, 0
    %v1990 = vsel %vm454, %v1951, 0
    %v1993 = vsel %vm454, %v1953, 0
    %v1996 = vsel %vm454, %v1955, 0
    %v1999 = vsel %vm454, %v1957, 0
    %v2002 = vsel %vm454, %v1959, 0
    %v2005 = vsel %vm454, %v1961, 0
    %v2008 = vsel %vm454, %v1963, 0
    %v2011 = vsel %vm454, %v1965, 0
    %v2014 = vsel %vm454, %v1967, 0
    %2016 = vmatpush.bf16.xpose.msra.mxu0 %v2014
    %2017 = vmatpush.bf16.xpose.msra.mxu0 %v2011
    %2018 = vmatpush.bf16.xpose.msra.mxu0 %v2008
    %2019 = vmatpush.bf16.xpose.msra.mxu0 %v2005
    %2020 = vmatpush.bf16.xpose.msra.mxu0 %v2002
    %2021 = vmatpush.bf16.xpose.msra.mxu0 %v1999
    %2022 = vmatpush.bf16.xpose.msra.mxu0 %v1996
    %2023 = vmatpush.bf16.xpose.msra.mxu0 %v1993
    %2024 = vmatmul.bf16.gmra.mxu0 %v1969
    %v2025 = vpop.f32.mrf.mxu0
    %v2026 = vadd.f32 0.0, %v2025
    %v2027 = vpop.f32.mrf.mxu0
    %v2028 = vadd.f32 0.0, %v2027
    %2029 = vmatmul.bf16.gmra.mxu0 %v1972
    %v2030 = vpop.f32.mrf.mxu0
    %v2031 = vadd.f32 0.0, %v2030
    %v2032 = vpop.f32.mrf.mxu0
    %v2033 = vadd.f32 0.0, %v2032
    %2034 = vmatmul.bf16.gmra.mxu0 %v1975
    %v2035 = vpop.f32.mrf.mxu0
    %v2036 = vadd.f32 0.0, %v2035
    %v2037 = vpop.f32.mrf.mxu0
    %v2038 = vadd.f32 0.0, %v2037
    %2039 = vmatmul.bf16.gmra.mxu0 %v1978
    %v2040 = vpop.f32.mrf.mxu0
    %v2041 = vadd.f32 0.0, %v2040
    %v2042 = vpop.f32.mrf.mxu0
    %v2043 = vadd.f32 0.0, %v2042
    %2044 = vmatmul.bf16.gmra.mxu0 %v1981
    %v2045 = vpop.f32.mrf.mxu0
    %v2046 = vadd.f32 0.0, %v2045
    %v2047 = vpop.f32.mrf.mxu0
    %v2048 = vadd.f32 0.0, %v2047
    %2049 = vmatmul.bf16.gmra.mxu0 %v1984
    %v2050 = vpop.f32.mrf.mxu0
    %v2051 = vadd.f32 0.0, %v2050
    %v2052 = vpop.f32.mrf.mxu0
    %v2053 = vadd.f32 0.0, %v2052
    %2054 = vmatmul.bf16.gmra.mxu0 %v1987
    %v2055 = vpop.f32.mrf.mxu0
    %v2056 = vadd.f32 0.0, %v2055
    %v2057 = vpop.f32.mrf.mxu0
    %v2058 = vadd.f32 0.0, %v2057
    %2059 = vmatmul.bf16.gmra.mxu0 %v1990
    %v2060 = vpop.f32.mrf.mxu0
    %v2061 = vadd.f32 0.0, %v2060
    %v2062 = vpop.f32.mrf.mxu0
    %v2063 = vadd.f32 0.0, %v2062
    %2064 = vdwg.mxu0
    %v2065 = vmul.f32 %v2026, 0.35355338
    %v2066 = vmul.f32 %v2028, 0.35355338
    %v2067 = vmul.f32 %v2031, 0.35355338
    %v2068 = vmul.f32 %v2033, 0.35355338
    %v2069 = vmul.f32 %v2036, 0.35355338
    %v2070 = vmul.f32 %v2038, 0.35355338
    %v2071 = vmul.f32 %v2041, 0.35355338
    %v2072 = vmul.f32 %v2043, 0.35355338
    %v2073 = vmul.f32 %v2046, 0.35355338
    %v2074 = vmul.f32 %v2048, 0.35355338
    %v2075 = vmul.f32 %v2051, 0.35355338
    %v2076 = vmul.f32 %v2053, 0.35355338
    %v2077 = vmul.f32 %v2056, 0.35355338
    %v2078 = vmul.f32 %v2058, 0.35355338
    %v2079 = vmul.f32 %v2061, 0.35355338
    %v2080 = vmul.f32 %v2063, 0.35355338
    %v2081 = vsel %vm402, %v2065, -1e+30
    %v2082 = vsel %vm403, %v2066, -1e+30
    %v2083 = vsel %vm404, %v2067, -1e+30
    %v2084 = vsel %vm405, %v2068, -1e+30
    %v2085 = vsel %vm406, %v2069, -1e+30
    %v2086 = vsel %vm407, %v2070, -1e+30
    %v2087 = vsel %vm408, %v2071, -1e+30
    %v2088 = vsel %vm409, %v2072, -1e+30
    %v2089 = vsel %vm410, %v2073, -1e+30
    %v2090 = vsel %vm411, %v2074, -1e+30
    %v2091 = vsel %vm412, %v2075, -1e+30
    %v2092 = vsel %vm413, %v2076, -1e+30
    %v2093 = vsel %vm414, %v2077, -1e+30
    %v2094 = vsel %vm415, %v2078, -1e+30
    %v2095 = vsel %vm416, %v2079, -1e+30
    %v2096 = vsel %vm417, %v2080, -1e+30
    %2097 = vmax.xlane.f32.xlu0 %v2081
    %v2098 = vpop.xlane.xlu0 %2097
    %2099 = vmax.xlane.f32.xlu0 %v2082
    %v2100 = vpop.xlane.xlu0 %2099
    %2101 = vmax.xlane.f32.xlu0 %v2083
    %v2102 = vpop.xlane.xlu0 %2101
    %2103 = vmax.xlane.f32.xlu0 %v2084
    %v2104 = vpop.xlane.xlu0 %2103
    %2105 = vmax.xlane.f32.xlu0 %v2085
    %v2106 = vpop.xlane.xlu0 %2105
    %2107 = vmax.xlane.f32.xlu0 %v2086
    %v2108 = vpop.xlane.xlu0 %2107
    %2109 = vmax.xlane.f32.xlu0 %v2087
    %v2110 = vpop.xlane.xlu0 %2109
    %2111 = vmax.xlane.f32.xlu0 %v2088
    %v2112 = vpop.xlane.xlu0 %2111
    %2113 = vmax.xlane.f32.xlu0 %v2089
    %v2114 = vpop.xlane.xlu0 %2113
    %2115 = vmax.xlane.f32.xlu0 %v2090
    %v2116 = vpop.xlane.xlu0 %2115
    %2117 = vmax.xlane.f32.xlu0 %v2091
    %v2118 = vpop.xlane.xlu0 %2117
    %2119 = vmax.xlane.f32.xlu0 %v2092
    %v2120 = vpop.xlane.xlu0 %2119
    %2121 = vmax.xlane.f32.xlu0 %v2093
    %v2122 = vpop.xlane.xlu0 %2121
    %2123 = vmax.xlane.f32.xlu0 %v2094
    %v2124 = vpop.xlane.xlu0 %2123
    %2125 = vmax.xlane.f32.xlu0 %v2095
    %v2126 = vpop.xlane.xlu0 %2125
    %2127 = vmax.xlane.f32.xlu0 %v2096
    %v2128 = vpop.xlane.xlu0 %2127
    %v2129 = vsub.f32 %v2081, %v2098
    %v2130 = vsub.f32 %v2082, %v2100
    %v2131 = vsub.f32 %v2083, %v2102
    %v2132 = vsub.f32 %v2084, %v2104
    %v2133 = vsub.f32 %v2085, %v2106
    %v2134 = vsub.f32 %v2086, %v2108
    %v2135 = vsub.f32 %v2087, %v2110
    %v2136 = vsub.f32 %v2088, %v2112
    %v2137 = vsub.f32 %v2089, %v2114
    %v2138 = vsub.f32 %v2090, %v2116
    %v2139 = vsub.f32 %v2091, %v2118
    %v2140 = vsub.f32 %v2092, %v2120
    %v2141 = vsub.f32 %v2093, %v2122
    %v2142 = vsub.f32 %v2094, %v2124
    %v2143 = vsub.f32 %v2095, %v2126
    %v2144 = vsub.f32 %v2096, %v2128
    %v2145 = vmul.f32 %v2129, 1.442695
    %v2146 = vpow.pop %v2145
    %v2147 = vmul.f32 %v2130, 1.442695
    %v2148 = vpow.pop %v2147
    %v2149 = vmul.f32 %v2131, 1.442695
    %v2150 = vpow.pop %v2149
    %v2151 = vmul.f32 %v2132, 1.442695
    %v2152 = vpow.pop %v2151
    %v2153 = vmul.f32 %v2133, 1.442695
    %v2154 = vpow.pop %v2153
    %v2155 = vmul.f32 %v2134, 1.442695
    %v2156 = vpow.pop %v2155
    %v2157 = vmul.f32 %v2135, 1.442695
    %v2158 = vpow.pop %v2157
    %v2159 = vmul.f32 %v2136, 1.442695
    %v2160 = vpow.pop %v2159
    %v2161 = vmul.f32 %v2137, 1.442695
    %v2162 = vpow.pop %v2161
    %v2163 = vmul.f32 %v2138, 1.442695
    %v2164 = vpow.pop %v2163
    %v2165 = vmul.f32 %v2139, 1.442695
    %v2166 = vpow.pop %v2165
    %v2167 = vmul.f32 %v2140, 1.442695
    %v2168 = vpow.pop %v2167
    %v2169 = vmul.f32 %v2141, 1.442695
    %v2170 = vpow.pop %v2169
    %v2171 = vmul.f32 %v2142, 1.442695
    %v2172 = vpow.pop %v2171
    %v2173 = vmul.f32 %v2143, 1.442695
    %v2174 = vpow.pop %v2173
    %v2175 = vmul.f32 %v2144, 1.442695
    %v2176 = vpow.pop %v2175
    %2177 = vadd.xlane.f32.xlu0 %v2146
    %v2178 = vpop.xlane.xlu0 %2177
    %2179 = vadd.xlane.f32.xlu0 %v2148
    %v2180 = vpop.xlane.xlu0 %2179
    %2181 = vadd.xlane.f32.xlu0 %v2150
    %v2182 = vpop.xlane.xlu0 %2181
    %2183 = vadd.xlane.f32.xlu0 %v2152
    %v2184 = vpop.xlane.xlu0 %2183
    %2185 = vadd.xlane.f32.xlu0 %v2154
    %v2186 = vpop.xlane.xlu0 %2185
    %2187 = vadd.xlane.f32.xlu0 %v2156
    %v2188 = vpop.xlane.xlu0 %2187
    %2189 = vadd.xlane.f32.xlu0 %v2158
    %v2190 = vpop.xlane.xlu0 %2189
    %2191 = vadd.xlane.f32.xlu0 %v2160
    %v2192 = vpop.xlane.xlu0 %2191
    %2193 = vadd.xlane.f32.xlu0 %v2162
    %v2194 = vpop.xlane.xlu0 %2193
    %2195 = vadd.xlane.f32.xlu0 %v2164
    %v2196 = vpop.xlane.xlu0 %2195
    %2197 = vadd.xlane.f32.xlu0 %v2166
    %v2198 = vpop.xlane.xlu0 %2197
    %2199 = vadd.xlane.f32.xlu0 %v2168
    %v2200 = vpop.xlane.xlu0 %2199
    %2201 = vadd.xlane.f32.xlu0 %v2170
    %v2202 = vpop.xlane.xlu0 %2201
    %2203 = vadd.xlane.f32.xlu0 %v2172
    %v2204 = vpop.xlane.xlu0 %2203
    %2205 = vadd.xlane.f32.xlu0 %v2174
    %v2206 = vpop.xlane.xlu0 %2205
    %2207 = vadd.xlane.f32.xlu0 %v2176
    %v2208 = vpop.xlane.xlu0 %2207
    %v2209 = vrcp.pop %v2178
    %v2210 = vrcp.pop %v2180
    %v2211 = vrcp.pop %v2182
    %v2212 = vrcp.pop %v2184
    %v2213 = vrcp.pop %v2186
    %v2214 = vrcp.pop %v2188
    %v2215 = vrcp.pop %v2190
    %v2216 = vrcp.pop %v2192
    %v2217 = vrcp.pop %v2194
    %v2218 = vrcp.pop %v2196
    %v2219 = vrcp.pop %v2198
    %v2220 = vrcp.pop %v2200
    %v2221 = vrcp.pop %v2202
    %v2222 = vrcp.pop %v2204
    %v2223 = vrcp.pop %v2206
    %v2224 = vrcp.pop %v2208
    %v2225 = vmul.f32 %v2146, %v2209
    %v2226 = vmul.f32 %v2148, %v2210
    %v2227 = vmul.f32 %v2150, %v2211
    %v2228 = vmul.f32 %v2152, %v2212
    %v2229 = vmul.f32 %v2154, %v2213
    %v2230 = vmul.f32 %v2156, %v2214
    %v2231 = vmul.f32 %v2158, %v2215
    %v2232 = vmul.f32 %v2160, %v2216
    %v2233 = vmul.f32 %v2162, %v2217
    %v2234 = vmul.f32 %v2164, %v2218
    %v2235 = vmul.f32 %v2166, %v2219
    %v2236 = vmul.f32 %v2168, %v2220
    %v2237 = vmul.f32 %v2170, %v2221
    %v2238 = vmul.f32 %v2172, %v2222
    %v2239 = vmul.f32 %v2174, %v2223
    %v2240 = vmul.f32 %v2176, %v2224
    %v2241 = vpack.c.bf16 %v2226, %v2225
    %v2242 = vpack.c.bf16 %v2228, %v2227
    %v2243 = vpack.c.bf16 %v2230, %v2229
    %v2244 = vpack.c.bf16 %v2232, %v2231
    %v2245 = vpack.c.bf16 %v2234, %v2233
    %v2246 = vpack.c.bf16 %v2236, %v2235
    %v2247 = vpack.c.bf16 %v2238, %v2237
    %v2248 = vpack.c.bf16 %v2240, %v2239
    %2249 = vrot.lane.b32.xlu0 %v422, 40
    %v2250 = vpop.permute.xlu0 %2249
    %2251 = vrot.lane.b32.xlu0 %v423, 40
    %v2252 = vpop.permute.xlu0 %2251
    %2253 = vrot.lane.b32.xlu0 %v424, 40
    %v2254 = vpop.permute.xlu0 %2253
    %2255 = vrot.lane.b32.xlu0 %v425, 40
    %v2256 = vpop.permute.xlu0 %2255
    %2257 = vrot.lane.b32.xlu0 %v426, 40
    %v2258 = vpop.permute.xlu0 %2257
    %2259 = vrot.lane.b32.xlu0 %v427, 40
    %v2260 = vpop.permute.xlu0 %2259
    %2261 = vrot.lane.b32.xlu0 %v428, 40
    %v2262 = vpop.permute.xlu0 %2261
    %2263 = vrot.lane.b32.xlu0 %v429, 40
    %v2264 = vpop.permute.xlu0 %2263
    %2273 = vmatpush.bf16.msra.mxu0 %v2264
    %2274 = vmatpush.bf16.msra.mxu0 %v2262
    %2275 = vmatpush.bf16.msra.mxu0 %v2260
    %2276 = vmatpush.bf16.msra.mxu0 %v2258
    %2277 = vmatpush.bf16.msra.mxu0 %v2256
    %2278 = vmatpush.bf16.msra.mxu0 %v2254
    %2279 = vmatpush.bf16.msra.mxu0 %v2252
    %2280 = vmatpush.bf16.msra.mxu0 %v2250
    %2281 = vmatmul.bf16.gmra.mxu0 %v2241
    %v2282 = vpop.f32.mrf.mxu0
    %v2283 = vadd.f32 0.0, %v2282
    %v2284 = vpop.f32.mrf.mxu0
    %v2285 = vadd.f32 0.0, %v2284
    %2286 = vmatmul.bf16.gmra.mxu0 %v2242
    %v2287 = vpop.f32.mrf.mxu0
    %v2288 = vadd.f32 0.0, %v2287
    %v2289 = vpop.f32.mrf.mxu0
    %v2290 = vadd.f32 0.0, %v2289
    %2291 = vmatmul.bf16.gmra.mxu0 %v2243
    %v2292 = vpop.f32.mrf.mxu0
    %v2293 = vadd.f32 0.0, %v2292
    %v2294 = vpop.f32.mrf.mxu0
    %v2295 = vadd.f32 0.0, %v2294
    %2296 = vmatmul.bf16.gmra.mxu0 %v2244
    %v2297 = vpop.f32.mrf.mxu0
    %v2298 = vadd.f32 0.0, %v2297
    %v2299 = vpop.f32.mrf.mxu0
    %v2300 = vadd.f32 0.0, %v2299
    %2301 = vmatmul.bf16.gmra.mxu0 %v2245
    %v2302 = vpop.f32.mrf.mxu0
    %v2303 = vadd.f32 0.0, %v2302
    %v2304 = vpop.f32.mrf.mxu0
    %v2305 = vadd.f32 0.0, %v2304
    %2306 = vmatmul.bf16.gmra.mxu0 %v2246
    %v2307 = vpop.f32.mrf.mxu0
    %v2308 = vadd.f32 0.0, %v2307
    %v2309 = vpop.f32.mrf.mxu0
    %v2310 = vadd.f32 0.0, %v2309
    %2311 = vmatmul.bf16.gmra.mxu0 %v2247
    %v2312 = vpop.f32.mrf.mxu0
    %v2313 = vadd.f32 0.0, %v2312
    %v2314 = vpop.f32.mrf.mxu0
    %v2315 = vadd.f32 0.0, %v2314
    %2316 = vmatmul.bf16.gmra.mxu0 %v2248
    %v2317 = vpop.f32.mrf.mxu0
    %v2318 = vadd.f32 0.0, %v2317
    %v2319 = vpop.f32.mrf.mxu0
    %v2320 = vadd.f32 0.0, %v2319
    %2321 = vdwg.mxu0
    %v2323 = vsel %vm454, %v2283, 0
    %v2326 = vsel %vm454, %v2285, 0
    %v2329 = vsel %vm454, %v2288, 0
    %v2332 = vsel %vm454, %v2290, 0
    %v2335 = vsel %vm454, %v2293, 0
    %v2338 = vsel %vm454, %v2295, 0
    %v2341 = vsel %vm454, %v2298, 0
    %v2344 = vsel %vm454, %v2300, 0
    %v2347 = vsel %vm454, %v2303, 0
    %v2350 = vsel %vm454, %v2305, 0
    %v2353 = vsel %vm454, %v2308, 0
    %v2356 = vsel %vm454, %v2310, 0
    %v2359 = vsel %vm454, %v2313, 0
    %v2362 = vsel %vm454, %v2315, 0
    %v2365 = vsel %vm454, %v2318, 0
    %v2368 = vsel %vm454, %v2320, 0
    %2370 = vmatpush.msra.mxu0 0.0
    %2371 = vmatpush.msra.mxu0 0.0
    %2372 = vmatpush.msra.mxu0 0.0
    %2373 = vmatpush.msra.mxu0 0.0
    %2374 = vmatpush.msra.mxu0 0.0
    %2375 = vmatpush.msra.mxu0 0.0
    %2376 = vmatpush.msra.mxu0 0.0
    %2377 = vmatpush.msra.mxu0 0.0
    %2378 = vmatpush.msra.mxu0 0.0
    %2379 = vmatpush.msra.mxu0 0.0
    %2380 = vmatpush.msra.mxu0 0.0
    %2381 = vmatpush.msra.mxu0 0.0
    %2382 = vmatpush.msra.mxu0 0.0
    %2383 = vmatpush.msra.mxu0 0.0
    %2384 = vmatpush.msra.mxu0 0.0
    %2385 = vmatpush.msra.mxu0 %v421
    %2386 = vmatmul.f32.gmra.mxu0 %v2323
    %v2387 = vpop.f32.mrf.mxu0
    %v2388 = vadd.f32 0.0, %v2387
    %2389 = vmatmul.f32.gmra.mxu0 %v2326
    %v2390 = vpop.f32.mrf.mxu0
    %v2391 = vadd.f32 0.0, %v2390
    %2392 = vmatmul.f32.gmra.mxu0 %v2329
    %v2393 = vpop.f32.mrf.mxu0
    %v2394 = vadd.f32 0.0, %v2393
    %2395 = vmatmul.f32.gmra.mxu0 %v2332
    %v2396 = vpop.f32.mrf.mxu0
    %v2397 = vadd.f32 0.0, %v2396
    %2398 = vmatmul.f32.gmra.mxu0 %v2335
    %v2399 = vpop.f32.mrf.mxu0
    %v2400 = vadd.f32 0.0, %v2399
    %2401 = vmatmul.f32.gmra.mxu0 %v2338
    %v2402 = vpop.f32.mrf.mxu0
    %v2403 = vadd.f32 0.0, %v2402
    %2404 = vmatmul.f32.gmra.mxu0 %v2341
    %v2405 = vpop.f32.mrf.mxu0
    %v2406 = vadd.f32 0.0, %v2405
    %2407 = vmatmul.f32.gmra.mxu0 %v2344
    %v2408 = vpop.f32.mrf.mxu0
    %v2409 = vadd.f32 0.0, %v2408
    %2410 = vmatmul.f32.gmra.mxu0 %v2347
    %v2411 = vpop.f32.mrf.mxu0
    %v2412 = vadd.f32 0.0, %v2411
    %2413 = vmatmul.f32.gmra.mxu0 %v2350
    %v2414 = vpop.f32.mrf.mxu0
    %v2415 = vadd.f32 0.0, %v2414
    %2416 = vmatmul.f32.gmra.mxu0 %v2353
    %v2417 = vpop.f32.mrf.mxu0
    %v2418 = vadd.f32 0.0, %v2417
    %2419 = vmatmul.f32.gmra.mxu0 %v2356
    %v2420 = vpop.f32.mrf.mxu0
    %v2421 = vadd.f32 0.0, %v2420
    %2422 = vmatmul.f32.gmra.mxu0 %v2359
    %v2423 = vpop.f32.mrf.mxu0
    %v2424 = vadd.f32 0.0, %v2423
    %2425 = vmatmul.f32.gmra.mxu0 %v2362
    %v2426 = vpop.f32.mrf.mxu0
    %v2427 = vadd.f32 0.0, %v2426
    %2428 = vmatmul.f32.gmra.mxu0 %v2365
    %v2429 = vpop.f32.mrf.mxu0
    %v2430 = vadd.f32 0.0, %v2429
    %2431 = vmatmul.f32.gmra.mxu0 %v2368
    %v2432 = vpop.f32.mrf.mxu0
    %v2433 = vadd.f32 0.0, %v2432
    %2434 = vdwg.mxu0
    %v2435 = vadd.f32 %v1920, %v2388
    %v2436 = vadd.f32 %v1921, %v2391
    %v2437 = vadd.f32 %v1922, %v2394
    %v2438 = vadd.f32 %v1923, %v2397
    %v2439 = vadd.f32 %v1924, %v2400
    %v2440 = vadd.f32 %v1925, %v2403
    %v2441 = vadd.f32 %v1926, %v2406
    %v2442 = vadd.f32 %v1927, %v2409
    %v2443 = vadd.f32 %v1928, %v2412
    %v2444 = vadd.f32 %v1929, %v2415
    %v2445 = vadd.f32 %v1930, %v2418
    %v2446 = vadd.f32 %v1931, %v2421
    %v2447 = vadd.f32 %v1932, %v2424
    %v2448 = vadd.f32 %v1933, %v2427
    %v2449 = vadd.f32 %v1934, %v2430
    %v2450 = vadd.f32 %v1935, %v2433
    %v2451 = vld [vmem:[%s4] sm:$0x1]
    %v2453 = vperm.slane %v2451, 0
    %v2455 = vadd.f32 %v2435, %v2453
    %v2456 = vadd.f32 %v2436, %v2453
    %v2457 = vadd.f32 %v2437, %v2453
    %v2458 = vadd.f32 %v2438, %v2453
    %v2459 = vadd.f32 %v2439, %v2453
    %v2460 = vadd.f32 %v2440, %v2453
    %v2461 = vadd.f32 %v2441, %v2453
    %v2462 = vadd.f32 %v2442, %v2453
    %v2463 = vadd.f32 %v2443, %v2453
    %v2464 = vadd.f32 %v2444, %v2453
    %v2465 = vadd.f32 %v2445, %v2453
    %v2466 = vadd.f32 %v2446, %v2453
    %v2467 = vadd.f32 %v2447, %v2453
    %v2468 = vadd.f32 %v2448, %v2453
    %v2469 = vadd.f32 %v2449, %v2453
    %v2470 = vadd.f32 %v2450, %v2453
    %2471 = vst.msk [vmem:[#allocation2] sm:$0xff] %vm105, %v2455
    %2473 = vrot.lane.b32.xlu0 %v2456, 32
    %v2474 = vpop.permute.xlu0 %2473
    %vm2476 = vcmask 523520
    %2477 = vst.msk [vmem:[#allocation2] sm:$0xff] %vm2476, %v2474
    %2479 = vrot.lane.b32.xlu0 %v2457, 64
    %v2480 = vpop.permute.xlu0 %2479
    %vm2482 = vcmask 785920
    %2483 = vst.msk [vmem:[#allocation2] sm:$0xff] %vm2482, %v2480
    %2485 = vrot.lane.b32.xlu0 %v2458, 96
    %v2486 = vpop.permute.xlu0 %2485
    %vm2488 = vcmask 1048320
    %2489 = vst.msk [vmem:[#allocation2] sm:$0xff] %vm2488, %v2486
    %2490 = vst.msk [vmem:[#allocation2 + $0x8] sm:$0xff] %vm105, %v2459
    %2492 = vrot.lane.b32.xlu0 %v2460, 32
    %v2493 = vpop.permute.xlu0 %2492
    %2495 = vst.msk [vmem:[#allocation2 + $0x8] sm:$0xff] %vm2476, %v2493
    %2497 = vrot.lane.b32.xlu0 %v2461, 64
    %v2498 = vpop.permute.xlu0 %2497
    %2500 = vst.msk [vmem:[#allocation2 + $0x8] sm:$0xff] %vm2482, %v2498
    %2502 = vrot.lane.b32.xlu0 %v2462, 96
    %v2503 = vpop.permute.xlu0 %2502
    %2505 = vst.msk [vmem:[#allocation2 + $0x8] sm:$0xff] %vm2488, %v2503
    %2506 = vst.msk [vmem:[#allocation2 + $0x10] sm:$0xff] %vm105, %v2463
    %2508 = vrot.lane.b32.xlu0 %v2464, 32
    %v2509 = vpop.permute.xlu0 %2508
    %2511 = vst.msk [vmem:[#allocation2 + $0x10] sm:$0xff] %vm2476, %v2509
    %2513 = vrot.lane.b32.xlu0 %v2465, 64
    %v2514 = vpop.permute.xlu0 %2513
    %2516 = vst.msk [vmem:[#allocation2 + $0x10] sm:$0xff] %vm2482, %v2514
    %2518 = vrot.lane.b32.xlu0 %v2466, 96
    %v2519 = vpop.permute.xlu0 %2518
    %2521 = vst.msk [vmem:[#allocation2 + $0x10] sm:$0xff] %vm2488, %v2519
    %2522 = vst.msk [vmem:[#allocation2 + $0x18] sm:$0xff] %vm105, %v2467
    %2524 = vrot.lane.b32.xlu0 %v2468, 32
    %v2525 = vpop.permute.xlu0 %2524
    %2527 = vst.msk [vmem:[#allocation2 + $0x18] sm:$0xff] %vm2476, %v2525
    %2529 = vrot.lane.b32.xlu0 %v2469, 64
    %v2530 = vpop.permute.xlu0 %2529
    %2532 = vst.msk [vmem:[#allocation2 + $0x18] sm:$0xff] %vm2482, %v2530
    %2534 = vrot.lane.b32.xlu0 %v2470, 96
    %v2535 = vpop.permute.xlu0 %2534
    %2537 = vst.msk [vmem:[#allocation2 + $0x18] sm:$0xff] %vm2488, %v2535
    %v2538 = vld [vmem:[#allocation2] sm:$0xff]
    %v2539 = vld [vmem:[#allocation2 + $0x8] sm:$0xff]
    %v2540 = vld [vmem:[#allocation2 + $0x10] sm:$0xff]
    %v2541 = vld [vmem:[#allocation2 + $0x18] sm:$0xff]
    %v2542 = vld [vmem:[%s5] sm:$0x77]
    %v2543 = vld [vmem:[%s5 + $0x8] sm:$0x77]
    %v2544 = vld [vmem:[%s6] sm:$0x77]
    %v2545 = vld [vmem:[%s6 + $0x8] sm:$0x77]
    %v2548 = vperm.slane %v2542, 0
    %v2549 = vperm.slane %v2542, 4
    %v2550 = vperm.slane %v2543, 0
    %v2551 = vperm.slane %v2543, 4
    %v2556 = vperm.slane %v2548, 0
    %v2557 = vperm.slane %v2549, 0
    %v2558 = vperm.slane %v2550, 0
    %v2559 = vperm.slane %v2551, 0
    %v2560 = vmul.f32 %v2538, %v2556
    %v2561 = vmul.f32 %v2539, %v2557
    %v2562 = vmul.f32 %v2540, %v2558
    %v2563 = vmul.f32 %v2541, %v2559
    %v2564 = vadd.f32 %v2560, %v2561
    %v2565 = vadd.f32 %v2564, %v2562
    %v2566 = vadd.f32 %v2565, %v2563
    %2567 = vadd.xlane.f32.xlu0 %v2566
    %v2568 = vpop.xlane.xlu0 %2567
    %v2569 = vmul.f32 %v2538, %v2568
    %v2570 = vmul.f32 %v2539, %v2568
    %v2571 = vmul.f32 %v2540, %v2568
    %v2572 = vmul.f32 %v2541, %v2568
    %v2575 = vperm.slane %v2544, 0
    %v2576 = vperm.slane %v2544, 4
    %v2577 = vperm.slane %v2545, 0
    %v2578 = vperm.slane %v2545, 4
    %v2583 = vperm.slane %v2575, 0
    %v2584 = vperm.slane %v2576, 0
    %v2585 = vperm.slane %v2577, 0
    %v2586 = vperm.slane %v2578, 0
    %v2587 = vadd.f32 %v2569, %v2583
    %v2588 = vadd.f32 %v2570, %v2584
    %v2589 = vadd.f32 %v2571, %v2585
    %v2590 = vadd.f32 %v2572, %v2586
    %v2591 = vadd.f32 %v2587, %v2538
    %v2592 = vadd.f32 %v2588, %v2539
    %v2593 = vadd.f32 %v2589, %v2540
    %v2594 = vadd.f32 %v2590, %v2541
    %v2595 = vperm.slane %v2542, 1
    %v2596 = vperm.slane %v2542, 5
    %v2597 = vperm.slane %v2543, 1
    %v2598 = vperm.slane %v2543, 5
    %v2603 = vperm.slane %v2595, 1
    %v2604 = vperm.slane %v2596, 1
    %v2605 = vperm.slane %v2597, 1
    %v2606 = vperm.slane %v2598, 1
    %v2607 = vmul.f32 %v2591, %v2603
    %v2608 = vmul.f32 %v2592, %v2604
    %v2609 = vmul.f32 %v2593, %v2605
    %v2610 = vmul.f32 %v2594, %v2606
    %v2611 = vadd.f32 %v2607, %v2608
    %v2612 = vadd.f32 %v2611, %v2609
    %v2613 = vadd.f32 %v2612, %v2610
    %2614 = vadd.xlane.f32.xlu0 %v2613
    %v2615 = vpop.xlane.xlu0 %2614
    %v2616 = vmul.f32 %v2538, %v2615
    %v2617 = vmul.f32 %v2539, %v2615
    %v2618 = vmul.f32 %v2540, %v2615
    %v2619 = vmul.f32 %v2541, %v2615
    %v2620 = vperm.slane %v2544, 1
    %v2621 = vperm.slane %v2544, 5
    %v2622 = vperm.slane %v2545, 1
    %v2623 = vperm.slane %v2545, 5
    %v2628 = vperm.slane %v2620, 1
    %v2629 = vperm.slane %v2621, 1
    %v2630 = vperm.slane %v2622, 1
    %v2631 = vperm.slane %v2623, 1
    %v2632 = vadd.f32 %v2616, %v2628
    %v2633 = vadd.f32 %v2617, %v2629
    %v2634 = vadd.f32 %v2618, %v2630
    %v2635 = vadd.f32 %v2619, %v2631
    %v2636 = vadd.f32 %v2632, %v2591
    %v2637 = vadd.f32 %v2633, %v2592
    %v2638 = vadd.f32 %v2634, %v2593
    %v2639 = vadd.f32 %v2635, %v2594
    %v2640 = vperm.slane %v2542, 2
    %v2641 = vperm.slane %v2542, 6
    %v2642 = vperm.slane %v2543, 2
    %v2643 = vperm.slane %v2543, 6
    %v2648 = vperm.slane %v2640, 2
    %v2649 = vperm.slane %v2641, 2
    %v2650 = vperm.slane %v2642, 2
    %v2651 = vperm.slane %v2643, 2
    %v2652 = vmul.f32 %v2636, %v2648
    %v2653 = vmul.f32 %v2637, %v2649
    %v2654 = vmul.f32 %v2638, %v2650
    %v2655 = vmul.f32 %v2639, %v2651
    %v2656 = vadd.f32 %v2652, %v2653
    %v2657 = vadd.f32 %v2656, %v2654
    %v2658 = vadd.f32 %v2657, %v2655
    %2659 = vadd.xlane.f32.xlu0 %v2658
    %v2660 = vpop.xlane.xlu0 %2659
    %v2661 = vmul.f32 %v2538, %v2660
    %v2662 = vmul.f32 %v2539, %v2660
    %v2663 = vmul.f32 %v2540, %v2660
    %v2664 = vmul.f32 %v2541, %v2660
    %v2665 = vperm.slane %v2544, 2
    %v2666 = vperm.slane %v2544, 6
    %v2667 = vperm.slane %v2545, 2
    %v2668 = vperm.slane %v2545, 6
    %v2673 = vperm.slane %v2665, 2
    %v2674 = vperm.slane %v2666, 2
    %v2675 = vperm.slane %v2667, 2
    %v2676 = vperm.slane %v2668, 2
    %v2677 = vadd.f32 %v2661, %v2673
    %v2678 = vadd.f32 %v2662, %v2674
    %v2679 = vadd.f32 %v2663, %v2675
    %v2680 = vadd.f32 %v2664, %v2676
    %v2681 = vadd.f32 %v2677, %v2636
    %v2682 = vadd.f32 %v2678, %v2637
    %v2683 = vadd.f32 %v2679, %v2638
    %v2684 = vadd.f32 %v2680, %v2639
    %v2685 = vpack.c.bf16 %v2538, %v2538
    %v2686 = vpack.c.bf16 %v2539, %v2539
    %v2687 = vpack.c.bf16 %v2540, %v2540
    %v2688 = vpack.c.bf16 %v2541, %v2541
    %v2689 = vld [vmem:[%s7] sm:$0xff]
    %v2690 = vld [vmem:[%s7 + $0x8] sm:$0xf]
    %v2691 = vld [vmem:[%s7 + $0xc] sm:$0xff]
    %v2692 = vld [vmem:[%s7 + $0x14] sm:$0xf]
    %v2693 = vld [vmem:[%s7 + $0x18] sm:$0xff]
    %v2694 = vld [vmem:[%s7 + $0x20] sm:$0xf]
    %v2695 = vld [vmem:[%s7 + $0x24] sm:$0xff]
    %v2696 = vld [vmem:[%s7 + $0x2c] sm:$0xf]
    %v2697 = vld [vmem:[%s7 + $0x30] sm:$0xff]
    %v2698 = vld [vmem:[%s7 + $0x38] sm:$0xf]
    %v2699 = vld [vmem:[%s7 + $0x3c] sm:$0xff]
    %v2700 = vld [vmem:[%s7 + $0x44] sm:$0xf]
    %v2701 = vld [vmem:[%s7 + $0x48] sm:$0xff]
    %v2702 = vld [vmem:[%s7 + $0x50] sm:$0xf]
    %v2703 = vld [vmem:[%s7 + $0x54] sm:$0xff]
    %v2704 = vld [vmem:[%s7 + $0x5c] sm:$0xf]
    %v2705 = vld [vmem:[%s7 + $0x60] sm:$0xff]
    %v2706 = vld [vmem:[%s7 + $0x68] sm:$0xf]
    %v2707 = vld [vmem:[%s7 + $0x6c] sm:$0xff]
    %v2708 = vld [vmem:[%s7 + $0x74] sm:$0xf]
    %v2709 = vld [vmem:[%s7 + $0x78] sm:$0xff]
    %v2710 = vld [vmem:[%s7 + $0x80] sm:$0xf]
    %v2711 = vld [vmem:[%s7 + $0x84] sm:$0xff]
    %v2712 = vld [vmem:[%s7 + $0x8c] sm:$0xf]
    %v2713 = vld [vmem:[%s7 + $0x90] sm:$0xff]
    %v2714 = vld [vmem:[%s7 + $0x98] sm:$0xf]
    %v2715 = vld [vmem:[%s7 + $0x9c] sm:$0xff]
    %v2716 = vld [vmem:[%s7 + $0xa4] sm:$0xf]
    %v2717 = vld [vmem:[%s7 + $0xa8] sm:$0xff]
    %v2718 = vld [vmem:[%s7 + $0xb0] sm:$0xf]
    %v2719 = vld [vmem:[%s7 + $0xb4] sm:$0xff]
    %v2720 = vld [vmem:[%s7 + $0xbc] sm:$0xf]
    %v2721 = vld [vmem:[%s7 + $0xc0] sm:$0xff]
    %v2722 = vld [vmem:[%s7 + $0xc8] sm:$0xf]
    %v2723 = vld [vmem:[%s7 + $0xcc] sm:$0xff]
    %v2724 = vld [vmem:[%s7 + $0xd4] sm:$0xf]
    %v2725 = vld [vmem:[%s7 + $0xd8] sm:$0xff]
    %v2726 = vld [vmem:[%s7 + $0xe0] sm:$0xf]
    %v2727 = vld [vmem:[%s7 + $0xe4] sm:$0xff]
    %v2728 = vld [vmem:[%s7 + $0xec] sm:$0xf]
    %v2729 = vld [vmem:[%s7 + $0xf0] sm:$0xff]
    %v2730 = vld [vmem:[%s7 + $0xf8] sm:$0xf]
    %v2731 = vld [vmem:[%s7 + $0xfc] sm:$0xff]
    %v2732 = vld [vmem:[%s7 + $0x104] sm:$0xf]
    %v2733 = vld [vmem:[%s7 + $0x108] sm:$0xff]
    %v2734 = vld [vmem:[%s7 + $0x110] sm:$0xf]
    %v2735 = vld [vmem:[%s7 + $0x114] sm:$0xff]
    %v2736 = vld [vmem:[%s7 + $0x11c] sm:$0xf]
    %v2737 = vld [vmem:[%s7 + $0x120] sm:$0xff]
    %v2738 = vld [vmem:[%s7 + $0x128] sm:$0xf]
    %v2739 = vld [vmem:[%s7 + $0x12c] sm:$0xff]
    %v2740 = vld [vmem:[%s7 + $0x134] sm:$0xf]
    %v2741 = vld [vmem:[%s7 + $0x138] sm:$0xff]
    %v2742 = vld [vmem:[%s7 + $0x140] sm:$0xf]
    %v2743 = vld [vmem:[%s7 + $0x144] sm:$0xff]
    %v2744 = vld [vmem:[%s7 + $0x14c] sm:$0xf]
    %v2745 = vld [vmem:[%s7 + $0x150] sm:$0xff]
    %v2746 = vld [vmem:[%s7 + $0x158] sm:$0xf]
    %v2747 = vld [vmem:[%s7 + $0x15c] sm:$0xff]
    %v2748 = vld [vmem:[%s7 + $0x164] sm:$0xf]
    %v2749 = vld [vmem:[%s7 + $0x168] sm:$0xff]
    %v2750 = vld [vmem:[%s7 + $0x170] sm:$0xf]
    %v2751 = vld [vmem:[%s7 + $0x174] sm:$0xff]
    %v2752 = vld [vmem:[%s7 + $0x17c] sm:$0xf]
    %v2753 = vld [vmem:[%s7 + $0x180] sm:$0xff]
    %v2754 = vld [vmem:[%s7 + $0x188] sm:$0xf]
    %v2755 = vld [vmem:[%s7 + $0x18c] sm:$0xff]
    %v2756 = vld [vmem:[%s7 + $0x194] sm:$0xf]
    %v2757 = vld [vmem:[%s7 + $0x198] sm:$0xff]
    %v2758 = vld [vmem:[%s7 + $0x1a0] sm:$0xf]
    %v2759 = vld [vmem:[%s7 + $0x1a4] sm:$0xff]
    %v2760 = vld [vmem:[%s7 + $0x1ac] sm:$0xf]
    %v2761 = vld [vmem:[%s7 + $0x1b0] sm:$0xff]
    %v2762 = vld [vmem:[%s7 + $0x1b8] sm:$0xf]
    %v2763 = vld [vmem:[%s7 + $0x1bc] sm:$0xff]
    %v2764 = vld [vmem:[%s7 + $0x1c4] sm:$0xf]
    %v2765 = vld [vmem:[%s7 + $0x1c8] sm:$0xff]
    %v2766 = vld [vmem:[%s7 + $0x1d0] sm:$0xf]
    %v2767 = vld [vmem:[%s7 + $0x1d4] sm:$0xff]
    %v2768 = vld [vmem:[%s7 + $0x1dc] sm:$0xf]
    %v2769 = vld [vmem:[%s7 + $0x1e0] sm:$0xff]
    %v2770 = vld [vmem:[%s7 + $0x1e8] sm:$0xf]
    %v2771 = vld [vmem:[%s7 + $0x1ec] sm:$0xff]
    %v2772 = vld [vmem:[%s7 + $0x1f4] sm:$0xf]
    %v2773 = vld [vmem:[%s7 + $0x1f8] sm:$0xff]
    %v2774 = vld [vmem:[%s7 + $0x200] sm:$0xf]
    %v2775 = vld [vmem:[%s7 + $0x204] sm:$0xff]
    %v2776 = vld [vmem:[%s7 + $0x20c] sm:$0xf]
    %v2777 = vld [vmem:[%s7 + $0x210] sm:$0xff]
    %v2778 = vld [vmem:[%s7 + $0x218] sm:$0xf]
    %v2779 = vld [vmem:[%s7 + $0x21c] sm:$0xff]
    %v2780 = vld [vmem:[%s7 + $0x224] sm:$0xf]
    %v2781 = vld [vmem:[%s7 + $0x228] sm:$0xff]
    %v2782 = vld [vmem:[%s7 + $0x230] sm:$0xf]
    %v2783 = vld [vmem:[%s7 + $0x234] sm:$0xff]
    %v2784 = vld [vmem:[%s7 + $0x23c] sm:$0xf]
    %v2785 = vld [vmem:[%s7 + $0x240] sm:$0xff]
    %v2786 = vld [vmem:[%s7 + $0x248] sm:$0xf]
    %v2787 = vld [vmem:[%s7 + $0x24c] sm:$0xff]
    %v2788 = vld [vmem:[%s7 + $0x254] sm:$0xf]
    %v2789 = vld [vmem:[%s7 + $0x258] sm:$0xff]
    %v2790 = vld [vmem:[%s7 + $0x260] sm:$0xf]
    %v2791 = vld [vmem:[%s7 + $0x264] sm:$0xff]
    %v2792 = vld [vmem:[%s7 + $0x26c] sm:$0xf]
    %v2793 = vld [vmem:[%s7 + $0x270] sm:$0xff]
    %v2794 = vld [vmem:[%s7 + $0x278] sm:$0xf]
    %v2795 = vld [vmem:[%s7 + $0x27c] sm:$0xff]
    %v2796 = vld [vmem:[%s7 + $0x284] sm:$0xf]
    %v2797 = vld [vmem:[%s7 + $0x288] sm:$0xff]
    %v2798 = vld [vmem:[%s7 + $0x290] sm:$0xf]
    %v2799 = vld [vmem:[%s7 + $0x294] sm:$0xff]
    %v2800 = vld [vmem:[%s7 + $0x29c] sm:$0xf]
    %v2801 = vld [vmem:[%s7 + $0x2a0] sm:$0xff]
    %v2802 = vld [vmem:[%s7 + $0x2a8] sm:$0xf]
    %v2803 = vld [vmem:[%s7 + $0x2ac] sm:$0xff]
    %v2804 = vld [vmem:[%s7 + $0x2b4] sm:$0xf]
    %v2805 = vld [vmem:[%s7 + $0x2b8] sm:$0xff]
    %v2806 = vld [vmem:[%s7 + $0x2c0] sm:$0xf]
    %v2807 = vld [vmem:[%s7 + $0x2c4] sm:$0xff]
    %v2808 = vld [vmem:[%s7 + $0x2cc] sm:$0xf]
    %v2809 = vld [vmem:[%s7 + $0x2d0] sm:$0xff]
    %v2810 = vld [vmem:[%s7 + $0x2d8] sm:$0xf]
    %v2811 = vld [vmem:[%s7 + $0x2dc] sm:$0xff]
    %v2812 = vld [vmem:[%s7 + $0x2e4] sm:$0xf]
    %v2813 = vld [vmem:[%s7 + $0x2e8] sm:$0xff]
    %v2814 = vld [vmem:[%s7 + $0x2f0] sm:$0xf]
    %v2815 = vld [vmem:[%s7 + $0x2f4] sm:$0xff]
    %v2816 = vld [vmem:[%s7 + $0x2fc] sm:$0xf]
    %v2817 = vld [vmem:[%s8] sm:$0x7]
    %v2819 = vperm.slane %v2817, 0
    %v2820 = vperm.slane %v2817, 1
    %v2821 = vperm.slane %v2817, 2
    %v2953 = vunpack.c.l.b16 %v2689
    %v2954 = vunpack.c.h.b16 %v2689
    %v2955 = vunpack.c.l.b16 %v2690
    %v2956 = vunpack.c.l.b16 %v2691
    %v2957 = vunpack.c.h.b16 %v2691
    %v2958 = vunpack.c.l.b16 %v2692
    %v2959 = vunpack.c.l.b16 %v2693
    %v2960 = vunpack.c.h.b16 %v2693
    %v2961 = vunpack.c.l.b16 %v2694
    %v2962 = vunpack.c.l.b16 %v2695
    %v2963 = vunpack.c.h.b16 %v2695
    %v2964 = vunpack.c.l.b16 %v2696
    %v2965 = vunpack.c.l.b16 %v2697
    %v2966 = vunpack.c.h.b16 %v2697
    %v2967 = vunpack.c.l.b16 %v2698
    %v2968 = vunpack.c.l.b16 %v2699
    %v2969 = vunpack.c.h.b16 %v2699
    %v2970 = vunpack.c.l.b16 %v2700
    %v2971 = vunpack.c.l.b16 %v2701
    %v2972 = vunpack.c.h.b16 %v2701
    %v2973 = vunpack.c.l.b16 %v2702
    %v2974 = vunpack.c.l.b16 %v2703
    %v2975 = vunpack.c.h.b16 %v2703
    %v2976 = vunpack.c.l.b16 %v2704
    %v2977 = vunpack.c.l.b16 %v2705
    %v2978 = vunpack.c.h.b16 %v2705
    %v2979 = vunpack.c.l.b16 %v2706
    %v2980 = vunpack.c.l.b16 %v2707
    %v2981 = vunpack.c.h.b16 %v2707
    %v2982 = vunpack.c.l.b16 %v2708
    %v2983 = vunpack.c.l.b16 %v2709
    %v2984 = vunpack.c.h.b16 %v2709
    %v2985 = vunpack.c.l.b16 %v2710
    %v2986 = vunpack.c.l.b16 %v2711
    %v2987 = vunpack.c.h.b16 %v2711
    %v2988 = vunpack.c.l.b16 %v2712
    %v2989 = vunpack.c.l.b16 %v2713
    %v2990 = vunpack.c.h.b16 %v2713
    %v2991 = vunpack.c.l.b16 %v2714
    %v2992 = vunpack.c.l.b16 %v2715
    %v2993 = vunpack.c.h.b16 %v2715
    %v2994 = vunpack.c.l.b16 %v2716
    %v2995 = vunpack.c.l.b16 %v2717
    %v2996 = vunpack.c.h.b16 %v2717
    %v2997 = vunpack.c.l.b16 %v2718
    %v2998 = vunpack.c.l.b16 %v2719
    %v2999 = vunpack.c.h.b16 %v2719
    %v3000 = vunpack.c.l.b16 %v2720
    %v3001 = vunpack.c.l.b16 %v2721
    %v3002 = vunpack.c.h.b16 %v2721
    %v3003 = vunpack.c.l.b16 %v2722
    %v3004 = vunpack.c.l.b16 %v2723
    %v3005 = vunpack.c.h.b16 %v2723
    %v3006 = vunpack.c.l.b16 %v2724
    %v3007 = vunpack.c.l.b16 %v2725
    %v3008 = vunpack.c.h.b16 %v2725
    %v3009 = vunpack.c.l.b16 %v2726
    %v3010 = vunpack.c.l.b16 %v2727
    %v3011 = vunpack.c.h.b16 %v2727
    %v3012 = vunpack.c.l.b16 %v2728
    %v3013 = vunpack.c.l.b16 %v2729
    %v3014 = vunpack.c.h.b16 %v2729
    %v3015 = vunpack.c.l.b16 %v2730
    %v3016 = vunpack.c.l.b16 %v2731
    %v3017 = vunpack.c.h.b16 %v2731
    %v3018 = vunpack.c.l.b16 %v2732
    %v3019 = vunpack.c.l.b16 %v2733
    %v3020 = vunpack.c.h.b16 %v2733
    %v3021 = vunpack.c.l.b16 %v2734
    %v3022 = vunpack.c.l.b16 %v2735
    %v3023 = vunpack.c.h.b16 %v2735
    %v3024 = vunpack.c.l.b16 %v2736
    %v3025 = vunpack.c.l.b16 %v2737
    %v3026 = vunpack.c.h.b16 %v2737
    %v3027 = vunpack.c.l.b16 %v2738
    %v3028 = vunpack.c.l.b16 %v2739
    %v3029 = vunpack.c.h.b16 %v2739
    %v3030 = vunpack.c.l.b16 %v2740
    %v3031 = vunpack.c.l.b16 %v2741
    %v3032 = vunpack.c.h.b16 %v2741
    %v3033 = vunpack.c.l.b16 %v2742
    %v3034 = vunpack.c.l.b16 %v2743
    %v3035 = vunpack.c.h.b16 %v2743
    %v3036 = vunpack.c.l.b16 %v2744
    %v3037 = vunpack.c.l.b16 %v2745
    %v3038 = vunpack.c.h.b16 %v2745
    %v3039 = vunpack.c.l.b16 %v2746
    %v3040 = vunpack.c.l.b16 %v2747
    %v3041 = vunpack.c.h.b16 %v2747
    %v3042 = vunpack.c.l.b16 %v2748
    %v3043 = vunpack.c.l.b16 %v2749
    %v3044 = vunpack.c.h.b16 %v2749
    %v3045 = vunpack.c.l.b16 %v2750
    %v3046 = vunpack.c.l.b16 %v2751
    %v3047 = vunpack.c.h.b16 %v2751
    %v3048 = vunpack.c.l.b16 %v2752
    %v3049 = vunpack.c.l.b16 %v2753
    %v3050 = vunpack.c.h.b16 %v2753
    %v3051 = vunpack.c.l.b16 %v2754
    %v3052 = vunpack.c.l.b16 %v2755
    %v3053 = vunpack.c.h.b16 %v2755
    %v3054 = vunpack.c.l.b16 %v2756
    %v3055 = vunpack.c.l.b16 %v2757
    %v3056 = vunpack.c.h.b16 %v2757
    %v3057 = vunpack.c.l.b16 %v2758
    %v3058 = vunpack.c.l.b16 %v2759
    %v3059 = vunpack.c.h.b16 %v2759
    %v3060 = vunpack.c.l.b16 %v2760
    %v3061 = vunpack.c.l.b16 %v2761
    %v3062 = vunpack.c.h.b16 %v2761
    %v3063 = vunpack.c.l.b16 %v2762
    %v3064 = vunpack.c.l.b16 %v2763
    %v3065 = vunpack.c.h.b16 %v2763
    %v3066 = vunpack.c.l.b16 %v2764
    %v3067 = vunpack.c.l.b16 %v2765
    %v3068 = vunpack.c.h.b16 %v2765
    %v3069 = vunpack.c.l.b16 %v2766
    %v3070 = vunpack.c.l.b16 %v2767
    %v3071 = vunpack.c.h.b16 %v2767
    %v3072 = vunpack.c.l.b16 %v2768
    %v3073 = vunpack.c.l.b16 %v2769
    %v3074 = vunpack.c.h.b16 %v2769
    %v3075 = vunpack.c.l.b16 %v2770
    %v3076 = vunpack.c.l.b16 %v2771
    %v3077 = vunpack.c.h.b16 %v2771
    %v3078 = vunpack.c.l.b16 %v2772
    %v3079 = vunpack.c.l.b16 %v2773
    %v3080 = vunpack.c.h.b16 %v2773
    %v3081 = vunpack.c.l.b16 %v2774
    %v3082 = vunpack.c.l.b16 %v2775
    %v3083 = vunpack.c.h.b16 %v2775
    %v3084 = vunpack.c.l.b16 %v2776
    %v3085 = vunpack.c.l.b16 %v2777
    %v3086 = vunpack.c.h.b16 %v2777
    %v3087 = vunpack.c.l.b16 %v2778
    %v3088 = vunpack.c.l.b16 %v2779
    %v3089 = vunpack.c.h.b16 %v2779
    %v3090 = vunpack.c.l.b16 %v2780
    %v3091 = vunpack.c.l.b16 %v2781
    %v3092 = vunpack.c.h.b16 %v2781
    %v3093 = vunpack.c.l.b16 %v2782
    %v3094 = vunpack.c.l.b16 %v2783
    %v3095 = vunpack.c.h.b16 %v2783
    %v3096 = vunpack.c.l.b16 %v2784
    %v3097 = vunpack.c.l.b16 %v2785
    %v3098 = vunpack.c.h.b16 %v2785
    %v3099 = vunpack.c.l.b16 %v2786
    %v3100 = vunpack.c.l.b16 %v2787
    %v3101 = vunpack.c.h.b16 %v2787
    %v3102 = vunpack.c.l.b16 %v2788
    %v3103 = vunpack.c.l.b16 %v2789
    %v3104 = vunpack.c.h.b16 %v2789
    %v3105 = vunpack.c.l.b16 %v2790
    %v3106 = vunpack.c.l.b16 %v2791
    %v3107 = vunpack.c.h.b16 %v2791
    %v3108 = vunpack.c.l.b16 %v2792
    %v3109 = vunpack.c.l.b16 %v2793
    %v3110 = vunpack.c.h.b16 %v2793
    %v3111 = vunpack.c.l.b16 %v2794
    %v3112 = vunpack.c.l.b16 %v2795
    %v3113 = vunpack.c.h.b16 %v2795
    %v3114 = vunpack.c.l.b16 %v2796
    %v3115 = vunpack.c.l.b16 %v2797
    %v3116 = vunpack.c.h.b16 %v2797
    %v3117 = vunpack.c.l.b16 %v2798
    %v3118 = vunpack.c.l.b16 %v2799
    %v3119 = vunpack.c.h.b16 %v2799
    %v3120 = vunpack.c.l.b16 %v2800
    %v3121 = vunpack.c.l.b16 %v2801
    %v3122 = vunpack.c.h.b16 %v2801
    %v3123 = vunpack.c.l.b16 %v2802
    %v3124 = vunpack.c.l.b16 %v2803
    %v3125 = vunpack.c.h.b16 %v2803
    %v3126 = vunpack.c.l.b16 %v2804
    %v3127 = vunpack.c.l.b16 %v2805
    %v3128 = vunpack.c.h.b16 %v2805
    %v3129 = vunpack.c.l.b16 %v2806
    %v3130 = vunpack.c.l.b16 %v2807
    %v3131 = vunpack.c.h.b16 %v2807
    %v3132 = vunpack.c.l.b16 %v2808
    %v3133 = vunpack.c.l.b16 %v2809
    %v3134 = vunpack.c.h.b16 %v2809
    %v3135 = vunpack.c.l.b16 %v2810
    %v3136 = vunpack.c.l.b16 %v2811
    %v3137 = vunpack.c.h.b16 %v2811
    %v3138 = vunpack.c.l.b16 %v2812
    %v3139 = vunpack.c.l.b16 %v2813
    %v3140 = vunpack.c.h.b16 %v2813
    %v3141 = vunpack.c.l.b16 %v2814
    %v3142 = vunpack.c.l.b16 %v2815
    %v3143 = vunpack.c.h.b16 %v2815
    %v3144 = vunpack.c.l.b16 %v2816
    %v3145 = vpack.c.b16 %v2956, %v2953
    %v3146 = vpack.c.b16 %v2957, %v2954
    %v3147 = vpack.c.b16 %v2958, %v2955
    %v3148 = vpack.c.b16 %v2962, %v2959
    %v3149 = vpack.c.b16 %v2963, %v2960
    %v3150 = vpack.c.b16 %v2964, %v2961
    %v3151 = vpack.c.b16 %v2968, %v2965
    %v3152 = vpack.c.b16 %v2969, %v2966
    %v3153 = vpack.c.b16 %v2970, %v2967
    %v3154 = vpack.c.b16 %v2974, %v2971
    %v3155 = vpack.c.b16 %v2975, %v2972
    %v3156 = vpack.c.b16 %v2976, %v2973
    %v3157 = vpack.c.b16 %v2980, %v2977
    %v3158 = vpack.c.b16 %v2981, %v2978
    %v3159 = vpack.c.b16 %v2982, %v2979
    %v3160 = vpack.c.b16 %v2986, %v2983
    %v3161 = vpack.c.b16 %v2987, %v2984
    %v3162 = vpack.c.b16 %v2988, %v2985
    %v3163 = vpack.c.b16 %v2992, %v2989
    %v3164 = vpack.c.b16 %v2993, %v2990
    %v3165 = vpack.c.b16 %v2994, %v2991
    %v3166 = vpack.c.b16 %v2998, %v2995
    %v3167 = vpack.c.b16 %v2999, %v2996
    %v3168 = vpack.c.b16 %v3000, %v2997
    %v3169 = vpack.c.b16 %v3004, %v3001
    %v3170 = vpack.c.b16 %v3005, %v3002
    %v3171 = vpack.c.b16 %v3006, %v3003
    %v3172 = vpack.c.b16 %v3010, %v3007
    %v3173 = vpack.c.b16 %v3011, %v3008
    %v3174 = vpack.c.b16 %v3012, %v3009
    %v3175 = vpack.c.b16 %v3016, %v3013
    %v3176 = vpack.c.b16 %v3017, %v3014
    %v3177 = vpack.c.b16 %v3018, %v3015
    %v3178 = vpack.c.b16 %v3022, %v3019
    %v3179 = vpack.c.b16 %v3023, %v3020
    %v3180 = vpack.c.b16 %v3024, %v3021
    %v3181 = vpack.c.b16 %v3028, %v3025
    %v3182 = vpack.c.b16 %v3029, %v3026
    %v3183 = vpack.c.b16 %v3030, %v3027
    %v3184 = vpack.c.b16 %v3034, %v3031
    %v3185 = vpack.c.b16 %v3035, %v3032
    %v3186 = vpack.c.b16 %v3036, %v3033
    %v3187 = vpack.c.b16 %v3040, %v3037
    %v3188 = vpack.c.b16 %v3041, %v3038
    %v3189 = vpack.c.b16 %v3042, %v3039
    %v3190 = vpack.c.b16 %v3046, %v3043
    %v3191 = vpack.c.b16 %v3047, %v3044
    %v3192 = vpack.c.b16 %v3048, %v3045
    %v3193 = vpack.c.b16 %v3052, %v3049
    %v3194 = vpack.c.b16 %v3053, %v3050
    %v3195 = vpack.c.b16 %v3054, %v3051
    %v3196 = vpack.c.b16 %v3058, %v3055
    %v3197 = vpack.c.b16 %v3059, %v3056
    %v3198 = vpack.c.b16 %v3060, %v3057
    %v3199 = vpack.c.b16 %v3064, %v3061
    %v3200 = vpack.c.b16 %v3065, %v3062
    %v3201 = vpack.c.b16 %v3066, %v3063
    %v3202 = vpack.c.b16 %v3070, %v3067
    %v3203 = vpack.c.b16 %v3071, %v3068
    %v3204 = vpack.c.b16 %v3072, %v3069
    %v3205 = vpack.c.b16 %v3076, %v3073
    %v3206 = vpack.c.b16 %v3077, %v3074
    %v3207 = vpack.c.b16 %v3078, %v3075
    %v3208 = vpack.c.b16 %v3082, %v3079
    %v3209 = vpack.c.b16 %v3083, %v3080
    %v3210 = vpack.c.b16 %v3084, %v3081
    %v3211 = vpack.c.b16 %v3088, %v3085
    %v3212 = vpack.c.b16 %v3089, %v3086
    %v3213 = vpack.c.b16 %v3090, %v3087
    %v3214 = vpack.c.b16 %v3094, %v3091
    %v3215 = vpack.c.b16 %v3095, %v3092
    %v3216 = vpack.c.b16 %v3096, %v3093
    %v3217 = vpack.c.b16 %v3100, %v3097
    %v3218 = vpack.c.b16 %v3101, %v3098
    %v3219 = vpack.c.b16 %v3102, %v3099
    %v3220 = vpack.c.b16 %v3106, %v3103
    %v3221 = vpack.c.b16 %v3107, %v3104
    %v3222 = vpack.c.b16 %v3108, %v3105
    %v3223 = vpack.c.b16 %v3112, %v3109
    %v3224 = vpack.c.b16 %v3113, %v3110
    %v3225 = vpack.c.b16 %v3114, %v3111
    %v3226 = vpack.c.b16 %v3118, %v3115
    %v3227 = vpack.c.b16 %v3119, %v3116
    %v3228 = vpack.c.b16 %v3120, %v3117
    %v3229 = vpack.c.b16 %v3124, %v3121
    %v3230 = vpack.c.b16 %v3125, %v3122
    %v3231 = vpack.c.b16 %v3126, %v3123
    %v3232 = vpack.c.b16 %v3130, %v3127
    %v3233 = vpack.c.b16 %v3131, %v3128
    %v3234 = vpack.c.b16 %v3132, %v3129
    %v3235 = vpack.c.b16 %v3136, %v3133
    %v3236 = vpack.c.b16 %v3137, %v3134
    %v3237 = vpack.c.b16 %v3138, %v3135
    %v3238 = vpack.c.b16 %v3142, %v3139
    %v3239 = vpack.c.b16 %v3143, %v3140
    %v3240 = vpack.c.b16 %v3144, %v3141
    %3337 = vmatpush.bf16.msra.mxu0 %v3166
    %3338 = vmatpush.bf16.msra.mxu0 %v3163
    %3339 = vmatpush.bf16.msra.mxu0 %v3160
    %3340 = vmatpush.bf16.msra.mxu0 %v3157
    %3341 = vmatpush.bf16.msra.mxu0 %v3154
    %3342 = vmatpush.bf16.msra.mxu0 %v3151
    %3343 = vmatpush.bf16.msra.mxu0 %v3148
    %3344 = vmatpush.bf16.msra.mxu0 %v3145
    %3345 = vmatmul.bf16.gmra.mxu0 %v2685
    %v3346 = vpop.f32.mrf.mxu0
    %v3347 = vadd.f32 %v2819, %v3346
    %v3348 = vpop.f32.mrf.mxu0
    %3349 = vdwg.mxu0
    %3350 = vmatpush.bf16.msra.mxu0 %v3190
    %3351 = vmatpush.bf16.msra.mxu0 %v3187
    %3352 = vmatpush.bf16.msra.mxu0 %v3184
    %3353 = vmatpush.bf16.msra.mxu0 %v3181
    %3354 = vmatpush.bf16.msra.mxu0 %v3178
    %3355 = vmatpush.bf16.msra.mxu0 %v3175
    %3356 = vmatpush.bf16.msra.mxu0 %v3172
    %3357 = vmatpush.bf16.msra.mxu0 %v3169
    %3358 = vmatmul.bf16.gmra.mxu0 %v2686
    %v3359 = vpop.f32.mrf.mxu0
    %v3360 = vadd.f32 %v3347, %v3359
    %v3361 = vpop.f32.mrf.mxu0
    %3362 = vdwg.mxu0
    %3363 = vmatpush.bf16.msra.mxu0 %v3214
    %3364 = vmatpush.bf16.msra.mxu0 %v3211
    %3365 = vmatpush.bf16.msra.mxu0 %v3208
    %3366 = vmatpush.bf16.msra.mxu0 %v3205
    %3367 = vmatpush.bf16.msra.mxu0 %v3202
    %3368 = vmatpush.bf16.msra.mxu0 %v3199
    %3369 = vmatpush.bf16.msra.mxu0 %v3196
    %3370 = vmatpush.bf16.msra.mxu0 %v3193
    %3371 = vmatmul.bf16.gmra.mxu0 %v2687
    %v3372 = vpop.f32.mrf.mxu0
    %v3373 = vadd.f32 %v3360, %v3372
    %v3374 = vpop.f32.mrf.mxu0
    %3375 = vdwg.mxu0
    %3376 = vmatpush.bf16.msra.mxu0 %v3238
    %3377 = vmatpush.bf16.msra.mxu0 %v3235
    %3378 = vmatpush.bf16.msra.mxu0 %v3232
    %3379 = vmatpush.bf16.msra.mxu0 %v3229
    %3380 = vmatpush.bf16.msra.mxu0 %v3226
    %3381 = vmatpush.bf16.msra.mxu0 %v3223
    %3382 = vmatpush.bf16.msra.mxu0 %v3220
    %3383 = vmatpush.bf16.msra.mxu0 %v3217
    %3384 = vmatmul.bf16.gmra.mxu0 %v2688
    %v3385 = vpop.f32.mrf.mxu0
    %v3386 = vadd.f32 %v3373, %v3385
    %v3387 = vpop.f32.mrf.mxu0
    %3388 = vdwg.mxu0
    %3389 = vmatpush.bf16.msra.mxu0 %v3167
    %3390 = vmatpush.bf16.msra.mxu0 %v3164
    %3391 = vmatpush.bf16.msra.mxu0 %v3161
    %3392 = vmatpush.bf16.msra.mxu0 %v3158
    %3393 = vmatpush.bf16.msra.mxu0 %v3155
    %3394 = vmatpush.bf16.msra.mxu0 %v3152
    %3395 = vmatpush.bf16.msra.mxu0 %v3149
    %3396 = vmatpush.bf16.msra.mxu0 %v3146
    %3397 = vmatmul.bf16.gmra.mxu0 %v2685
    %v3398 = vpop.f32.mrf.mxu0
    %v3399 = vadd.f32 %v2820, %v3398
    %v3400 = vpop.f32.mrf.mxu0
    %3401 = vdwg.mxu0
    %3402 = vmatpush.bf16.msra.mxu0 %v3191
    %3403 = vmatpush.bf16.msra.mxu0 %v3188
    %3404 = vmatpush.bf16.msra.mxu0 %v3185
    %3405 = vmatpush.bf16.msra.mxu0 %v3182
    %3406 = vmatpush.bf16.msra.mxu0 %v3179
    %3407 = vmatpush.bf16.msra.mxu0 %v3176
    %3408 = vmatpush.bf16.msra.mxu0 %v3173
    %3409 = vmatpush.bf16.msra.mxu0 %v3170
    %3410 = vmatmul.bf16.gmra.mxu0 %v2686
    %v3411 = vpop.f32.mrf.mxu0
    %v3412 = vadd.f32 %v3399, %v3411
    %v3413 = vpop.f32.mrf.mxu0
    %3414 = vdwg.mxu0
    %3415 = vmatpush.bf16.msra.mxu0 %v3215
    %3416 = vmatpush.bf16.msra.mxu0 %v3212
    %3417 = vmatpush.bf16.msra.mxu0 %v3209
    %3418 = vmatpush.bf16.msra.mxu0 %v3206
    %3419 = vmatpush.bf16.msra.mxu0 %v3203
    %3420 = vmatpush.bf16.msra.mxu0 %v3200
    %3421 = vmatpush.bf16.msra.mxu0 %v3197
    %3422 = vmatpush.bf16.msra.mxu0 %v3194
    %3423 = vmatmul.bf16.gmra.mxu0 %v2687
    %v3424 = vpop.f32.mrf.mxu0
    %v3425 = vadd.f32 %v3412, %v3424
    %v3426 = vpop.f32.mrf.mxu0
    %3427 = vdwg.mxu0
    %3428 = vmatpush.bf16.msra.mxu0 %v3239
    %3429 = vmatpush.bf16.msra.mxu0 %v3236
    %3430 = vmatpush.bf16.msra.mxu0 %v3233
    %3431 = vmatpush.bf16.msra.mxu0 %v3230
    %3432 = vmatpush.bf16.msra.mxu0 %v3227
    %3433 = vmatpush.bf16.msra.mxu0 %v3224
    %3434 = vmatpush.bf16.msra.mxu0 %v3221
    %3435 = vmatpush.bf16.msra.mxu0 %v3218
    %3436 = vmatmul.bf16.gmra.mxu0 %v2688
    %v3437 = vpop.f32.mrf.mxu0
    %v3438 = vadd.f32 %v3425, %v3437
    %v3439 = vpop.f32.mrf.mxu0
    %3440 = vdwg.mxu0
    %3441 = vmatpush.bf16.msra.mxu0 %v3168
    %3442 = vmatpush.bf16.msra.mxu0 %v3165
    %3443 = vmatpush.bf16.msra.mxu0 %v3162
    %3444 = vmatpush.bf16.msra.mxu0 %v3159
    %3445 = vmatpush.bf16.msra.mxu0 %v3156
    %3446 = vmatpush.bf16.msra.mxu0 %v3153
    %3447 = vmatpush.bf16.msra.mxu0 %v3150
    %3448 = vmatpush.bf16.msra.mxu0 %v3147
    %3449 = vmatmul.bf16.gmra.mxu0 %v2685
    %v3450 = vpop.f32.mrf.mxu0
    %v3451 = vadd.f32 %v2821, %v3450
    %v3452 = vpop.f32.mrf.mxu0
    %3453 = vdwg.mxu0
    %3454 = vmatpush.bf16.msra.mxu0 %v3192
    %3455 = vmatpush.bf16.msra.mxu0 %v3189
    %3456 = vmatpush.bf16.msra.mxu0 %v3186
    %3457 = vmatpush.bf16.msra.mxu0 %v3183
    %3458 = vmatpush.bf16.msra.mxu0 %v3180
    %3459 = vmatpush.bf16.msra.mxu0 %v3177
    %3460 = vmatpush.bf16.msra.mxu0 %v3174
    %3461 = vmatpush.bf16.msra.mxu0 %v3171
    %3462 = vmatmul.bf16.gmra.mxu0 %v2686
    %v3463 = vpop.f32.mrf.mxu0
    %v3464 = vadd.f32 %v3451, %v3463
    %v3465 = vpop.f32.mrf.mxu0
    %3466 = vdwg.mxu0
    %3467 = vmatpush.bf16.msra.mxu0 %v3216
    %3468 = vmatpush.bf16.msra.mxu0 %v3213
    %3469 = vmatpush.bf16.msra.mxu0 %v3210
    %3470 = vmatpush.bf16.msra.mxu0 %v3207
    %3471 = vmatpush.bf16.msra.mxu0 %v3204
    %3472 = vmatpush.bf16.msra.mxu0 %v3201
    %3473 = vmatpush.bf16.msra.mxu0 %v3198
    %3474 = vmatpush.bf16.msra.mxu0 %v3195
    %3475 = vmatmul.bf16.gmra.mxu0 %v2687
    %v3476 = vpop.f32.mrf.mxu0
    %v3477 = vadd.f32 %v3464, %v3476
    %v3478 = vpop.f32.mrf.mxu0
    %3479 = vdwg.mxu0
    %3480 = vmatpush.bf16.msra.mxu0 %v3240
    %3481 = vmatpush.bf16.msra.mxu0 %v3237
    %3482 = vmatpush.bf16.msra.mxu0 %v3234
    %3483 = vmatpush.bf16.msra.mxu0 %v3231
    %3484 = vmatpush.bf16.msra.mxu0 %v3228
    %3485 = vmatpush.bf16.msra.mxu0 %v3225
    %3486 = vmatpush.bf16.msra.mxu0 %v3222
    %3487 = vmatpush.bf16.msra.mxu0 %v3219
    %3488 = vmatmul.bf16.gmra.mxu0 %v2688
    %v3489 = vpop.f32.mrf.mxu0
    %v3490 = vadd.f32 %v3477, %v3489
    %v3491 = vpop.f32.mrf.mxu0
    %3492 = vdwg.mxu0
    %v3493 = vmax.f32 %v3386, 0.0
    %v3494 = vmax.f32 %v3438, 0.0
    %v3495 = vmax.f32 %v3490, 0.0
    %v3496 = vpack.c.bf16 %v3493, %v3493
    %v3497 = vpack.c.bf16 %v3494, %v3494
    %v3498 = vpack.c.bf16 %v3495, %v3495
    %v3499 = vld [vmem:[%s9] sm:$0xff]
    %v3500 = vld [vmem:[%s9 + $0x8] sm:$0xf]
    %v3501 = vld [vmem:[%s9 + $0xc] sm:$0xff]
    %v3502 = vld [vmem:[%s9 + $0x14] sm:$0xf]
    %v3503 = vld [vmem:[%s9 + $0x18] sm:$0xff]
    %v3504 = vld [vmem:[%s9 + $0x20] sm:$0xf]
    %v3505 = vld [vmem:[%s9 + $0x24] sm:$0xff]
    %v3506 = vld [vmem:[%s9 + $0x2c] sm:$0xf]
    %v3507 = vld [vmem:[%s9 + $0x30] sm:$0xff]
    %v3508 = vld [vmem:[%s9 + $0x38] sm:$0xf]
    %v3509 = vld [vmem:[%s9 + $0x3c] sm:$0xff]
    %v3510 = vld [vmem:[%s9 + $0x44] sm:$0xf]
    %v3511 = vld [vmem:[%s9 + $0x48] sm:$0xff]
    %v3512 = vld [vmem:[%s9 + $0x50] sm:$0xf]
    %v3513 = vld [vmem:[%s9 + $0x54] sm:$0xff]
    %v3514 = vld [vmem:[%s9 + $0x5c] sm:$0xf]
    %v3515 = vld [vmem:[%s9 + $0x60] sm:$0xff]
    %v3516 = vld [vmem:[%s9 + $0x68] sm:$0xf]
    %v3517 = vld [vmem:[%s9 + $0x6c] sm:$0xff]
    %v3518 = vld [vmem:[%s9 + $0x74] sm:$0xf]
    %v3519 = vld [vmem:[%s9 + $0x78] sm:$0xff]
    %v3520 = vld [vmem:[%s9 + $0x80] sm:$0xf]
    %v3521 = vld [vmem:[%s9 + $0x84] sm:$0xff]
    %v3522 = vld [vmem:[%s9 + $0x8c] sm:$0xf]
    %v3523 = vld [vmem:[%s9 + $0x90] sm:$0xff]
    %v3524 = vld [vmem:[%s9 + $0x98] sm:$0xf]
    %v3525 = vld [vmem:[%s9 + $0x9c] sm:$0xff]
    %v3526 = vld [vmem:[%s9 + $0xa4] sm:$0xf]
    %v3527 = vld [vmem:[%s9 + $0xa8] sm:$0xff]
    %v3528 = vld [vmem:[%s9 + $0xb0] sm:$0xf]
    %v3529 = vld [vmem:[%s9 + $0xb4] sm:$0xff]
    %v3530 = vld [vmem:[%s9 + $0xbc] sm:$0xf]
    %v3531 = vld [vmem:[%s9 + $0xc0] sm:$0xff]
    %v3532 = vld [vmem:[%s9 + $0xc8] sm:$0xf]
    %v3533 = vld [vmem:[%s9 + $0xcc] sm:$0xff]
    %v3534 = vld [vmem:[%s9 + $0xd4] sm:$0xf]
    %v3535 = vld [vmem:[%s9 + $0xd8] sm:$0xff]
    %v3536 = vld [vmem:[%s9 + $0xe0] sm:$0xf]
    %v3537 = vld [vmem:[%s9 + $0xe4] sm:$0xff]
    %v3538 = vld [vmem:[%s9 + $0xec] sm:$0xf]
    %v3539 = vld [vmem:[%s9 + $0xf0] sm:$0xff]
    %v3540 = vld [vmem:[%s9 + $0xf8] sm:$0xf]
    %v3541 = vld [vmem:[%s9 + $0xfc] sm:$0xff]
    %v3542 = vld [vmem:[%s9 + $0x104] sm:$0xf]
    %v3543 = vld [vmem:[%s9 + $0x108] sm:$0xff]
    %v3544 = vld [vmem:[%s9 + $0x110] sm:$0xf]
    %v3545 = vld [vmem:[%s9 + $0x114] sm:$0xff]
    %v3546 = vld [vmem:[%s9 + $0x11c] sm:$0xf]
    %v3547 = vld [vmem:[%s9 + $0x120] sm:$0xff]
    %v3548 = vld [vmem:[%s9 + $0x128] sm:$0xf]
    %v3549 = vld [vmem:[%s9 + $0x12c] sm:$0xff]
    %v3550 = vld [vmem:[%s9 + $0x134] sm:$0xf]
    %v3551 = vld [vmem:[%s9 + $0x138] sm:$0xff]
    %v3552 = vld [vmem:[%s9 + $0x140] sm:$0xf]
    %v3553 = vld [vmem:[%s9 + $0x144] sm:$0xff]
    %v3554 = vld [vmem:[%s9 + $0x14c] sm:$0xf]
    %v3555 = vld [vmem:[%s9 + $0x150] sm:$0xff]
    %v3556 = vld [vmem:[%s9 + $0x158] sm:$0xf]
    %v3557 = vld [vmem:[%s9 + $0x15c] sm:$0xff]
    %v3558 = vld [vmem:[%s9 + $0x164] sm:$0xf]
    %v3559 = vld [vmem:[%s9 + $0x168] sm:$0xff]
    %v3560 = vld [vmem:[%s9 + $0x170] sm:$0xf]
    %v3561 = vld [vmem:[%s9 + $0x174] sm:$0xff]
    %v3562 = vld [vmem:[%s9 + $0x17c] sm:$0xf]
    %v3563 = vld [vmem:[%s9 + $0x180] sm:$0xff]
    %v3564 = vld [vmem:[%s9 + $0x188] sm:$0xf]
    %v3565 = vld [vmem:[%s9 + $0x18c] sm:$0xff]
    %v3566 = vld [vmem:[%s9 + $0x194] sm:$0xf]
    %v3567 = vld [vmem:[%s9 + $0x198] sm:$0xff]
    %v3568 = vld [vmem:[%s9 + $0x1a0] sm:$0xf]
    %v3569 = vld [vmem:[%s9 + $0x1a4] sm:$0xff]
    %v3570 = vld [vmem:[%s9 + $0x1ac] sm:$0xf]
    %v3571 = vld [vmem:[%s9 + $0x1b0] sm:$0xff]
    %v3572 = vld [vmem:[%s9 + $0x1b8] sm:$0xf]
    %v3573 = vld [vmem:[%s9 + $0x1bc] sm:$0xff]
    %v3574 = vld [vmem:[%s9 + $0x1c4] sm:$0xf]
    %v3575 = vld [vmem:[%s9 + $0x1c8] sm:$0xff]
    %v3576 = vld [vmem:[%s9 + $0x1d0] sm:$0xf]
    %v3577 = vld [vmem:[%s9 + $0x1d4] sm:$0xff]
    %v3578 = vld [vmem:[%s9 + $0x1dc] sm:$0xf]
    %v3579 = vld [vmem:[%s9 + $0x1e0] sm:$0xff]
    %v3580 = vld [vmem:[%s9 + $0x1e8] sm:$0xf]
    %v3581 = vld [vmem:[%s9 + $0x1ec] sm:$0xff]
    %v3582 = vld [vmem:[%s9 + $0x1f4] sm:$0xf]
    %v3583 = vld [vmem:[%s9 + $0x1f8] sm:$0xff]
    %v3584 = vld [vmem:[%s9 + $0x200] sm:$0xf]
    %v3585 = vld [vmem:[%s9 + $0x204] sm:$0xff]
    %v3586 = vld [vmem:[%s9 + $0x20c] sm:$0xf]
    %v3587 = vld [vmem:[%s9 + $0x210] sm:$0xff]
    %v3588 = vld [vmem:[%s9 + $0x218] sm:$0xf]
    %v3589 = vld [vmem:[%s9 + $0x21c] sm:$0xff]
    %v3590 = vld [vmem:[%s9 + $0x224] sm:$0xf]
    %v3591 = vld [vmem:[%s9 + $0x228] sm:$0xff]
    %v3592 = vld [vmem:[%s9 + $0x230] sm:$0xf]
    %v3593 = vld [vmem:[%s9 + $0x234] sm:$0xff]
    %v3594 = vld [vmem:[%s9 + $0x23c] sm:$0xf]
    %v3595 = vld [vmem:[%s10] sm:$0x7]
    %v3597 = vperm.slane %v3595, 0
    %v3598 = vperm.slane %v3595, 1
    %v3599 = vperm.slane %v3595, 2
    %v3699 = vunpack.c.l.b16 %v3499
    %v3700 = vunpack.c.h.b16 %v3499
    %v3701 = vunpack.c.l.b16 %v3500
    %v3702 = vunpack.c.l.b16 %v3501
    %v3703 = vunpack.c.h.b16 %v3501
    %v3704 = vunpack.c.l.b16 %v3502
    %v3705 = vunpack.c.l.b16 %v3503
    %v3706 = vunpack.c.h.b16 %v3503
    %v3707 = vunpack.c.l.b16 %v3504
    %v3708 = vunpack.c.l.b16 %v3505
    %v3709 = vunpack.c.h.b16 %v3505
    %v3710 = vunpack.c.l.b16 %v3506
    %v3711 = vunpack.c.l.b16 %v3507
    %v3712 = vunpack.c.h.b16 %v3507
    %v3713 = vunpack.c.l.b16 %v3508
    %v3714 = vunpack.c.l.b16 %v3509
    %v3715 = vunpack.c.h.b16 %v3509
    %v3716 = vunpack.c.l.b16 %v3510
    %v3717 = vunpack.c.l.b16 %v3511
    %v3718 = vunpack.c.h.b16 %v3511
    %v3719 = vunpack.c.l.b16 %v3512
    %v3720 = vunpack.c.l.b16 %v3513
    %v3721 = vunpack.c.h.b16 %v3513
    %v3722 = vunpack.c.l.b16 %v3514
    %v3723 = vunpack.c.l.b16 %v3515
    %v3724 = vunpack.c.h.b16 %v3515
    %v3725 = vunpack.c.l.b16 %v3516
    %v3726 = vunpack.c.l.b16 %v3517
    %v3727 = vunpack.c.h.b16 %v3517
    %v3728 = vunpack.c.l.b16 %v3518
    %v3729 = vunpack.c.l.b16 %v3519
    %v3730 = vunpack.c.h.b16 %v3519
    %v3731 = vunpack.c.l.b16 %v3520
    %v3732 = vunpack.c.l.b16 %v3521
    %v3733 = vunpack.c.h.b16 %v3521
    %v3734 = vunpack.c.l.b16 %v3522
    %v3735 = vunpack.c.l.b16 %v3523
    %v3736 = vunpack.c.h.b16 %v3523
    %v3737 = vunpack.c.l.b16 %v3524
    %v3738 = vunpack.c.l.b16 %v3525
    %v3739 = vunpack.c.h.b16 %v3525
    %v3740 = vunpack.c.l.b16 %v3526
    %v3741 = vunpack.c.l.b16 %v3527
    %v3742 = vunpack.c.h.b16 %v3527
    %v3743 = vunpack.c.l.b16 %v3528
    %v3744 = vunpack.c.l.b16 %v3529
    %v3745 = vunpack.c.h.b16 %v3529
    %v3746 = vunpack.c.l.b16 %v3530
    %v3747 = vunpack.c.l.b16 %v3531
    %v3748 = vunpack.c.h.b16 %v3531
    %v3749 = vunpack.c.l.b16 %v3532
    %v3750 = vunpack.c.l.b16 %v3533
    %v3751 = vunpack.c.h.b16 %v3533
    %v3752 = vunpack.c.l.b16 %v3534
    %v3753 = vunpack.c.l.b16 %v3535
    %v3754 = vunpack.c.h.b16 %v3535
    %v3755 = vunpack.c.l.b16 %v3536
    %v3756 = vunpack.c.l.b16 %v3537
    %v3757 = vunpack.c.h.b16 %v3537
    %v3758 = vunpack.c.l.b16 %v3538
    %v3759 = vunpack.c.l.b16 %v3539
    %v3760 = vunpack.c.h.b16 %v3539
    %v3761 = vunpack.c.l.b16 %v3540
    %v3762 = vunpack.c.l.b16 %v3541
    %v3763 = vunpack.c.h.b16 %v3541
    %v3764 = vunpack.c.l.b16 %v3542
    %v3765 = vunpack.c.l.b16 %v3543
    %v3766 = vunpack.c.h.b16 %v3543
    %v3767 = vunpack.c.l.b16 %v3544
    %v3768 = vunpack.c.l.b16 %v3545
    %v3769 = vunpack.c.h.b16 %v3545
    %v3770 = vunpack.c.l.b16 %v3546
    %v3771 = vunpack.c.l.b16 %v3547
    %v3772 = vunpack.c.h.b16 %v3547
    %v3773 = vunpack.c.l.b16 %v3548
    %v3774 = vunpack.c.l.b16 %v3549
    %v3775 = vunpack.c.h.b16 %v3549
    %v3776 = vunpack.c.l.b16 %v3550
    %v3777 = vunpack.c.l.b16 %v3551
    %v3778 = vunpack.c.h.b16 %v3551
    %v3779 = vunpack.c.l.b16 %v3552
    %v3780 = vunpack.c.l.b16 %v3553
    %v3781 = vunpack.c.h.b16 %v3553
    %v3782 = vunpack.c.l.b16 %v3554
    %v3783 = vunpack.c.l.b16 %v3555
    %v3784 = vunpack.c.h.b16 %v3555
    %v3785 = vunpack.c.l.b16 %v3556
    %v3786 = vunpack.c.l.b16 %v3557
    %v3787 = vunpack.c.h.b16 %v3557
    %v3788 = vunpack.c.l.b16 %v3558
    %v3789 = vunpack.c.l.b16 %v3559
    %v3790 = vunpack.c.h.b16 %v3559
    %v3791 = vunpack.c.l.b16 %v3560
    %v3792 = vunpack.c.l.b16 %v3561
    %v3793 = vunpack.c.h.b16 %v3561
    %v3794 = vunpack.c.l.b16 %v3562
    %v3795 = vunpack.c.l.b16 %v3563
    %v3796 = vunpack.c.h.b16 %v3563
    %v3797 = vunpack.c.l.b16 %v3564
    %v3798 = vunpack.c.l.b16 %v3565
    %v3799 = vunpack.c.h.b16 %v3565
    %v3800 = vunpack.c.l.b16 %v3566
    %v3801 = vunpack.c.l.b16 %v3567
    %v3802 = vunpack.c.h.b16 %v3567
    %v3803 = vunpack.c.l.b16 %v3568
    %v3804 = vunpack.c.l.b16 %v3569
    %v3805 = vunpack.c.h.b16 %v3569
    %v3806 = vunpack.c.l.b16 %v3570
    %v3807 = vunpack.c.l.b16 %v3571
    %v3808 = vunpack.c.h.b16 %v3571
    %v3809 = vunpack.c.l.b16 %v3572
    %v3810 = vunpack.c.l.b16 %v3573
    %v3811 = vunpack.c.h.b16 %v3573
    %v3812 = vunpack.c.l.b16 %v3574
    %v3813 = vunpack.c.l.b16 %v3575
    %v3814 = vunpack.c.h.b16 %v3575
    %v3815 = vunpack.c.l.b16 %v3576
    %v3816 = vunpack.c.l.b16 %v3577
    %v3817 = vunpack.c.h.b16 %v3577
    %v3818 = vunpack.c.l.b16 %v3578
    %v3819 = vunpack.c.l.b16 %v3579
    %v3820 = vunpack.c.h.b16 %v3579
    %v3821 = vunpack.c.l.b16 %v3580
    %v3822 = vunpack.c.l.b16 %v3581
    %v3823 = vunpack.c.h.b16 %v3581
    %v3824 = vunpack.c.l.b16 %v3582
    %v3825 = vunpack.c.l.b16 %v3583
    %v3826 = vunpack.c.h.b16 %v3583
    %v3827 = vunpack.c.l.b16 %v3584
    %v3828 = vunpack.c.l.b16 %v3585
    %v3829 = vunpack.c.h.b16 %v3585
    %v3830 = vunpack.c.l.b16 %v3586
    %v3831 = vunpack.c.l.b16 %v3587
    %v3832 = vunpack.c.h.b16 %v3587
    %v3833 = vunpack.c.l.b16 %v3588
    %v3834 = vunpack.c.l.b16 %v3589
    %v3835 = vunpack.c.h.b16 %v3589
    %v3836 = vunpack.c.l.b16 %v3590
    %v3837 = vunpack.c.l.b16 %v3591
    %v3838 = vunpack.c.h.b16 %v3591
    %v3839 = vunpack.c.l.b16 %v3592
    %v3840 = vunpack.c.l.b16 %v3593
    %v3841 = vunpack.c.h.b16 %v3593
    %v3842 = vunpack.c.l.b16 %v3594
    %v3843 = vpack.c.b16 %v3702, %v3699
    %v3844 = vpack.c.b16 %v3703, %v3700
    %v3845 = vpack.c.b16 %v3704, %v3701
    %v3846 = vpack.c.b16 %v3708, %v3705
    %v3847 = vpack.c.b16 %v3709, %v3706
    %v3848 = vpack.c.b16 %v3710, %v3707
    %v3849 = vpack.c.b16 %v3714, %v3711
    %v3850 = vpack.c.b16 %v3715, %v3712
    %v3851 = vpack.c.b16 %v3716, %v3713
    %v3852 = vpack.c.b16 %v3720, %v3717
    %v3853 = vpack.c.b16 %v3721, %v3718
    %v3854 = vpack.c.b16 %v3722, %v3719
    %v3855 = vpack.c.b16 %v3726, %v3723
    %v3856 = vpack.c.b16 %v3727, %v3724
    %v3857 = vpack.c.b16 %v3728, %v3725
    %v3858 = vpack.c.b16 %v3732, %v3729
    %v3859 = vpack.c.b16 %v3733, %v3730
    %v3860 = vpack.c.b16 %v3734, %v3731
    %v3861 = vpack.c.b16 %v3738, %v3735
    %v3862 = vpack.c.b16 %v3739, %v3736
    %v3863 = vpack.c.b16 %v3740, %v3737
    %v3864 = vpack.c.b16 %v3744, %v3741
    %v3865 = vpack.c.b16 %v3745, %v3742
    %v3866 = vpack.c.b16 %v3746, %v3743
    %v3867 = vpack.c.b16 %v3750, %v3747
    %v3868 = vpack.c.b16 %v3751, %v3748
    %v3869 = vpack.c.b16 %v3752, %v3749
    %v3870 = vpack.c.b16 %v3756, %v3753
    %v3871 = vpack.c.b16 %v3757, %v3754
    %v3872 = vpack.c.b16 %v3758, %v3755
    %v3873 = vpack.c.b16 %v3762, %v3759
    %v3874 = vpack.c.b16 %v3763, %v3760
    %v3875 = vpack.c.b16 %v3764, %v3761
    %v3876 = vpack.c.b16 %v3768, %v3765
    %v3877 = vpack.c.b16 %v3769, %v3766
    %v3878 = vpack.c.b16 %v3770, %v3767
    %v3879 = vpack.c.b16 %v3774, %v3771
    %v3880 = vpack.c.b16 %v3775, %v3772
    %v3881 = vpack.c.b16 %v3776, %v3773
    %v3882 = vpack.c.b16 %v3780, %v3777
    %v3883 = vpack.c.b16 %v3781, %v3778
    %v3884 = vpack.c.b16 %v3782, %v3779
    %v3885 = vpack.c.b16 %v3786, %v3783
    %v3886 = vpack.c.b16 %v3787, %v3784
    %v3887 = vpack.c.b16 %v3788, %v3785
    %v3888 = vpack.c.b16 %v3792, %v3789
    %v3889 = vpack.c.b16 %v3793, %v3790
    %v3890 = vpack.c.b16 %v3794, %v3791
    %v3891 = vpack.c.b16 %v3798, %v3795
    %v3892 = vpack.c.b16 %v3799, %v3796
    %v3893 = vpack.c.b16 %v3800, %v3797
    %v3894 = vpack.c.b16 %v3804, %v3801
    %v3895 = vpack.c.b16 %v3805, %v3802
    %v3896 = vpack.c.b16 %v3806, %v3803
    %v3897 = vpack.c.b16 %v3810, %v3807
    %v3898 = vpack.c.b16 %v3811, %v3808
    %v3899 = vpack.c.b16 %v3812, %v3809
    %v3900 = vpack.c.b16 %v3816, %v3813
    %v3901 = vpack.c.b16 %v3817, %v3814
    %v3902 = vpack.c.b16 %v3818, %v3815
    %v3903 = vpack.c.b16 %v3822, %v3819
    %v3904 = vpack.c.b16 %v3823, %v3820
    %v3905 = vpack.c.b16 %v3824, %v3821
    %v3906 = vpack.c.b16 %v3828, %v3825
    %v3907 = vpack.c.b16 %v3829, %v3826
    %v3908 = vpack.c.b16 %v3830, %v3827
    %v3909 = vpack.c.b16 %v3834, %v3831
    %v3910 = vpack.c.b16 %v3835, %v3832
    %v3911 = vpack.c.b16 %v3836, %v3833
    %v3912 = vpack.c.b16 %v3840, %v3837
    %v3913 = vpack.c.b16 %v3841, %v3838
    %v3914 = vpack.c.b16 %v3842, %v3839
    %3987 = vmatpush.bf16.msra.mxu0 %v3864
    %3988 = vmatpush.bf16.msra.mxu0 %v3861
    %3989 = vmatpush.bf16.msra.mxu0 %v3858
    %3990 = vmatpush.bf16.msra.mxu0 %v3855
    %3991 = vmatpush.bf16.msra.mxu0 %v3852
    %3992 = vmatpush.bf16.msra.mxu0 %v3849
    %3993 = vmatpush.bf16.msra.mxu0 %v3846
    %3994 = vmatpush.bf16.msra.mxu0 %v3843
    %3995 = vmatmul.bf16.gmra.mxu0 %v3496
    %v3996 = vpop.f32.mrf.mxu0
    %v3997 = vadd.f32 %v3597, %v3996
    %v3998 = vpop.f32.mrf.mxu0
    %3999 = vdwg.mxu0
    %4000 = vmatpush.bf16.msra.mxu0 %v3888
    %4001 = vmatpush.bf16.msra.mxu0 %v3885
    %4002 = vmatpush.bf16.msra.mxu0 %v3882
    %4003 = vmatpush.bf16.msra.mxu0 %v3879
    %4004 = vmatpush.bf16.msra.mxu0 %v3876
    %4005 = vmatpush.bf16.msra.mxu0 %v3873
    %4006 = vmatpush.bf16.msra.mxu0 %v3870
    %4007 = vmatpush.bf16.msra.mxu0 %v3867
    %4008 = vmatmul.bf16.gmra.mxu0 %v3497
    %v4009 = vpop.f32.mrf.mxu0
    %v4010 = vadd.f32 %v3997, %v4009
    %v4011 = vpop.f32.mrf.mxu0
    %4012 = vdwg.mxu0
    %4013 = vmatpush.bf16.msra.mxu0 %v3912
    %4014 = vmatpush.bf16.msra.mxu0 %v3909
    %4015 = vmatpush.bf16.msra.mxu0 %v3906
    %4016 = vmatpush.bf16.msra.mxu0 %v3903
    %4017 = vmatpush.bf16.msra.mxu0 %v3900
    %4018 = vmatpush.bf16.msra.mxu0 %v3897
    %4019 = vmatpush.bf16.msra.mxu0 %v3894
    %4020 = vmatpush.bf16.msra.mxu0 %v3891
    %4021 = vmatmul.bf16.gmra.mxu0 %v3498
    %v4022 = vpop.f32.mrf.mxu0
    %v4023 = vadd.f32 %v4010, %v4022
    %v4024 = vpop.f32.mrf.mxu0
    %4025 = vdwg.mxu0
    %4026 = vmatpush.bf16.msra.mxu0 %v3865
    %4027 = vmatpush.bf16.msra.mxu0 %v3862
    %4028 = vmatpush.bf16.msra.mxu0 %v3859
    %4029 = vmatpush.bf16.msra.mxu0 %v3856
    %4030 = vmatpush.bf16.msra.mxu0 %v3853
    %4031 = vmatpush.bf16.msra.mxu0 %v3850
    %4032 = vmatpush.bf16.msra.mxu0 %v3847
    %4033 = vmatpush.bf16.msra.mxu0 %v3844
    %4034 = vmatmul.bf16.gmra.mxu0 %v3496
    %v4035 = vpop.f32.mrf.mxu0
    %v4036 = vadd.f32 %v3598, %v4035
    %v4037 = vpop.f32.mrf.mxu0
    %4038 = vdwg.mxu0
    %4039 = vmatpush.bf16.msra.mxu0 %v3889
    %4040 = vmatpush.bf16.msra.mxu0 %v3886
    %4041 = vmatpush.bf16.msra.mxu0 %v3883
    %4042 = vmatpush.bf16.msra.mxu0 %v3880
    %4043 = vmatpush.bf16.msra.mxu0 %v3877
    %4044 = vmatpush.bf16.msra.mxu0 %v3874
    %4045 = vmatpush.bf16.msra.mxu0 %v3871
    %4046 = vmatpush.bf16.msra.mxu0 %v3868
    %4047 = vmatmul.bf16.gmra.mxu0 %v3497
    %v4048 = vpop.f32.mrf.mxu0
    %v4049 = vadd.f32 %v4036, %v4048
    %v4050 = vpop.f32.mrf.mxu0
    %4051 = vdwg.mxu0
    %4052 = vmatpush.bf16.msra.mxu0 %v3913
    %4053 = vmatpush.bf16.msra.mxu0 %v3910
    %4054 = vmatpush.bf16.msra.mxu0 %v3907
    %4055 = vmatpush.bf16.msra.mxu0 %v3904
    %4056 = vmatpush.bf16.msra.mxu0 %v3901
    %4057 = vmatpush.bf16.msra.mxu0 %v3898
    %4058 = vmatpush.bf16.msra.mxu0 %v3895
    %4059 = vmatpush.bf16.msra.mxu0 %v3892
    %4060 = vmatmul.bf16.gmra.mxu0 %v3498
    %v4061 = vpop.f32.mrf.mxu0
    %v4062 = vadd.f32 %v4049, %v4061
    %v4063 = vpop.f32.mrf.mxu0
    %4064 = vdwg.mxu0
    %4065 = vmatpush.bf16.msra.mxu0 %v3866
    %4066 = vmatpush.bf16.msra.mxu0 %v3863
    %4067 = vmatpush.bf16.msra.mxu0 %v3860
    %4068 = vmatpush.bf16.msra.mxu0 %v3857
    %4069 = vmatpush.bf16.msra.mxu0 %v3854
    %4070 = vmatpush.bf16.msra.mxu0 %v3851
    %4071 = vmatpush.bf16.msra.mxu0 %v3848
    %4072 = vmatpush.bf16.msra.mxu0 %v3845
    %4073 = vmatmul.bf16.gmra.mxu0 %v3496
    %v4074 = vpop.f32.mrf.mxu0
    %v4075 = vadd.f32 %v3599, %v4074
    %v4076 = vpop.f32.mrf.mxu0
    %4077 = vdwg.mxu0
    %4078 = vmatpush.bf16.msra.mxu0 %v3890
    %4079 = vmatpush.bf16.msra.mxu0 %v3887
    %4080 = vmatpush.bf16.msra.mxu0 %v3884
    %4081 = vmatpush.bf16.msra.mxu0 %v3881
    %4082 = vmatpush.bf16.msra.mxu0 %v3878
    %4083 = vmatpush.bf16.msra.mxu0 %v3875
    %4084 = vmatpush.bf16.msra.mxu0 %v3872
    %4085 = vmatpush.bf16.msra.mxu0 %v3869
    %4086 = vmatmul.bf16.gmra.mxu0 %v3497
    %v4087 = vpop.f32.mrf.mxu0
    %v4088 = vadd.f32 %v4075, %v4087
    %v4089 = vpop.f32.mrf.mxu0
    %4090 = vdwg.mxu0
    %4091 = vmatpush.bf16.msra.mxu0 %v3914
    %4092 = vmatpush.bf16.msra.mxu0 %v3911
    %4093 = vmatpush.bf16.msra.mxu0 %v3908
    %4094 = vmatpush.bf16.msra.mxu0 %v3905
    %4095 = vmatpush.bf16.msra.mxu0 %v3902
    %4096 = vmatpush.bf16.msra.mxu0 %v3899
    %4097 = vmatpush.bf16.msra.mxu0 %v3896
    %4098 = vmatpush.bf16.msra.mxu0 %v3893
    %4099 = vmatmul.bf16.gmra.mxu0 %v3498
    %v4100 = vpop.f32.mrf.mxu0
    %v4101 = vadd.f32 %v4088, %v4100
    %v4102 = vpop.f32.mrf.mxu0
    %4103 = vdwg.mxu0
    %v4104 = vmax.f32 %v4023, 0.0
    %v4105 = vmax.f32 %v4062, 0.0
    %v4106 = vmax.f32 %v4101, 0.0
    %v4107 = vpack.c.bf16 %v4104, %v4104
    %v4108 = vpack.c.bf16 %v4105, %v4105
    %v4109 = vpack.c.bf16 %v4106, %v4106
    %v4110 = vld [vmem:[%s11] sm:$0xf]
    %v4111 = vld [vmem:[%s11 + $0x4] sm:$0xf]
    %v4112 = vld [vmem:[%s11 + $0x8] sm:$0xf]
    %v4113 = vld [vmem:[%s11 + $0xc] sm:$0xf]
    %v4114 = vld [vmem:[%s11 + $0x10] sm:$0xf]
    %v4115 = vld [vmem:[%s11 + $0x14] sm:$0xf]
    %v4116 = vld [vmem:[%s11 + $0x18] sm:$0xf]
    %v4117 = vld [vmem:[%s11 + $0x1c] sm:$0xf]
    %v4118 = vld [vmem:[%s11 + $0x20] sm:$0xf]
    %v4119 = vld [vmem:[%s11 + $0x24] sm:$0xf]
    %v4120 = vld [vmem:[%s11 + $0x28] sm:$0xf]
    %v4121 = vld [vmem:[%s11 + $0x2c] sm:$0xf]
    %v4122 = vld [vmem:[%s11 + $0x30] sm:$0xf]
    %v4123 = vld [vmem:[%s11 + $0x34] sm:$0xf]
    %v4124 = vld [vmem:[%s11 + $0x38] sm:$0xf]
    %v4125 = vld [vmem:[%s11 + $0x3c] sm:$0xf]
    %v4126 = vld [vmem:[%s11 + $0x40] sm:$0xf]
    %v4127 = vld [vmem:[%s11 + $0x44] sm:$0xf]
    %v4128 = vld [vmem:[%s11 + $0x48] sm:$0xf]
    %v4129 = vld [vmem:[%s11 + $0x4c] sm:$0xf]
    %v4130 = vld [vmem:[%s11 + $0x50] sm:$0xf]
    %v4131 = vld [vmem:[%s11 + $0x54] sm:$0xf]
    %v4132 = vld [vmem:[%s11 + $0x58] sm:$0xf]
    %v4133 = vld [vmem:[%s11 + $0x5c] sm:$0xf]
    %v4134 = vld [vmem:[%s11 + $0x60] sm:$0xf]
    %v4135 = vld [vmem:[%s11 + $0x64] sm:$0xf]
    %v4136 = vld [vmem:[%s11 + $0x68] sm:$0xf]
    %v4137 = vld [vmem:[%s11 + $0x6c] sm:$0xf]
    %v4138 = vld [vmem:[%s11 + $0x70] sm:$0xf]
    %v4139 = vld [vmem:[%s11 + $0x74] sm:$0xf]
    %v4140 = vld [vmem:[%s11 + $0x78] sm:$0xf]
    %v4141 = vld [vmem:[%s11 + $0x7c] sm:$0xf]
    %v4142 = vld [vmem:[%s12] sm:$0x1]
    %v4144 = vperm.slane %v4142, 0
    %4149 = vrot.lane.b32.xlu0 %v4107, 64
    %v4150 = vpop.permute.xlu0 %4149
    %4151 = vrot.lane.b32.xlu0 %v4108, 64
    %v4152 = vpop.permute.xlu0 %4151
    %4153 = vrot.lane.b32.xlu0 %v4109, 64
    %v4154 = vpop.permute.xlu0 %4153
    %vm4155 = vcmask 523264
    %v4156 = vsel %vm4155, %v4150, %v4152
    %v4157 = vsel %vm4155, %v4152, %v4154
    %v4192 = vunpack.c.l.b16 %v4110
    %v4193 = vunpack.c.l.b16 %v4111
    %v4194 = vunpack.c.l.b16 %v4112
    %v4195 = vunpack.c.l.b16 %v4113
    %v4196 = vunpack.c.l.b16 %v4114
    %v4197 = vunpack.c.l.b16 %v4115
    %v4198 = vunpack.c.l.b16 %v4116
    %v4199 = vunpack.c.l.b16 %v4117
    %v4200 = vunpack.c.l.b16 %v4118
    %v4201 = vunpack.c.l.b16 %v4119
    %v4202 = vunpack.c.l.b16 %v4120
    %v4203 = vunpack.c.l.b16 %v4121
    %v4204 = vunpack.c.l.b16 %v4122
    %v4205 = vunpack.c.l.b16 %v4123
    %v4206 = vunpack.c.l.b16 %v4124
    %v4207 = vunpack.c.l.b16 %v4125
    %v4208 = vunpack.c.l.b16 %v4126
    %v4209 = vunpack.c.l.b16 %v4127
    %v4210 = vunpack.c.l.b16 %v4128
    %v4211 = vunpack.c.l.b16 %v4129
    %v4212 = vunpack.c.l.b16 %v4130
    %v4213 = vunpack.c.l.b16 %v4131
    %v4214 = vunpack.c.l.b16 %v4132
    %v4215 = vunpack.c.l.b16 %v4133
    %v4216 = vunpack.c.l.b16 %v4134
    %v4217 = vunpack.c.l.b16 %v4135
    %v4218 = vunpack.c.l.b16 %v4136
    %v4219 = vunpack.c.l.b16 %v4137
    %v4220 = vunpack.c.l.b16 %v4138
    %v4221 = vunpack.c.l.b16 %v4139
    %v4222 = vunpack.c.l.b16 %v4140
    %v4223 = vunpack.c.l.b16 %v4141
    %v4224 = vpack.c.b16 %v4193, %v4192
    %v4225 = vpack.c.b16 %v4195, %v4194
    %v4226 = vpack.c.b16 %v4197, %v4196
    %v4227 = vpack.c.b16 %v4199, %v4198
    %v4228 = vpack.c.b16 %v4201, %v4200
    %v4229 = vpack.c.b16 %v4203, %v4202
    %v4230 = vpack.c.b16 %v4205, %v4204
    %v4231 = vpack.c.b16 %v4207, %v4206
    %v4232 = vpack.c.b16 %v4209, %v4208
    %v4233 = vpack.c.b16 %v4211, %v4210
    %v4234 = vpack.c.b16 %v4213, %v4212
    %v4235 = vpack.c.b16 %v4215, %v4214
    %v4236 = vpack.c.b16 %v4217, %v4216
    %v4237 = vpack.c.b16 %v4219, %v4218
    %v4238 = vpack.c.b16 %v4221, %v4220
    %v4239 = vpack.c.b16 %v4223, %v4222
    %4256 = vmatpush.bf16.msra.mxu0 %v4231
    %4257 = vmatpush.bf16.msra.mxu0 %v4230
    %4258 = vmatpush.bf16.msra.mxu0 %v4229
    %4259 = vmatpush.bf16.msra.mxu0 %v4228
    %4260 = vmatpush.bf16.msra.mxu0 %v4227
    %4261 = vmatpush.bf16.msra.mxu0 %v4226
    %4262 = vmatpush.bf16.msra.mxu0 %v4225
    %4263 = vmatpush.bf16.msra.mxu0 %v4224
    %4264 = vmatmul.bf16.gmra.mxu0 %v4156
    %v4265 = vpop.f32.mrf.mxu0
    %v4266 = vadd.f32 %v4144, %v4265
    %v4267 = vpop.f32.mrf.mxu0
    %4268 = vdwg.mxu0
    %4269 = vmatpush.bf16.msra.mxu0 %v4239
    %4270 = vmatpush.bf16.msra.mxu0 %v4238
    %4271 = vmatpush.bf16.msra.mxu0 %v4237
    %4272 = vmatpush.bf16.msra.mxu0 %v4236
    %4273 = vmatpush.bf16.msra.mxu0 %v4235
    %4274 = vmatpush.bf16.msra.mxu0 %v4234
    %4275 = vmatpush.bf16.msra.mxu0 %v4233
    %4276 = vmatpush.bf16.msra.mxu0 %v4232
    %4277 = vmatmul.bf16.gmra.mxu0 %v4157
    %v4278 = vpop.f32.mrf.mxu0
    %v4279 = vadd.f32 %v4266, %v4278
    %v4280 = vpop.f32.mrf.mxu0
    %4281 = vdwg.mxu0
    %vm4282 = vcmask 48128
    %v4283 = vsel %vm4282, %v4279, -inf
    %4284 = vmax.xlane.f32.xlu0 %v4283
    %v4285 = vpop.xlane.xlu0 %4284
    %v4286 = vsub.f32 %v4279, %v4285
    %v4287 = vmul.f32 %v4286, 1.442695
    %v4288 = vpow.pop %v4287
    %v4289 = vsel %vm4282, %v4288, 0.0
    %4290 = vadd.xlane.f32.xlu0 %v4289
    %v4291 = vpop.xlane.xlu0 %4290
    %v4292 = vrcp.pop %v4291
    %v4293 = vmul.f32 %v4288, %v4292
    %4294 = vst.msk [vmem:[#allocation4] sm:$0xff] %vm4282, %v4293
    %vm4295 = vcmask 97328
    %v4296 = vsel %vm4295, %v4279, -inf
    %4297 = vmax.xlane.f32.xlu0 %v4296
    %v4298 = vpop.xlane.xlu0 %4297
    %v4299 = vsub.f32 %v4279, %v4298
    %v4300 = vmul.f32 %v4299, 1.442695
    %v4301 = vpow.pop %v4300
    %4303 = vrot.lane.b32.xlu0 %v4301, 122
    %v4304 = vpop.permute.xlu0 %4303
    %v4306 = vsel %vm4282, %v4304, 0.0
    %4307 = vadd.xlane.f32.xlu0 %v4306
    %v4308 = vpop.xlane.xlu0 %4307
    %v4309 = vrcp.pop %v4308
    %v4310 = vmul.f32 %v4301, %v4309
    %4312 = vrot.lane.b32.xlu0 %v4310, 122
    %v4313 = vpop.permute.xlu0 %4312
    %4315 = vst.msk [vmem:[#allocation6] sm:$0xff] %vm4282, %v4313
    %v4316 = vld [vmem:[%s13] sm:$0xf]
    %v4318 = vperm.slane %v4316, 0
    %v4319 = vperm.slane %v4316, 1
    %v4320 = vperm.slane %v4316, 2
    %v4321 = vperm.slane %v4316, 3
    %v4326 = vmul.f32 %v2681, %v4318
    %v4327 = vmul.f32 %v2682, %v4319
    %v4328 = vmul.f32 %v2683, %v4320
    %v4329 = vmul.f32 %v2684, %v4321
    %v4330 = vadd.f32 %v4326, %v4327
    %v4331 = vadd.f32 %v4330, %v4328
    %v4332 = vadd.f32 %v4331, %v4329
    %4333 = vadd.xlane.f32.xlu0 %v4332
    %v4334 = vpop.xlane.xlu0 %4333
    %v4335 = vld [vmem:[%s14] sm:$0x1]
    %v4337 = vperm.slane %v4335, 0
    %v4339 = vmul.f32 %v4104, %v4337
    %vm4340 = vcmask 523264
    %v4341 = vsel %vm4340, %v4339, 0.0
    %4342 = vadd.xlane.f32.xlu0 %v4341
    %v4343 = vpop.xlane.xlu0 %4342
    %v4344 = vadd.f32 %v4334, %v4343
    %v4345 = vld [vmem:[#allocation3] sm:$0x1]
    %v4347 = vperm.slane %v4345, 0
    %v4349 = vadd.f32 %v4344, %v4347
    %vm4350 = vcmask 7168
    %4351 = vst.msk [vmem:[%s16] sm:$0xff] %vm4350, %v4349
    // Predicated region
    $region66: #{forward.1} parent=1 // pred_check
      _
    $region67: #{forward.1} parent=1 // pred_check_branch
      %4353 = sbr.rel (0) target = $region69
    $region68: #{forward.1} parent=1 // pred_region
      _
    $region69: #{forward.1} parent=1 // pred_fallthru
      _
    // Predicated region
    $region70: #{forward.1} parent=1 // pred_check
      _
    $region71: #{forward.1} parent=1 // pred_check_branch
      %4355 = sbr.rel (0) target = $region73
    $region72: #{forward.1} parent=1 // pred_region
      %4357 = vsyncadd [#allocation5], 0
      %s4359 = sshll.u32 [#allocation4], 4
      %s4360 = int_to_ptr.vmem [resolvable:$true] %s4359
      %s4361 = sshll.u32 %s17, 4
      %s4362 = int_to_ptr.hbm [resolvable:$true] %s4361
      %4364 = dma.vmem_to_hbm [thread:$0]  %s4360, 128, %s4362, [#allocation5]
    $region73: #{forward.1} parent=1 // pred_fallthru
      _
    // Predicated region
    $region74: #{forward.1} parent=1 // pred_check
      _
    $region75: #{forward.1} parent=1 // pred_check_branch
      %4366 = sbr.rel (0) target = $region77
    $region76: #{forward.1} parent=1 // pred_region
      %4368 = vsyncadd [#allocation7], 0
      %s4370 = sshll.u32 [#allocation6], 4
      %s4371 = int_to_ptr.vmem [resolvable:$true] %s4370
      %s4372 = sshll.u32 %s18, 4
      %s4373 = int_to_ptr.hbm [resolvable:$true] %s4372
      %4375 = dma.vmem_to_hbm [thread:$0]  %s4371, 128, %s4373, [#allocation7]
    $region77: #{forward.1} parent=1 // pred_fallthru
      _
    // Predicated region
    $region78: #{forward.1} parent=1 // pred_check
      _
    $region79: #{forward.1} parent=1 // pred_check_branch
      %4377 = sbr.rel (0) target = $region81
    $region80: #{forward.1} parent=1 // pred_region
      _
    $region81: #{forward.1} parent=1 // pred_fallthru
      _
    // Predicated region
    $region82: #{forward.1} parent=1 // pred_check
      _
    $region83: #{forward.1} parent=1 // pred_check_branch
      %4379 = sbr.rel (0) target = $region85
    $region84: #{forward.1} parent=1 // pred_region
      %4381 = dma.done [#allocation5], 128
    $region85: #{forward.1} parent=1 // pred_fallthru
      _
    // Predicated region
    $region86: #{forward.1} parent=1 // pred_check
      _
    $region87: #{forward.1} parent=1 // pred_check_branch
      %4383 = sbr.rel (0) target = $region89
    $region88: #{forward.1} parent=1 // pred_region
      %4385 = dma.done [#allocation7], 128
    $region89: #{forward.1} parent=1 // pred_fallthru
      _
    %4386 = vsyncpa [#allocation5], 1
    %4387 = vsyncpa [#allocation7], 1

</llo_original>
